<compile_context>
chip_gen: v7x
topology: tpu7x:2x2x1
jax: 0.10.0
libtpu: 0.0.40
codegen_flags: <defaults>
</compile_context>

<pallas_src>
import functools
import math

import jax
import jax.numpy as jnp
from jax import lax
from jax.experimental import pallas as pl
from jax.experimental.pallas import tpu as pltpu

K = 7            # spatial conv kernel size
PAD = K // 2     # padding = 3 (same as the PyTorch module)
BN_EPS = 1e-5
MiB = 1024 * 1024


def _cbam_kernel(x_ref, w1t_ref, w2t_ref, wtab_ref, bias_ref, o_ref, *, W):
    # x_ref:    (Bt, C, HW)   VMEM, lane-dense activations
    # w1t_ref:  (C, Chid)     VMEM, fc1 weight, transposed to dot-friendly layout
    # w2t_ref:  (Chid, C)     VMEM, fc2 weight, transposed
    # wtab_ref: (49, 2*HW)    VMEM, pre-splatted + pre-masked conv taps ([max | mean])
    # bias_ref: (1,)          SMEM, conv bias with BN folded in
    # o_ref:    (Bt, C, HW)   VMEM
    Bt, C, HW = x_ref.shape

    xb = x_ref[...].astype(jnp.float32)                               # (Bt, C, HW)

    # ---------------- channel attention ----------------
    # avg pool over HW on the MXU (batched contraction over the last dim, same pattern as
    # flash attention's 'bqd,bkd->bqk'); max pool stays on the XLU.
    ones_hw = jnp.full((Bt, 1, HW), 1.0 / HW, jnp.float32)
    avg_c = jnp.einsum('bkh,bch->bkc', ones_hw, xb,
                       preferred_element_type=jnp.float32)[:, 0, :]   # (Bt, C)
    max_c = jnp.max(xb, axis=2)                                       # (Bt, C)

    # Tiny shared FC on the MXU (instead of an unrolled per-hidden-unit VPU loop).
    w1t = w1t_ref[...]                                                # (C, Chid)
    w2t = w2t_ref[...]                                                # (Chid, C)
    h = (jnp.maximum(jnp.dot(avg_c, w1t, preferred_element_type=jnp.float32), 0.0) +
         jnp.maximum(jnp.dot(max_c, w1t, preferred_element_type=jnp.float32), 0.0))
    cw = jax.nn.sigmoid(jnp.dot(h, w2t, preferred_element_type=jnp.float32))  # (Bt, C)

    # ---------------- spatial attention ----------------
    # mean over channels of (x * cw) == (1/C) * cw[b,:] @ xb[b]  -> batched matvec on MXU
    # (same pattern as flash attention's 'bqk,bkd->bqd'); the max over channels stays on
    # the XLU and is the only op that needs the x*cw product materialized.
    mn_s = jnp.einsum('bkc,bch->bkh', cw[:, None, :], xb,
                      preferred_element_type=jnp.float32)[:, 0, :] * (1.0 / C)  # (Bt, HW)
    mx_s = jnp.max(xb * cw[:, :, None], axis=1)                       # (Bt, HW)
    comb = jnp.concatenate([mx_s, mn_s], axis=1)                      # (Bt, 2*HW): [max|mean]

    # 7x7 conv with zero padding: one roll (XLU) + one FMA per tap. The wtab rows already
    # zero every tap whose source pixel falls outside the HxW image, which also masks the
    # wrap-around contamination between the max and mean halves of `comb`.
    # NOTE: do not reorder the halves or drop the wrapper-side masking -- correctness of
    # the roll-based conv depends on it.
    accs = [jnp.zeros_like(comb) for _ in range(4)]   # round-robin: break the 49-deep chain
    t = 0
    for ky in range(K):
        for kx in range(K):
            off = (ky - PAD) * W + (kx - PAD)
            shift = (-off) % (2 * HW)
            rolled = comb if shift == 0 else pltpu.roll(comb, shift, axis=1)
            accs[t % 4] = accs[t % 4] + wtab_ref[pl.ds(t, 1), :] * rolled
            t += 1
    acc = (accs[0] + accs[1]) + (accs[2] + accs[3])
    conv = acc[:, :HW] + acc[:, HW:] + bias_ref[0]                    # (Bt, HW)
    sw = jax.nn.sigmoid(conv)                                         # (Bt, HW)

    # ---------------- final scaling ----------------
    # Re-read x_ref so xb / the x*cw temp above do not stay live until the store
    # (shorter f32 live ranges -> bigger batch blocks fit in VMEM, esp. on v7x).
    xo = x_ref[...]
    if xo.dtype == jnp.bfloat16:
        # bf16 path: do the two cheap scaling multiplies in bf16 directly.
        o_ref[...] = xo * cw.astype(xo.dtype)[:, :, None] * sw.astype(xo.dtype)[:, None, :]
    else:
        o_ref[...] = (xo.astype(jnp.float32) * cw[:, :, None]
                      * sw[:, None, :]).astype(o_ref.dtype)


def _tpu_vmem_and_cores():
    """Best-effort query of per-core VMEM capacity and TensorCore count.

    Falls back to the conservative (v7x-like) assumption of 64 MiB / 2 cores if the
    query is unavailable, so block sizing is always safe.
    """
    vmem_cap = 64 * MiB
    cores = 2
    try:
        info = pltpu.get_tpu_info()
        cap = getattr(info, "vmem_capacity_bytes", None)
        if cap:
            vmem_cap = int(cap)
        # Heuristic: 64 MiB-per-core parts (v7x-class) have 2 TensorCores per chip;
        # 128 MiB parts (v5e/v6e) have a single TensorCore.
        cores = 2 if vmem_cap <= 64 * MiB else 1
    except Exception:
        pass
    return vmem_cap, cores


def _pick_batch_block(B, per_batch_bytes, budget_bytes, multi_core):
    """Largest divisor of B whose per-step VMEM residency fits the budget.

    Prefers multiples of 8 (full sublane occupancy for the (Bt, *) attention-map math).
    On multi-TensorCore parts keeps >= 2 grid steps so the "parallel" axis can shard.
    """
    cap = max(1, budget_bytes // max(1, per_batch_bytes))
    if multi_core and B >= 2:
        cap = min(cap, max(1, B // 2))
    divs = [d for d in range(1, B + 1) if B % d == 0 and d <= cap]
    if not divs:
        return 1
    best = max(divs)
    mult8 = [d for d in divs if d % 8 == 0]
    if mult8 and 2 * max(mult8) >= best:
        return max(mult8)
    return best


def cbam(x, fc1_w, fc2_w, conv_w, conv_b, bn_gamma, bn_beta, bn_mean, bn_var,
         eps=BN_EPS):
    """CBAM forward.

    x:       (B, C, H, W)
    fc1_w:   (C//ratio, C)    Linear(C, C//ratio, bias=False).weight
    fc2_w:   (C, C//ratio)    Linear(C//ratio, C, bias=False).weight
    conv_w:  (1, 2, 7, 7)     Conv2d(2, 1, 7, padding=3).weight  (in-ch 0 = max, 1 = mean)
    conv_b:  (1,)             conv bias
    bn_*:    (1,)             BatchNorm2d(1) inference parameters (folded into the conv)
    """
    B, C, H, W = x.shape
    HW = H * W
    Chid = fc1_w.shape[0]

    # ---- fold inference-mode BatchNorm into the conv weight / bias (wrapper-side) ----
    scale = (bn_gamma / jnp.sqrt(bn_var + eps)).astype(jnp.float32)            # (1,)
    w_eff = conv_w.astype(jnp.float32) * scale.reshape(1, 1, 1, 1)             # (1,2,7,7)
    b_eff = ((conv_b.astype(jnp.float32) - bn_mean) * scale + bn_beta).astype(jnp.float32)

    # ---- pre-splat + pre-mask the 49 taps into a lane-dense table ----
    # Row t (tap (ky,kx)): first HW lanes weight the channel-max map, next HW the mean map;
    # entries whose source pixel would be zero padding are already zero, which also masks
    # wrap-around between the two halves of the concatenated map inside the kernel.
    yy = jnp.arange(HW, dtype=jnp.int32) // W
    xx = jnp.arange(HW, dtype=jnp.int32) % W
    rows = []
    for ky in range(K):
        for kx in range(K):
            dy, dx = ky - PAD, kx - PAD
            valid = ((yy + dy >= 0) & (yy + dy < H) &
                     (xx + dx >= 0) & (xx + dx < W)).astype(jnp.float32)
            rows.append(jnp.concatenate([w_eff[0, 0, ky, kx] * valid,
                                         w_eff[0, 1, ky, kx] * valid]))
    wtab = jnp.stack(rows, axis=0)                                             # (49, 2*HW)

    w1t = fc1_w.T.astype(jnp.float32)                                          # (C, Chid)
    w2t = fc2_w.T.astype(jnp.float32)                                          # (Chid, C)

    # ---- lane-dense layout + VMEM-aware batch-blocked grid ----
    # NOTE: best performance when HW is a multiple of 128 (lane-dense stores); other
    # shapes are still correct (full-dim blocks) but fall back to masked partial stores.
    x3 = x.reshape(B, C, HW)

    vmem_cap, cores = _tpu_vmem_and_cores()
    # Leave headroom for compiler-internal scratch; ~100 MiB on 128 MiB parts, ~40 MiB on
    # 64 MiB (v7x-class) parts.
    vmem_limit = int(max(32 * MiB, min(vmem_cap - 24 * MiB, 100 * MiB)))
    itemsize = jnp.dtype(x.dtype).itemsize
    # Per-step residency per batch row of the block:
    #   input block + output block, each double-buffered        -> 4 * itemsize
    #   two full-size f32 temps alive at once inside the kernel -> 8 bytes
    per_batch = C * HW * (4 * itemsize + 8)
    weight_bytes = 2 * 4 * (int(wtab.size) + int(w1t.size) + int(w2t.size))    # worst case
    budget = max(per_batch, vmem_limit - weight_bytes - 4 * MiB)
    # TODO(synk): for very large C*HW (e.g. C>=1024 with 56x56 maps) even Bt=1 exceeds the
    # budget; chunk the channel axis with an extra "arbitrary" grid axis in that case.
    Bt = _pick_batch_block(B, per_batch, budget, cores >= 2)
    grid = (B // Bt,)

    kernel = functools.partial(_cbam_kernel, W=W)

    def _call(buffered_weights):
        def const_spec(shape):
            # Weight tables have a constant index map; a single buffer avoids reserving a
            # second (double-buffer) copy in VMEM.
            if buffered_weights:
                return pl.BlockSpec(shape, lambda b: (0, 0), pipeline_mode=pl.Buffered(1))
            return pl.BlockSpec(shape, lambda b: (0, 0))

        return pl.pallas_call(
            kernel,
            out_shape=jax.ShapeDtypeStruct((B, C, HW), x.dtype),
            grid=grid,
            in_specs=[
                pl.BlockSpec((Bt, C, HW), lambda b: (b, 0, 0)),                # activations
                const_spec((C, Chid)),                                         # fc1^T
                const_spec((Chid, C)),                                         # fc2^T
                const_spec((K * K, 2 * HW)),                                   # conv taps
                pl.BlockSpec(memory_space=pltpu.MemorySpace.SMEM),             # folded bias
            ],
            out_specs=pl.BlockSpec((Bt, C, HW), lambda b: (b, 0, 0)),
            compiler_params=pltpu.CompilerParams(
                dimension_semantics=("parallel",),
                vmem_limit_bytes=vmem_limit),
        )(x3, w1t, w2t, wtab, b_eff)

    try:
        out3 = _call(True)
    except Exception:
        # Fallback for jax versions / configs that reject pipeline_mode=pl.Buffered(1).
        out3 = _call(False)

    return out3.reshape(B, C, H, W)


def cbam_reference(x, fc1_w, fc2_w, conv_w, conv_b, bn_gamma, bn_beta, bn_mean, bn_var,
                   eps=BN_EPS):
    """Pure-JAX reference matching the PyTorch CBAM forward (BN in inference mode)."""
    hp = lax.Precision.HIGHEST
    # channel attention
    avg = jnp.mean(x, axis=(2, 3))
    mx = jnp.max(x, axis=(2, 3))

    def fc(v):
        h = jnp.maximum(jnp.dot(v, fc1_w.T, precision=hp), 0.0)
        return jnp.dot(h, fc2_w.T, precision=hp)

    cw = jax.nn.sigmoid(fc(avg) + fc(mx))
    x1 = x * cw[:, :, None, None]
    # spatial attention: ChannelPool = concat(max, mean) over channels
    sp = jnp.concatenate([jnp.max(x1, axis=1, keepdims=True),
                          jnp.mean(x1, axis=1, keepdims=True)], axis=1)
    y = lax.conv_general_dilated(
        sp, conv_w, window_strides=(1, 1),
        padding=((PAD, PAD), (PAD, PAD)),
        dimension_numbers=("NCHW", "OIHW", "NCHW"),
        precision=hp) + conv_b.reshape(1, 1, 1, 1)
    y = (y - bn_mean.reshape(1, 1, 1, 1)) / jnp.sqrt(bn_var.reshape(1, 1, 1, 1) + eps)
    y = y * bn_gamma.reshape(1, 1, 1, 1) + bn_beta.reshape(1, 1, 1, 1)
    sw = jax.nn.sigmoid(y)
    return x1 * sw


if __name__ == "__main__":
    key = jax.random.PRNGKey(0)
    ks = jax.random.split(key, 6)

    B, C, H, W = 2, 32, 16, 16
    ratio = 16
    Chid = C // ratio  # 2

    x = jax.random.normal(ks[0], (B, C, H, W), dtype=jnp.float32)

    # channel-attention FC weights (PyTorch Linear (out, in) layout, no bias)
    b1 = 1.0 / math.sqrt(C)
    fc1_w = jax.random.uniform(ks[1], (Chid, C), minval=-b1, maxval=b1, dtype=jnp.float32)
    b2 = 1.0 / math.sqrt(Chid)
    fc2_w = jax.random.uniform(ks[2], (C, Chid), minval=-b2, maxval=b2, dtype=jnp.float32)

    # spatial conv (OIHW) + bias, BatchNorm2d(1) inference parameters
    bc = 1.0 / math.sqrt(2.0 * K * K)
    conv_w = jax.random.uniform(ks[3], (1, 2, K, K), minval=-bc, maxval=bc, dtype=jnp.float32)
    conv_b = jax.random.uniform(ks[4], (1,), minval=-bc, maxval=bc, dtype=jnp.float32)
    bn_gamma = jnp.array([1.3], jnp.float32)
    bn_beta = jnp.array([0.2], jnp.float32)
    bn_mean = jnp.array([0.05], jnp.float32)
    bn_var = jnp.array([0.8], jnp.float32)

    out = jax.block_until_ready(
        cbam(x, fc1_w, fc2_w, conv_w, conv_b, bn_gamma, bn_beta, bn_mean, bn_var))
    ref = jax.block_until_ready(
        cbam_reference(x, fc1_w, fc2_w, conv_w, conv_b, bn_gamma, bn_beta, bn_mean, bn_var))

    assert out.shape == (B, C, H, W), out.shape
    max_err = float(jnp.max(jnp.abs(out - ref)))
    # Tolerance note: f32 matmuls on the MXU may be executed with bf16 passes at default
    # precision (both inside the kernel and in XLA dots), so allow a few 1e-3 of slack;
    # this still catches any structural / indexing bug by orders of magnitude.
    assert jnp.allclose(out, ref, rtol=5e-3, atol=5e-3), f"max abs err = {max_err}"

    print("KERNEL_OK")
</pallas_src>

<mosaic_0001>
module attributes {stable_mosaic.version = 11 : i64} {
  func.func @_cbam_kernel(%arg0: i32, %arg1: memref<1x32x256xf32, #tpu.memory_space<vmem>>, %arg2: memref<32x2xf32, #tpu.memory_space<vmem>>, %arg3: memref<2x32xf32, #tpu.memory_space<vmem>>, %arg4: memref<49x512xf32, #tpu.memory_space<vmem>>, %arg5: memref<1xf32, #tpu.memory_space<smem>>, %arg6: memref<1x32x256xf32, #tpu.memory_space<vmem>>) attributes {dimension_semantics = [#tpu.dimension_semantics<parallel>], iteration_bounds = array<i64: 2>, scalar_prefetch = 0 : i64, scratch_operands = 0 : i64, tpu.core_type = #tpu.core_type<tc>, window_params = [{transform_indices = @transform_0, window_bounds = array<i64: 1, 32, 256>}, {pipeline_mode = #tpu.pipeline_mode<synchronous>, transform_indices = @transform_1, window_bounds = array<i64: 32, 2>}, {pipeline_mode = #tpu.pipeline_mode<synchronous>, transform_indices = @transform_2, window_bounds = array<i64: 2, 32>}, {pipeline_mode = #tpu.pipeline_mode<synchronous>, transform_indices = @transform_3, window_bounds = array<i64: 49, 512>}, {transform_indices = @transform_4, window_bounds = array<i64: 1>}, {transform_indices = @transform_5, window_bounds = array<i64: 1, 32, 256>}]} {
    %c0 = arith.constant 0 : index
    %c0_0 = arith.constant 0 : index
    %c0_1 = arith.constant 0 : index
    %0 = vector.load %arg1[%c0, %c0_0, %c0_1] : memref<1x32x256xf32, #tpu.memory_space<vmem>>, vector<1x32x256xf32>
    %cst = arith.constant 3.906250e-03 : f32
    %1 = vector.broadcast %cst : f32 to vector<1x1x256xf32>
    "tpu.trace_start"() <{level = 10 : i32, message = "bkh,bch->bkc"}> : () -> ()
    %cst_2 = arith.constant dense<0.000000e+00> : vector<1x1x32xf32>
    %2 = tpu.matmul %1, %0, %cst_2 {dimension_numbers = #tpu.dot_dimension_numbers<[2], [2], [1], [1], [0, 0, 0, 1, 1, 1], [0], [0]>} : vector<1x1x256xf32>, vector<1x32x256xf32>, vector<1x1x32xf32> -> vector<1x1x32xf32>
    "tpu.trace_stop"() : () -> ()
    %3 = vector.shape_cast %2 : vector<1x1x32xf32> to vector<1x32xf32>
    %cst_3 = arith.constant dense<0xFF800000> : vector<1x32xf32>
    %4 = vector.multi_reduction <maximumf>, %0, %cst_3 [2] : vector<1x32x256xf32> to vector<1x32xf32>
    %c0_4 = arith.constant 0 : index
    %c0_5 = arith.constant 0 : index
    %5 = vector.load %arg2[%c0_4, %c0_5] : memref<32x2xf32, #tpu.memory_space<vmem>>, vector<32x2xf32>
    %c0_6 = arith.constant 0 : index
    %c0_7 = arith.constant 0 : index
    %6 = vector.load %arg3[%c0_6, %c0_7] : memref<2x32xf32, #tpu.memory_space<vmem>>, vector<2x32xf32>
    %cst_8 = arith.constant dense<0.000000e+00> : vector<1x2xf32>
    %7 = tpu.matmul %3, %5, %cst_8 {dimension_numbers = #tpu.dot_dimension_numbers<[1], [0], [0], [1], [0, 0, 1, 1], [], []>} : vector<1x32xf32>, vector<32x2xf32>, vector<1x2xf32> -> vector<1x2xf32>
    %cst_9 = arith.constant 0.000000e+00 : f32
    %8 = vector.broadcast %cst_9 : f32 to vector<1x2xf32>
    %9 = arith.maximumf %7, %8 : vector<1x2xf32>
    %cst_10 = arith.constant dense<0.000000e+00> : vector<1x2xf32>
    %10 = tpu.matmul %4, %5, %cst_10 {dimension_numbers = #tpu.dot_dimension_numbers<[1], [0], [0], [1], [0, 0, 1, 1], [], []>} : vector<1x32xf32>, vector<32x2xf32>, vector<1x2xf32> -> vector<1x2xf32>
    %cst_11 = arith.constant 0.000000e+00 : f32
    %11 = vector.broadcast %cst_11 : f32 to vector<1x2xf32>
    %12 = arith.maximumf %10, %11 : vector<1x2xf32>
    %13 = arith.addf %9, %12 : vector<1x2xf32>
    %cst_12 = arith.constant dense<0.000000e+00> : vector<1x32xf32>
    %14 = tpu.matmul %13, %6, %cst_12 {dimension_numbers = #tpu.dot_dimension_numbers<[1], [0], [0], [1], [0, 0, 1, 1], [], []>} : vector<1x2xf32>, vector<2x32xf32>, vector<1x32xf32> -> vector<1x32xf32>
    %15 = arith.negf %14 : vector<1x32xf32>
    %16 = math.exp %15 : vector<1x32xf32>
    %cst_13 = arith.constant 1.000000e+00 : f32
    %17 = vector.broadcast %cst_13 : f32 to vector<1x32xf32>
    %18 = arith.addf %17, %16 : vector<1x32xf32>
    %19 = arith.divf %17, %18 : vector<1x32xf32>
    %20 = vector.shape_cast %19 : vector<1x32xf32> to vector<1x1x32xf32>
    "tpu.trace_start"() <{level = 10 : i32, message = "bkc,bch->bkh"}> : () -> ()
    %cst_14 = arith.constant dense<0.000000e+00> : vector<1x1x256xf32>
    %21 = tpu.matmul %20, %0, %cst_14 {dimension_numbers = #tpu.dot_dimension_numbers<[2], [1], [1], [2], [0, 0, 0, 1, 1, 2], [0], [0]>} : vector<1x1x32xf32>, vector<1x32x256xf32>, vector<1x1x256xf32> -> vector<1x1x256xf32>
    "tpu.trace_stop"() : () -> ()
    %22 = vector.shape_cast %21 : vector<1x1x256xf32> to vector<1x256xf32>
    %cst_15 = arith.constant 3.125000e-02 : f32
    %23 = vector.broadcast %cst_15 : f32 to vector<1x256xf32>
    %24 = arith.mulf %22, %23 : vector<1x256xf32>
    %25 = vector.shape_cast %19 : vector<1x32xf32> to vector<1x32x1xf32>
    %26 = vector.broadcast %25 : vector<1x32x1xf32> to vector<1x32x256xf32>
    %27 = arith.mulf %0, %26 : vector<1x32x256xf32>
    %cst_16 = arith.constant dense<0xFF800000> : vector<1x256xf32>
    %28 = vector.multi_reduction <maximumf>, %27, %cst_16 [1] : vector<1x32x256xf32> to vector<1x256xf32>
    %29 = tpu.concatenate %28, %24 in 1 : vector<1x256xf32>, vector<1x256xf32> -> vector<1x512xf32>
    %cst_17 = arith.constant 0.000000e+00 : f32
    %30 = vector.broadcast %cst_17 : f32 to vector<1x512xf32>
    %cst_18 = arith.constant 0.000000e+00 : f32
    %31 = vector.broadcast %cst_18 : f32 to vector<1x512xf32>
    %cst_19 = arith.constant 0.000000e+00 : f32
    %32 = vector.broadcast %cst_19 : f32 to vector<1x512xf32>
    %cst_20 = arith.constant 0.000000e+00 : f32
    %33 = vector.broadcast %cst_20 : f32 to vector<1x512xf32>
    %c51_i32 = arith.constant 51 : i32
    %34 = tpu.dynamic_rotate %29 by %c51_i32 dim 1 : vector<1x512xf32>, i32 -> vector<1x512xf32>
    %c0_21 = arith.constant 0 : index
    %c0_22 = arith.constant 0 : index
    %35 = vector.load %arg4[%c0_21, %c0_22] : memref<49x512xf32, #tpu.memory_space<vmem>>, vector<1x512xf32>
    %36 = arith.mulf %35, %34 : vector<1x512xf32>
    %37 = arith.addf %30, %36 : vector<1x512xf32>
    %c50_i32 = arith.constant 50 : i32
    %38 = tpu.dynamic_rotate %29 by %c50_i32 dim 1 : vector<1x512xf32>, i32 -> vector<1x512xf32>
    %c1 = arith.constant 1 : index
    %c0_23 = arith.constant 0 : index
    %39 = vector.load %arg4[%c1, %c0_23] : memref<49x512xf32, #tpu.memory_space<vmem>>, vector<1x512xf32>
    %40 = arith.mulf %39, %38 : vector<1x512xf32>
    %41 = arith.addf %31, %40 : vector<1x512xf32>
    %c49_i32 = arith.constant 49 : i32
    %42 = tpu.dynamic_rotate %29 by %c49_i32 dim 1 : vector<1x512xf32>, i32 -> vector<1x512xf32>
    %c2 = arith.constant 2 : index
    %c0_24 = arith.constant 0 : index
    %43 = vector.load %arg4[%c2, %c0_24] : memref<49x512xf32, #tpu.memory_space<vmem>>, vector<1x512xf32>
    %44 = arith.mulf %43, %42 : vector<1x512xf32>
    %45 = arith.addf %32, %44 : vector<1x512xf32>
    %c48_i32 = arith.constant 48 : i32
    %46 = tpu.dynamic_rotate %29 by %c48_i32 dim 1 : vector<1x512xf32>, i32 -> vector<1x512xf32>
    %c3 = arith.constant 3 : index
    %c0_25 = arith.constant 0 : index
    %47 = vector.load %arg4[%c3, %c0_25] : memref<49x512xf32, #tpu.memory_space<vmem>>, vector<1x512xf32>
    %48 = arith.mulf %47, %46 : vector<1x512xf32>
    %49 = arith.addf %33, %48 : vector<1x512xf32>
    %c47_i32 = arith.constant 47 : i32
    %50 = tpu.dynamic_rotate %29 by %c47_i32 dim 1 : vector<1x512xf32>, i32 -> vector<1x512xf32>
    %c4 = arith.constant 4 : index
    %c0_26 = arith.constant 0 : index
    %51 = vector.load %arg4[%c4, %c0_26] : memref<49x512xf32, #tpu.memory_space<vmem>>, vector<1x512xf32>
    %52 = arith.mulf %51, %50 : vector<1x512xf32>
    %53 = arith.addf %37, %52 : vector<1x512xf32>
    %c46_i32 = arith.constant 46 : i32
    %54 = tpu.dynamic_rotate %29 by %c46_i32 dim 1 : vector<1x512xf32>, i32 -> vector<1x512xf32>
    %c5 = arith.constant 5 : index
    %c0_27 = arith.constant 0 : index
    %55 = vector.load %arg4[%c5, %c0_27] : memref<49x512xf32, #tpu.memory_space<vmem>>, vector<1x512xf32>
    %56 = arith.mulf %55, %54 : vector<1x512xf32>
    %57 = arith.addf %41, %56 : vector<1x512xf32>
    %c45_i32 = arith.constant 45 : i32
    %58 = tpu.dynamic_rotate %29 by %c45_i32 dim 1 : vector<1x512xf32>, i32 -> vector<1x512xf32>
    %c6 = arith.constant 6 : index
    %c0_28 = arith.constant 0 : index
    %59 = vector.load %arg4[%c6, %c0_28] : memref<49x512xf32, #tpu.memory_space<vmem>>, vector<1x512xf32>
    %60 = arith.mulf %59, %58 : vector<1x512xf32>
    %61 = arith.addf %45, %60 : vector<1x512xf32>
    %c35_i32 = arith.constant 35 : i32
    %62 = tpu.dynamic_rotate %29 by %c35_i32 dim 1 : vector<1x512xf32>, i32 -> vector<1x512xf32>
    %c7 = arith.constant 7 : index
    %c0_29 = arith.constant 0 : index
    %63 = vector.load %arg4[%c7, %c0_29] : memref<49x512xf32, #tpu.memory_space<vmem>>, vector<1x512xf32>
    %64 = arith.mulf %63, %62 : vector<1x512xf32>
    %65 = arith.addf %49, %64 : vector<1x512xf32>
    %c34_i32 = arith.constant 34 : i32
    %66 = tpu.dynamic_rotate %29 by %c34_i32 dim 1 : vector<1x512xf32>, i32 -> vector<1x512xf32>
    %c8 = arith.constant 8 : index
    %c0_30 = arith.constant 0 : index
    %67 = vector.load %arg4[%c8, %c0_30] : memref<49x512xf32, #tpu.memory_space<vmem>>, vector<1x512xf32>
    %68 = arith.mulf %67, %66 : vector<1x512xf32>
    %69 = arith.addf %53, %68 : vector<1x512xf32>
    %c33_i32 = arith.constant 33 : i32
    %70 = tpu.dynamic_rotate %29 by %c33_i32 dim 1 : vector<1x512xf32>, i32 -> vector<1x512xf32>
    %c9 = arith.constant 9 : index
    %c0_31 = arith.constant 0 : index
    %71 = vector.load %arg4[%c9, %c0_31] : memref<49x512xf32, #tpu.memory_space<vmem>>, vector<1x512xf32>
    %72 = arith.mulf %71, %70 : vector<1x512xf32>
    %73 = arith.addf %57, %72 : vector<1x512xf32>
    %c32_i32 = arith.constant 32 : i32
    %74 = tpu.dynamic_rotate %29 by %c32_i32 dim 1 : vector<1x512xf32>, i32 -> vector<1x512xf32>
    %c10 = arith.constant 10 : index
    %c0_32 = arith.constant 0 : index
    %75 = vector.load %arg4[%c10, %c0_32] : memref<49x512xf32, #tpu.memory_space<vmem>>, vector<1x512xf32>
    %76 = arith.mulf %75, %74 : vector<1x512xf32>
    %77 = arith.addf %61, %76 : vector<1x512xf32>
    %c31_i32 = arith.constant 31 : i32
    %78 = tpu.dynamic_rotate %29 by %c31_i32 dim 1 : vector<1x512xf32>, i32 -> vector<1x512xf32>
    %c11 = arith.constant 11 : index
    %c0_33 = arith.constant 0 : index
    %79 = vector.load %arg4[%c11, %c0_33] : memref<49x512xf32, #tpu.memory_space<vmem>>, vector<1x512xf32>
    %80 = arith.mulf %79, %78 : vector<1x512xf32>
    %81 = arith.addf %65, %80 : vector<1x512xf32>
    %c30_i32 = arith.constant 30 : i32
    %82 = tpu.dynamic_rotate %29 by %c30_i32 dim 1 : vector<1x512xf32>, i32 -> vector<1x512xf32>
    %c12 = arith.constant 12 : index
    %c0_34 = arith.constant 0 : index
    %83 = vector.load %arg4[%c12, %c0_34] : memref<49x512xf32, #tpu.memory_space<vmem>>, vector<1x512xf32>
    %84 = arith.mulf %83, %82 : vector<1x512xf32>
    %85 = arith.addf %69, %84 : vector<1x512xf32>
    %c29_i32 = arith.constant 29 : i32
    %86 = tpu.dynamic_rotate %29 by %c29_i32 dim 1 : vector<1x512xf32>, i32 -> vector<1x512xf32>
    %c13 = arith.constant 13 : index
    %c0_35 = arith.constant 0 : index
    %87 = vector.load %arg4[%c13, %c0_35] : memref<49x512xf32, #tpu.memory_space<vmem>>, vector<1x512xf32>
    %88 = arith.mulf %87, %86 : vector<1x512xf32>
    %89 = arith.addf %73, %88 : vector<1x512xf32>
    %c19_i32 = arith.constant 19 : i32
    %90 = tpu.dynamic_rotate %29 by %c19_i32 dim 1 : vector<1x512xf32>, i32 -> vector<1x512xf32>
    %c14 = arith.constant 14 : index
    %c0_36 = arith.constant 0 : index
    %91 = vector.load %arg4[%c14, %c0_36] : memref<49x512xf32, #tpu.memory_space<vmem>>, vector<1x512xf32>
    %92 = arith.mulf %91, %90 : vector<1x512xf32>
    %93 = arith.addf %77, %92 : vector<1x512xf32>
    %c18_i32 = arith.constant 18 : i32
    %94 = tpu.dynamic_rotate %29 by %c18_i32 dim 1 : vector<1x512xf32>, i32 -> vector<1x512xf32>
    %c15 = arith.constant 15 : index
    %c0_37 = arith.constant 0 : index
    %95 = vector.load %arg4[%c15, %c0_37] : memref<49x512xf32, #tpu.memory_space<vmem>>, vector<1x512xf32>
    %96 = arith.mulf %95, %94 : vector<1x512xf32>
    %97 = arith.addf %81, %96 : vector<1x512xf32>
    %c17_i32 = arith.constant 17 : i32
    %98 = tpu.dynamic_rotate %29 by %c17_i32 dim 1 : vector<1x512xf32>, i32 -> vector<1x512xf32>
    %c16 = arith.constant 16 : index
    %c0_38 = arith.constant 0 : index
    %99 = vector.load %arg4[%c16, %c0_38] : memref<49x512xf32, #tpu.memory_space<vmem>>, vector<1x512xf32>
    %100 = arith.mulf %99, %98 : vector<1x512xf32>
    %101 = arith.addf %85, %100 : vector<1x512xf32>
    %c16_i32 = arith.constant 16 : i32
    %102 = tpu.dynamic_rotate %29 by %c16_i32 dim 1 : vector<1x512xf32>, i32 -> vector<1x512xf32>
    %c17 = arith.constant 17 : index
    %c0_39 = arith.constant 0 : index
    %103 = vector.load %arg4[%c17, %c0_39] : memref<49x512xf32, #tpu.memory_space<vmem>>, vector<1x512xf32>
    %104 = arith.mulf %103, %102 : vector<1x512xf32>
    %105 = arith.addf %89, %104 : vector<1x512xf32>
    %c15_i32 = arith.constant 15 : i32
    %106 = tpu.dynamic_rotate %29 by %c15_i32 dim 1 : vector<1x512xf32>, i32 -> vector<1x512xf32>
    %c18 = arith.constant 18 : index
    %c0_40 = arith.constant 0 : index
    %107 = vector.load %arg4[%c18, %c0_40] : memref<49x512xf32, #tpu.memory_space<vmem>>, vector<1x512xf32>
    %108 = arith.mulf %107, %106 : vector<1x512xf32>
    %109 = arith.addf %93, %108 : vector<1x512xf32>
    %c14_i32 = arith.constant 14 : i32
    %110 = tpu.dynamic_rotate %29 by %c14_i32 dim 1 : vector<1x512xf32>, i32 -> vector<1x512xf32>
    %c19 = arith.constant 19 : index
    %c0_41 = arith.constant 0 : index
    %111 = vector.load %arg4[%c19, %c0_41] : memref<49x512xf32, #tpu.memory_space<vmem>>, vector<1x512xf32>
    %112 = arith.mulf %111, %110 : vector<1x512xf32>
    %113 = arith.addf %97, %112 : vector<1x512xf32>
    %c13_i32 = arith.constant 13 : i32
    %114 = tpu.dynamic_rotate %29 by %c13_i32 dim 1 : vector<1x512xf32>, i32 -> vector<1x512xf32>
    %c20 = arith.constant 20 : index
    %c0_42 = arith.constant 0 : index
    %115 = vector.load %arg4[%c20, %c0_42] : memref<49x512xf32, #tpu.memory_space<vmem>>, vector<1x512xf32>
    %116 = arith.mulf %115, %114 : vector<1x512xf32>
    %117 = arith.addf %101, %116 : vector<1x512xf32>
    %c3_i32 = arith.constant 3 : i32
    %118 = tpu.dynamic_rotate %29 by %c3_i32 dim 1 : vector<1x512xf32>, i32 -> vector<1x512xf32>
    %c21 = arith.constant 21 : index
    %c0_43 = arith.constant 0 : index
    %119 = vector.load %arg4[%c21, %c0_43] : memref<49x512xf32, #tpu.memory_space<vmem>>, vector<1x512xf32>
    %120 = arith.mulf %119, %118 : vector<1x512xf32>
    %121 = arith.addf %105, %120 : vector<1x512xf32>
    %c2_i32 = arith.constant 2 : i32
    %122 = tpu.dynamic_rotate %29 by %c2_i32 dim 1 : vector<1x512xf32>, i32 -> vector<1x512xf32>
    %c22 = arith.constant 22 : index
    %c0_44 = arith.constant 0 : index
    %123 = vector.load %arg4[%c22, %c0_44] : memref<49x512xf32, #tpu.memory_space<vmem>>, vector<1x512xf32>
    %124 = arith.mulf %123, %122 : vector<1x512xf32>
    %125 = arith.addf %109, %124 : vector<1x512xf32>
    %c1_i32 = arith.constant 1 : i32
    %126 = tpu.dynamic_rotate %29 by %c1_i32 dim 1 : vector<1x512xf32>, i32 -> vector<1x512xf32>
    %c23 = arith.constant 23 : index
    %c0_45 = arith.constant 0 : index
    %127 = vector.load %arg4[%c23, %c0_45] : memref<49x512xf32, #tpu.memory_space<vmem>>, vector<1x512xf32>
    %128 = arith.mulf %127, %126 : vector<1x512xf32>
    %129 = arith.addf %113, %128 : vector<1x512xf32>
    %c24 = arith.constant 24 : index
    %c0_46 = arith.constant 0 : index
    %130 = vector.load %arg4[%c24, %c0_46] : memref<49x512xf32, #tpu.memory_space<vmem>>, vector<1x512xf32>
    %131 = arith.mulf %130, %29 : vector<1x512xf32>
    %132 = arith.addf %117, %131 : vector<1x512xf32>
    %c511_i32 = arith.constant 511 : i32
    %133 = tpu.dynamic_rotate %29 by %c511_i32 dim 1 : vector<1x512xf32>, i32 -> vector<1x512xf32>
    %c25 = arith.constant 25 : index
    %c0_47 = arith.constant 0 : index
    %134 = vector.load %arg4[%c25, %c0_47] : memref<49x512xf32, #tpu.memory_space<vmem>>, vector<1x512xf32>
    %135 = arith.mulf %134, %133 : vector<1x512xf32>
    %136 = arith.addf %121, %135 : vector<1x512xf32>
    %c510_i32 = arith.constant 510 : i32
    %137 = tpu.dynamic_rotate %29 by %c510_i32 dim 1 : vector<1x512xf32>, i32 -> vector<1x512xf32>
    %c26 = arith.constant 26 : index
    %c0_48 = arith.constant 0 : index
    %138 = vector.load %arg4[%c26, %c0_48] : memref<49x512xf32, #tpu.memory_space<vmem>>, vector<1x512xf32>
    %139 = arith.mulf %138, %137 : vector<1x512xf32>
    %140 = arith.addf %125, %139 : vector<1x512xf32>
    %c509_i32 = arith.constant 509 : i32
    %141 = tpu.dynamic_rotate %29 by %c509_i32 dim 1 : vector<1x512xf32>, i32 -> vector<1x512xf32>
    %c27 = arith.constant 27 : index
    %c0_49 = arith.constant 0 : index
    %142 = vector.load %arg4[%c27, %c0_49] : memref<49x512xf32, #tpu.memory_space<vmem>>, vector<1x512xf32>
    %143 = arith.mulf %142, %141 : vector<1x512xf32>
    %144 = arith.addf %129, %143 : vector<1x512xf32>
    %c499_i32 = arith.constant 499 : i32
    %145 = tpu.dynamic_rotate %29 by %c499_i32 dim 1 : vector<1x512xf32>, i32 -> vector<1x512xf32>
    %c28 = arith.constant 28 : index
    %c0_50 = arith.constant 0 : index
    %146 = vector.load %arg4[%c28, %c0_50] : memref<49x512xf32, #tpu.memory_space<vmem>>, vector<1x512xf32>
    %147 = arith.mulf %146, %145 : vector<1x512xf32>
    %148 = arith.addf %132, %147 : vector<1x512xf32>
    %c498_i32 = arith.constant 498 : i32
    %149 = tpu.dynamic_rotate %29 by %c498_i32 dim 1 : vector<1x512xf32>, i32 -> vector<1x512xf32>
    %c29 = arith.constant 29 : index
    %c0_51 = arith.constant 0 : index
    %150 = vector.load %arg4[%c29, %c0_51] : memref<49x512xf32, #tpu.memory_space<vmem>>, vector<1x512xf32>
    %151 = arith.mulf %150, %149 : vector<1x512xf32>
    %152 = arith.addf %136, %151 : vector<1x512xf32>
    %c497_i32 = arith.constant 497 : i32
    %153 = tpu.dynamic_rotate %29 by %c497_i32 dim 1 : vector<1x512xf32>, i32 -> vector<1x512xf32>
    %c30 = arith.constant 30 : index
    %c0_52 = arith.constant 0 : index
    %154 = vector.load %arg4[%c30, %c0_52] : memref<49x512xf32, #tpu.memory_space<vmem>>, vector<1x512xf32>
    %155 = arith.mulf %154, %153 : vector<1x512xf32>
    %156 = arith.addf %140, %155 : vector<1x512xf32>
    %c496_i32 = arith.constant 496 : i32
    %157 = tpu.dynamic_rotate %29 by %c496_i32 dim 1 : vector<1x512xf32>, i32 -> vector<1x512xf32>
    %c31 = arith.constant 31 : index
    %c0_53 = arith.constant 0 : index
    %158 = vector.load %arg4[%c31, %c0_53] : memref<49x512xf32, #tpu.memory_space<vmem>>, vector<1x512xf32>
    %159 = arith.mulf %158, %157 : vector<1x512xf32>
    %160 = arith.addf %144, %159 : vector<1x512xf32>
    %c495_i32 = arith.constant 495 : i32
    %161 = tpu.dynamic_rotate %29 by %c495_i32 dim 1 : vector<1x512xf32>, i32 -> vector<1x512xf32>
    %c32 = arith.constant 32 : index
    %c0_54 = arith.constant 0 : index
    %162 = vector.load %arg4[%c32, %c0_54] : memref<49x512xf32, #tpu.memory_space<vmem>>, vector<1x512xf32>
    %163 = arith.mulf %162, %161 : vector<1x512xf32>
    %164 = arith.addf %148, %163 : vector<1x512xf32>
    %c494_i32 = arith.constant 494 : i32
    %165 = tpu.dynamic_rotate %29 by %c494_i32 dim 1 : vector<1x512xf32>, i32 -> vector<1x512xf32>
    %c33 = arith.constant 33 : index
    %c0_55 = arith.constant 0 : index
    %166 = vector.load %arg4[%c33, %c0_55] : memref<49x512xf32, #tpu.memory_space<vmem>>, vector<1x512xf32>
    %167 = arith.mulf %166, %165 : vector<1x512xf32>
    %168 = arith.addf %152, %167 : vector<1x512xf32>
    %c493_i32 = arith.constant 493 : i32
    %169 = tpu.dynamic_rotate %29 by %c493_i32 dim 1 : vector<1x512xf32>, i32 -> vector<1x512xf32>
    %c34 = arith.constant 34 : index
    %c0_56 = arith.constant 0 : index
    %170 = vector.load %arg4[%c34, %c0_56] : memref<49x512xf32, #tpu.memory_space<vmem>>, vector<1x512xf32>
    %171 = arith.mulf %170, %169 : vector<1x512xf32>
    %172 = arith.addf %156, %171 : vector<1x512xf32>
    %c483_i32 = arith.constant 483 : i32
    %173 = tpu.dynamic_rotate %29 by %c483_i32 dim 1 : vector<1x512xf32>, i32 -> vector<1x512xf32>
    %c35 = arith.constant 35 : index
    %c0_57 = arith.constant 0 : index
    %174 = vector.load %arg4[%c35, %c0_57] : memref<49x512xf32, #tpu.memory_space<vmem>>, vector<1x512xf32>
    %175 = arith.mulf %174, %173 : vector<1x512xf32>
    %176 = arith.addf %160, %175 : vector<1x512xf32>
    %c482_i32 = arith.constant 482 : i32
    %177 = tpu.dynamic_rotate %29 by %c482_i32 dim 1 : vector<1x512xf32>, i32 -> vector<1x512xf32>
    %c36 = arith.constant 36 : index
    %c0_58 = arith.constant 0 : index
    %178 = vector.load %arg4[%c36, %c0_58] : memref<49x512xf32, #tpu.memory_space<vmem>>, vector<1x512xf32>
    %179 = arith.mulf %178, %177 : vector<1x512xf32>
    %180 = arith.addf %164, %179 : vector<1x512xf32>
    %c481_i32 = arith.constant 481 : i32
    %181 = tpu.dynamic_rotate %29 by %c481_i32 dim 1 : vector<1x512xf32>, i32 -> vector<1x512xf32>
    %c37 = arith.constant 37 : index
    %c0_59 = arith.constant 0 : index
    %182 = vector.load %arg4[%c37, %c0_59] : memref<49x512xf32, #tpu.memory_space<vmem>>, vector<1x512xf32>
    %183 = arith.mulf %182, %181 : vector<1x512xf32>
    %184 = arith.addf %168, %183 : vector<1x512xf32>
    %c480_i32 = arith.constant 480 : i32
    %185 = tpu.dynamic_rotate %29 by %c480_i32 dim 1 : vector<1x512xf32>, i32 -> vector<1x512xf32>
    %c38 = arith.constant 38 : index
    %c0_60 = arith.constant 0 : index
    %186 = vector.load %arg4[%c38, %c0_60] : memref<49x512xf32, #tpu.memory_space<vmem>>, vector<1x512xf32>
    %187 = arith.mulf %186, %185 : vector<1x512xf32>
    %188 = arith.addf %172, %187 : vector<1x512xf32>
    %c479_i32 = arith.constant 479 : i32
    %189 = tpu.dynamic_rotate %29 by %c479_i32 dim 1 : vector<1x512xf32>, i32 -> vector<1x512xf32>
    %c39 = arith.constant 39 : index
    %c0_61 = arith.constant 0 : index
    %190 = vector.load %arg4[%c39, %c0_61] : memref<49x512xf32, #tpu.memory_space<vmem>>, vector<1x512xf32>
    %191 = arith.mulf %190, %189 : vector<1x512xf32>
    %192 = arith.addf %176, %191 : vector<1x512xf32>
    %c478_i32 = arith.constant 478 : i32
    %193 = tpu.dynamic_rotate %29 by %c478_i32 dim 1 : vector<1x512xf32>, i32 -> vector<1x512xf32>
    %c40 = arith.constant 40 : index
    %c0_62 = arith.constant 0 : index
    %194 = vector.load %arg4[%c40, %c0_62] : memref<49x512xf32, #tpu.memory_space<vmem>>, vector<1x512xf32>
    %195 = arith.mulf %194, %193 : vector<1x512xf32>
    %196 = arith.addf %180, %195 : vector<1x512xf32>
    %c477_i32 = arith.constant 477 : i32
    %197 = tpu.dynamic_rotate %29 by %c477_i32 dim 1 : vector<1x512xf32>, i32 -> vector<1x512xf32>
    %c41 = arith.constant 41 : index
    %c0_63 = arith.constant 0 : index
    %198 = vector.load %arg4[%c41, %c0_63] : memref<49x512xf32, #tpu.memory_space<vmem>>, vector<1x512xf32>
    %199 = arith.mulf %198, %197 : vector<1x512xf32>
    %200 = arith.addf %184, %199 : vector<1x512xf32>
    %c467_i32 = arith.constant 467 : i32
    %201 = tpu.dynamic_rotate %29 by %c467_i32 dim 1 : vector<1x512xf32>, i32 -> vector<1x512xf32>
    %c42 = arith.constant 42 : index
    %c0_64 = arith.constant 0 : index
    %202 = vector.load %arg4[%c42, %c0_64] : memref<49x512xf32, #tpu.memory_space<vmem>>, vector<1x512xf32>
    %203 = arith.mulf %202, %201 : vector<1x512xf32>
    %204 = arith.addf %188, %203 : vector<1x512xf32>
    %c466_i32 = arith.constant 466 : i32
    %205 = tpu.dynamic_rotate %29 by %c466_i32 dim 1 : vector<1x512xf32>, i32 -> vector<1x512xf32>
    %c43 = arith.constant 43 : index
    %c0_65 = arith.constant 0 : index
    %206 = vector.load %arg4[%c43, %c0_65] : memref<49x512xf32, #tpu.memory_space<vmem>>, vector<1x512xf32>
    %207 = arith.mulf %206, %205 : vector<1x512xf32>
    %208 = arith.addf %192, %207 : vector<1x512xf32>
    %c465_i32 = arith.constant 465 : i32
    %209 = tpu.dynamic_rotate %29 by %c465_i32 dim 1 : vector<1x512xf32>, i32 -> vector<1x512xf32>
    %c44 = arith.constant 44 : index
    %c0_66 = arith.constant 0 : index
    %210 = vector.load %arg4[%c44, %c0_66] : memref<49x512xf32, #tpu.memory_space<vmem>>, vector<1x512xf32>
    %211 = arith.mulf %210, %209 : vector<1x512xf32>
    %212 = arith.addf %196, %211 : vector<1x512xf32>
    %c464_i32 = arith.constant 464 : i32
    %213 = tpu.dynamic_rotate %29 by %c464_i32 dim 1 : vector<1x512xf32>, i32 -> vector<1x512xf32>
    %c45 = arith.constant 45 : index
    %c0_67 = arith.constant 0 : index
    %214 = vector.load %arg4[%c45, %c0_67] : memref<49x512xf32, #tpu.memory_space<vmem>>, vector<1x512xf32>
    %215 = arith.mulf %214, %213 : vector<1x512xf32>
    %216 = arith.addf %200, %215 : vector<1x512xf32>
    %c463_i32 = arith.constant 463 : i32
    %217 = tpu.dynamic_rotate %29 by %c463_i32 dim 1 : vector<1x512xf32>, i32 -> vector<1x512xf32>
    %c46 = arith.constant 46 : index
    %c0_68 = arith.constant 0 : index
    %218 = vector.load %arg4[%c46, %c0_68] : memref<49x512xf32, #tpu.memory_space<vmem>>, vector<1x512xf32>
    %219 = arith.mulf %218, %217 : vector<1x512xf32>
    %220 = arith.addf %204, %219 : vector<1x512xf32>
    %c462_i32 = arith.constant 462 : i32
    %221 = tpu.dynamic_rotate %29 by %c462_i32 dim 1 : vector<1x512xf32>, i32 -> vector<1x512xf32>
    %c47 = arith.constant 47 : index
    %c0_69 = arith.constant 0 : index
    %222 = vector.load %arg4[%c47, %c0_69] : memref<49x512xf32, #tpu.memory_space<vmem>>, vector<1x512xf32>
    %223 = arith.mulf %222, %221 : vector<1x512xf32>
    %224 = arith.addf %208, %223 : vector<1x512xf32>
    %c461_i32 = arith.constant 461 : i32
    %225 = tpu.dynamic_rotate %29 by %c461_i32 dim 1 : vector<1x512xf32>, i32 -> vector<1x512xf32>
    %c48 = arith.constant 48 : index
    %c0_70 = arith.constant 0 : index
    %226 = vector.load %arg4[%c48, %c0_70] : memref<49x512xf32, #tpu.memory_space<vmem>>, vector<1x512xf32>
    %227 = arith.mulf %226, %225 : vector<1x512xf32>
    %228 = arith.addf %212, %227 : vector<1x512xf32>
    %229 = arith.addf %228, %216 : vector<1x512xf32>
    %230 = arith.addf %220, %224 : vector<1x512xf32>
    %231 = arith.addf %229, %230 : vector<1x512xf32>
    %232 = vector.extract_strided_slice %231 {offsets = [0, 0], sizes = [1, 256], strides = [1, 1]} : vector<1x512xf32> to vector<1x256xf32>
    %233 = vector.extract_strided_slice %231 {offsets = [0, 256], sizes = [1, 256], strides = [1, 1]} : vector<1x512xf32> to vector<1x256xf32>
    %234 = arith.addf %232, %233 : vector<1x256xf32>
    %c0_71 = arith.constant 0 : index
    %235 = memref.load %arg5[%c0_71] : memref<1xf32, #tpu.memory_space<smem>>
    %236 = vector.broadcast %235 : f32 to vector<1x256xf32>
    %237 = arith.addf %234, %236 : vector<1x256xf32>
    %238 = arith.negf %237 : vector<1x256xf32>
    %239 = math.exp %238 : vector<1x256xf32>
    %cst_72 = arith.constant 1.000000e+00 : f32
    %240 = vector.broadcast %cst_72 : f32 to vector<1x256xf32>
    %241 = arith.addf %240, %239 : vector<1x256xf32>
    %242 = arith.divf %240, %241 : vector<1x256xf32>
    %c0_73 = arith.constant 0 : index
    %c0_74 = arith.constant 0 : index
    %c0_75 = arith.constant 0 : index
    %243 = vector.load %arg1[%c0_73, %c0_74, %c0_75] : memref<1x32x256xf32, #tpu.memory_space<vmem>>, vector<1x32x256xf32>
    %244 = vector.shape_cast %19 : vector<1x32xf32> to vector<1x32x1xf32>
    %245 = vector.broadcast %244 : vector<1x32x1xf32> to vector<1x32x256xf32>
    %246 = arith.mulf %243, %245 : vector<1x32x256xf32>
    %247 = vector.shape_cast %242 : vector<1x256xf32> to vector<1x1x256xf32>
    %248 = vector.broadcast %247 : vector<1x1x256xf32> to vector<1x32x256xf32>
    %249 = arith.mulf %246, %248 : vector<1x32x256xf32>
    %c0_76 = arith.constant 0 : index
    %c0_77 = arith.constant 0 : index
    %c0_78 = arith.constant 0 : index
    %250 = vector.load %arg6[%c0_76, %c0_77, %c0_78] : memref<1x32x256xf32, #tpu.memory_space<vmem>>, vector<1x32x256xf32>
    tpu.vector_store %arg6[%c0_76, %c0_77, %c0_78], %249 {strides = array<i32>} : memref<1x32x256xf32, #tpu.memory_space<vmem>>, vector<1x32x256xf32>,
    return
  }
  func.func @transform_0(%arg0: i32) -> (i32, i32, i32) {
    %c0_i32 = arith.constant 0 : i32
    %c0_i32_0 = arith.constant 0 : i32
    %c0_i32_1 = arith.constant 0 : i32
    return %arg0, %c0_i32, %c0_i32_0 : i32, i32, i32
  }
  func.func @transform_1(%arg0: i32) -> (i32, i32) {
    %c0_i32 = arith.constant 0 : i32
    %c0_i32_0 = arith.constant 0 : i32
    %c0_i32_1 = arith.constant 0 : i32
    return %c0_i32, %c0_i32_0 : i32, i32
  }
  func.func @transform_2(%arg0: i32) -> (i32, i32) {
    %c0_i32 = arith.constant 0 : i32
    %c0_i32_0 = arith.constant 0 : i32
    %c0_i32_1 = arith.constant 0 : i32
    return %c0_i32, %c0_i32_0 : i32, i32
  }
  func.func @transform_3(%arg0: i32) -> (i32, i32) {
    %c0_i32 = arith.constant 0 : i32
    %c0_i32_0 = arith.constant 0 : i32
    %c0_i32_1 = arith.constant 0 : i32
    return %c0_i32, %c0_i32_0 : i32, i32
  }
  func.func @transform_4(%arg0: i32) -> i32 {
    %c0_i32 = arith.constant 0 : i32
    %c0_i32_0 = arith.constant 0 : i32
    return %c0_i32 : i32
  }
  func.func @transform_5(%arg0: i32) -> (i32, i32, i32) {
    %c0_i32 = arith.constant 0 : i32
    %c0_i32_0 = arith.constant 0 : i32
    %c0_i32_1 = arith.constant 0 : i32
    return %arg0, %c0_i32, %c0_i32_0 : i32, i32, i32
  }
}

module attributes {stable_mosaic.version = 11 : i64} {
  func.func @_cbam_kernel(%arg0: i32, %arg1: memref<1x32x256xf32, #tpu.memory_space<vmem>>, %arg2: memref<32x2xf32, #tpu.memory_space<vmem>>, %arg3: memref<2x32xf32, #tpu.memory_space<vmem>>, %arg4: memref<49x512xf32, #tpu.memory_space<vmem>>, %arg5: memref<1xf32, #tpu.memory_space<smem>>, %arg6: memref<1x32x256xf32, #tpu.memory_space<vmem>>) attributes {dimension_semantics = [#tpu.dimension_semantics<parallel>], iteration_bounds = array<i64: 2>, scalar_prefetch = 0 : i64, scratch_operands = 0 : i64, tpu.core_type = #tpu.core_type<tc>, window_params = [{transform_indices = @transform_0, window_bounds = array<i64: 1, 32, 256>}, {pipeline_mode = #tpu.pipeline_mode<synchronous>, transform_indices = @transform_1, window_bounds = array<i64: 32, 2>}, {pipeline_mode = #tpu.pipeline_mode<synchronous>, transform_indices = @transform_2, window_bounds = array<i64: 2, 32>}, {pipeline_mode = #tpu.pipeline_mode<synchronous>, transform_indices = @transform_3, window_bounds = array<i64: 49, 512>}, {transform_indices = @transform_4, window_bounds = array<i64: 1>}, {transform_indices = @transform_5, window_bounds = array<i64: 1, 32, 256>}]} {
    %c0 = arith.constant 0 : index
    %c0_0 = arith.constant 0 : index
    %c0_1 = arith.constant 0 : index
    %0 = vector.load %arg1[%c0, %c0_0, %c0_1] : memref<1x32x256xf32, #tpu.memory_space<vmem>>, vector<1x32x256xf32>
    %cst = arith.constant 3.906250e-03 : f32
    %1 = vector.broadcast %cst : f32 to vector<1x1x256xf32>
    "tpu.trace_start"() <{level = 10 : i32, message = "bkh,bch->bkc"}> : () -> ()
    %cst_2 = arith.constant dense<0.000000e+00> : vector<1x1x32xf32>
    %2 = tpu.matmul %1, %0, %cst_2 {dimension_numbers = #tpu.dot_dimension_numbers<[2], [2], [1], [1], [0, 0, 0, 1, 1, 1], [0], [0]>} : vector<1x1x256xf32>, vector<1x32x256xf32>, vector<1x1x32xf32> -> vector<1x1x32xf32>
    "tpu.trace_stop"() : () -> ()
    %3 = vector.shape_cast %2 : vector<1x1x32xf32> to vector<1x32xf32>
    %cst_3 = arith.constant dense<0xFF800000> : vector<1x32xf32>
    %4 = vector.multi_reduction <maximumf>, %0, %cst_3 [2] : vector<1x32x256xf32> to vector<1x32xf32>
    %c0_4 = arith.constant 0 : index
    %c0_5 = arith.constant 0 : index
    %5 = vector.load %arg2[%c0_4, %c0_5] : memref<32x2xf32, #tpu.memory_space<vmem>>, vector<32x2xf32>
    %c0_6 = arith.constant 0 : index
    %c0_7 = arith.constant 0 : index
    %6 = vector.load %arg3[%c0_6, %c0_7] : memref<2x32xf32, #tpu.memory_space<vmem>>, vector<2x32xf32>
    %cst_8 = arith.constant dense<0.000000e+00> : vector<1x2xf32>
    %7 = tpu.matmul %3, %5, %cst_8 {dimension_numbers = #tpu.dot_dimension_numbers<[1], [0], [0], [1], [0, 0, 1, 1], [], []>} : vector<1x32xf32>, vector<32x2xf32>, vector<1x2xf32> -> vector<1x2xf32>
    %cst_9 = arith.constant 0.000000e+00 : f32
    %8 = vector.broadcast %cst_9 : f32 to vector<1x2xf32>
    %9 = arith.maximumf %7, %8 : vector<1x2xf32>
    %cst_10 = arith.constant dense<0.000000e+00> : vector<1x2xf32>
    %10 = tpu.matmul %4, %5, %cst_10 {dimension_numbers = #tpu.dot_dimension_numbers<[1], [0], [0], [1], [0, 0, 1, 1], [], []>} : vector<1x32xf32>, vector<32x2xf32>, vector<1x2xf32> -> vector<1x2xf32>
    %cst_11 = arith.constant 0.000000e+00 : f32
    %11 = vector.broadcast %cst_11 : f32 to vector<1x2xf32>
    %12 = arith.maximumf %10, %11 : vector<1x2xf32>
    %13 = arith.addf %9, %12 : vector<1x2xf32>
    %cst_12 = arith.constant dense<0.000000e+00> : vector<1x32xf32>
    %14 = tpu.matmul %13, %6, %cst_12 {dimension_numbers = #tpu.dot_dimension_numbers<[1], [0], [0], [1], [0, 0, 1, 1], [], []>} : vector<1x2xf32>, vector<2x32xf32>, vector<1x32xf32> -> vector<1x32xf32>
    %15 = arith.negf %14 : vector<1x32xf32>
    %16 = math.exp %15 : vector<1x32xf32>
    %cst_13 = arith.constant 1.000000e+00 : f32
    %17 = vector.broadcast %cst_13 : f32 to vector<1x32xf32>
    %18 = arith.addf %17, %16 : vector<1x32xf32>
    %19 = arith.divf %17, %18 : vector<1x32xf32>
    %20 = vector.shape_cast %19 : vector<1x32xf32> to vector<1x1x32xf32>
    "tpu.trace_start"() <{level = 10 : i32, message = "bkc,bch->bkh"}> : () -> ()
    %cst_14 = arith.constant dense<0.000000e+00> : vector<1x1x256xf32>
    %21 = tpu.matmul %20, %0, %cst_14 {dimension_numbers = #tpu.dot_dimension_numbers<[2], [1], [1], [2], [0, 0, 0, 1, 1, 2], [0], [0]>} : vector<1x1x32xf32>, vector<1x32x256xf32>, vector<1x1x256xf32> -> vector<1x1x256xf32>
    "tpu.trace_stop"() : () -> ()
    %22 = vector.shape_cast %21 : vector<1x1x256xf32> to vector<1x256xf32>
    %cst_15 = arith.constant 3.125000e-02 : f32
    %23 = vector.broadcast %cst_15 : f32 to vector<1x256xf32>
    %24 = arith.mulf %22, %23 : vector<1x256xf32>
    %25 = vector.shape_cast %19 : vector<1x32xf32> to vector<1x32x1xf32>
    %26 = vector.broadcast %25 : vector<1x32x1xf32> to vector<1x32x256xf32>
    %27 = arith.mulf %0, %26 : vector<1x32x256xf32>
    %cst_16 = arith.constant dense<0xFF800000> : vector<1x256xf32>
    %28 = vector.multi_reduction <maximumf>, %27, %cst_16 [1] : vector<1x32x256xf32> to vector<1x256xf32>
    %29 = tpu.concatenate %28, %24 in 1 : vector<1x256xf32>, vector<1x256xf32> -> vector<1x512xf32>
    %cst_17 = arith.constant 0.000000e+00 : f32
    %30 = vector.broadcast %cst_17 : f32 to vector<1x512xf32>
    %cst_18 = arith.constant 0.000000e+00 : f32
    %31 = vector.broadcast %cst_18 : f32 to vector<1x512xf32>
    %cst_19 = arith.constant 0.000000e+00 : f32
    %32 = vector.broadcast %cst_19 : f32 to vector<1x512xf32>
    %cst_20 = arith.constant 0.000000e+00 : f32
    %33 = vector.broadcast %cst_20 : f32 to vector<1x512xf32>
    %c51_i32 = arith.constant 51 : i32
    %34 = tpu.dynamic_rotate %29 by %c51_i32 dim 1 : vector<1x512xf32>, i32 -> vector<1x512xf32>
    %c0_21 = arith.constant 0 : index
    %c0_22 = arith.constant 0 : index
    %35 = vector.load %arg4[%c0_21, %c0_22] : memref<49x512xf32, #tpu.memory_space<vmem>>, vector<1x512xf32>
    %36 = arith.mulf %35, %34 : vector<1x512xf32>
    %37 = arith.addf %30, %36 : vector<1x512xf32>
    %c50_i32 = arith.constant 50 : i32
    %38 = tpu.dynamic_rotate %29 by %c50_i32 dim 1 : vector<1x512xf32>, i32 -> vector<1x512xf32>
    %c1 = arith.constant 1 : index
    %c0_23 = arith.constant 0 : index
    %39 = vector.load %arg4[%c1, %c0_23] : memref<49x512xf32, #tpu.memory_space<vmem>>, vector<1x512xf32>
    %40 = arith.mulf %39, %38 : vector<1x512xf32>
    %41 = arith.addf %31, %40 : vector<1x512xf32>
    %c49_i32 = arith.constant 49 : i32
    %42 = tpu.dynamic_rotate %29 by %c49_i32 dim 1 : vector<1x512xf32>, i32 -> vector<1x512xf32>
    %c2 = arith.constant 2 : index
    %c0_24 = arith.constant 0 : index
    %43 = vector.load %arg4[%c2, %c0_24] : memref<49x512xf32, #tpu.memory_space<vmem>>, vector<1x512xf32>
    %44 = arith.mulf %43, %42 : vector<1x512xf32>
    %45 = arith.addf %32, %44 : vector<1x512xf32>
    %c48_i32 = arith.constant 48 : i32
    %46 = tpu.dynamic_rotate %29 by %c48_i32 dim 1 : vector<1x512xf32>, i32 -> vector<1x512xf32>
    %c3 = arith.constant 3 : index
    %c0_25 = arith.constant 0 : index
    %47 = vector.load %arg4[%c3, %c0_25] : memref<49x512xf32, #tpu.memory_space<vmem>>, vector<1x512xf32>
    %48 = arith.mulf %47, %46 : vector<1x512xf32>
    %49 = arith.addf %33, %48 : vector<1x512xf32>
    %c47_i32 = arith.constant 47 : i32
    %50 = tpu.dynamic_rotate %29 by %c47_i32 dim 1 : vector<1x512xf32>, i32 -> vector<1x512xf32>
    %c4 = arith.constant 4 : index
    %c0_26 = arith.constant 0 : index
    %51 = vector.load %arg4[%c4, %c0_26] : memref<49x512xf32, #tpu.memory_space<vmem>>, vector<1x512xf32>
    %52 = arith.mulf %51, %50 : vector<1x512xf32>
    %53 = arith.addf %37, %52 : vector<1x512xf32>
    %c46_i32 = arith.constant 46 : i32
    %54 = tpu.dynamic_rotate %29 by %c46_i32 dim 1 : vector<1x512xf32>, i32 -> vector<1x512xf32>
    %c5 = arith.constant 5 : index
    %c0_27 = arith.constant 0 : index
    %55 = vector.load %arg4[%c5, %c0_27] : memref<49x512xf32, #tpu.memory_space<vmem>>, vector<1x512xf32>
    %56 = arith.mulf %55, %54 : vector<1x512xf32>
    %57 = arith.addf %41, %56 : vector<1x512xf32>
    %c45_i32 = arith.constant 45 : i32
    %58 = tpu.dynamic_rotate %29 by %c45_i32 dim 1 : vector<1x512xf32>, i32 -> vector<1x512xf32>
    %c6 = arith.constant 6 : index
    %c0_28 = arith.constant 0 : index
    %59 = vector.load %arg4[%c6, %c0_28] : memref<49x512xf32, #tpu.memory_space<vmem>>, vector<1x512xf32>
    %60 = arith.mulf %59, %58 : vector<1x512xf32>
    %61 = arith.addf %45, %60 : vector<1x512xf32>
    %c35_i32 = arith.constant 35 : i32
    %62 = tpu.dynamic_rotate %29 by %c35_i32 dim 1 : vector<1x512xf32>, i32 -> vector<1x512xf32>
    %c7 = arith.constant 7 : index
    %c0_29 = arith.constant 0 : index
    %63 = vector.load %arg4[%c7, %c0_29] : memref<49x512xf32, #tpu.memory_space<vmem>>, vector<1x512xf32>
    %64 = arith.mulf %63, %62 : vector<1x512xf32>
    %65 = arith.addf %49, %64 : vector<1x512xf32>
    %c34_i32 = arith.constant 34 : i32
    %66 = tpu.dynamic_rotate %29 by %c34_i32 dim 1 : vector<1x512xf32>, i32 -> vector<1x512xf32>
    %c8 = arith.constant 8 : index
    %c0_30 = arith.constant 0 : index
    %67 = vector.load %arg4[%c8, %c0_30] : memref<49x512xf32, #tpu.memory_space<vmem>>, vector<1x512xf32>
    %68 = arith.mulf %67, %66 : vector<1x512xf32>
    %69 = arith.addf %53, %68 : vector<1x512xf32>
    %c33_i32 = arith.constant 33 : i32
    %70 = tpu.dynamic_rotate %29 by %c33_i32 dim 1 : vector<1x512xf32>, i32 -> vector<1x512xf32>
    %c9 = arith.constant 9 : index
    %c0_31 = arith.constant 0 : index
    %71 = vector.load %arg4[%c9, %c0_31] : memref<49x512xf32, #tpu.memory_space<vmem>>, vector<1x512xf32>
    %72 = arith.mulf %71, %70 : vector<1x512xf32>
    %73 = arith.addf %57, %72 : vector<1x512xf32>
    %c32_i32 = arith.constant 32 : i32
    %74 = tpu.dynamic_rotate %29 by %c32_i32 dim 1 : vector<1x512xf32>, i32 -> vector<1x512xf32>
    %c10 = arith.constant 10 : index
    %c0_32 = arith.constant 0 : index
    %75 = vector.load %arg4[%c10, %c0_32] : memref<49x512xf32, #tpu.memory_space<vmem>>, vector<1x512xf32>
    %76 = arith.mulf %75, %74 : vector<1x512xf32>
    %77 = arith.addf %61, %76 : vector<1x512xf32>
    %c31_i32 = arith.constant 31 : i32
    %78 = tpu.dynamic_rotate %29 by %c31_i32 dim 1 : vector<1x512xf32>, i32 -> vector<1x512xf32>
    %c11 = arith.constant 11 : index
    %c0_33 = arith.constant 0 : index
    %79 = vector.load %arg4[%c11, %c0_33] : memref<49x512xf32, #tpu.memory_space<vmem>>, vector<1x512xf32>
    %80 = arith.mulf %79, %78 : vector<1x512xf32>
    %81 = arith.addf %65, %80 : vector<1x512xf32>
    %c30_i32 = arith.constant 30 : i32
    %82 = tpu.dynamic_rotate %29 by %c30_i32 dim 1 : vector<1x512xf32>, i32 -> vector<1x512xf32>
    %c12 = arith.constant 12 : index
    %c0_34 = arith.constant 0 : index
    %83 = vector.load %arg4[%c12, %c0_34] : memref<49x512xf32, #tpu.memory_space<vmem>>, vector<1x512xf32>
    %84 = arith.mulf %83, %82 : vector<1x512xf32>
    %85 = arith.addf %69, %84 : vector<1x512xf32>
    %c29_i32 = arith.constant 29 : i32
    %86 = tpu.dynamic_rotate %29 by %c29_i32 dim 1 : vector<1x512xf32>, i32 -> vector<1x512xf32>
    %c13 = arith.constant 13 : index
    %c0_35 = arith.constant 0 : index
    %87 = vector.load %arg4[%c13, %c0_35] : memref<49x512xf32, #tpu.memory_space<vmem>>, vector<1x512xf32>
    %88 = arith.mulf %87, %86 : vector<1x512xf32>
    %89 = arith.addf %73, %88 : vector<1x512xf32>
    %c19_i32 = arith.constant 19 : i32
    %90 = tpu.dynamic_rotate %29 by %c19_i32 dim 1 : vector<1x512xf32>, i32 -> vector<1x512xf32>
    %c14 = arith.constant 14 : index
    %c0_36 = arith.constant 0 : index
    %91 = vector.load %arg4[%c14, %c0_36] : memref<49x512xf32, #tpu.memory_space<vmem>>, vector<1x512xf32>
    %92 = arith.mulf %91, %90 : vector<1x512xf32>
    %93 = arith.addf %77, %92 : vector<1x512xf32>
    %c18_i32 = arith.constant 18 : i32
    %94 = tpu.dynamic_rotate %29 by %c18_i32 dim 1 : vector<1x512xf32>, i32 -> vector<1x512xf32>
    %c15 = arith.constant 15 : index
    %c0_37 = arith.constant 0 : index
    %95 = vector.load %arg4[%c15, %c0_37] : memref<49x512xf32, #tpu.memory_space<vmem>>, vector<1x512xf32>
    %96 = arith.mulf %95, %94 : vector<1x512xf32>
    %97 = arith.addf %81, %96 : vector<1x512xf32>
    %c17_i32 = arith.constant 17 : i32
    %98 = tpu.dynamic_rotate %29 by %c17_i32 dim 1 : vector<1x512xf32>, i32 -> vector<1x512xf32>
    %c16 = arith.constant 16 : index
    %c0_38 = arith.constant 0 : index
    %99 = vector.load %arg4[%c16, %c0_38] : memref<49x512xf32, #tpu.memory_space<vmem>>, vector<1x512xf32>
    %100 = arith.mulf %99, %98 : vector<1x512xf32>
    %101 = arith.addf %85, %100 : vector<1x512xf32>
    %c16_i32 = arith.constant 16 : i32
    %102 = tpu.dynamic_rotate %29 by %c16_i32 dim 1 : vector<1x512xf32>, i32 -> vector<1x512xf32>
    %c17 = arith.constant 17 : index
    %c0_39 = arith.constant 0 : index
    %103 = vector.load %arg4[%c17, %c0_39] : memref<49x512xf32, #tpu.memory_space<vmem>>, vector<1x512xf32>
    %104 = arith.mulf %103, %102 : vector<1x512xf32>
    %105 = arith.addf %89, %104 : vector<1x512xf32>
    %c15_i32 = arith.constant 15 : i32
    %106 = tpu.dynamic_rotate %29 by %c15_i32 dim 1 : vector<1x512xf32>, i32 -> vector<1x512xf32>
    %c18 = arith.constant 18 : index
    %c0_40 = arith.constant 0 : index
    %107 = vector.load %arg4[%c18, %c0_40] : memref<49x512xf32, #tpu.memory_space<vmem>>, vector<1x512xf32>
    %108 = arith.mulf %107, %106 : vector<1x512xf32>
    %109 = arith.addf %93, %108 : vector<1x512xf32>
    %c14_i32 = arith.constant 14 : i32
    %110 = tpu.dynamic_rotate %29 by %c14_i32 dim 1 : vector<1x512xf32>, i32 -> vector<1x512xf32>
    %c19 = arith.constant 19 : index
    %c0_41 = arith.constant 0 : index
    %111 = vector.load %arg4[%c19, %c0_41] : memref<49x512xf32, #tpu.memory_space<vmem>>, vector<1x512xf32>
    %112 = arith.mulf %111, %110 : vector<1x512xf32>
    %113 = arith.addf %97, %112 : vector<1x512xf32>
    %c13_i32 = arith.constant 13 : i32
    %114 = tpu.dynamic_rotate %29 by %c13_i32 dim 1 : vector<1x512xf32>, i32 -> vector<1x512xf32>
    %c20 = arith.constant 20 : index
    %c0_42 = arith.constant 0 : index
    %115 = vector.load %arg4[%c20, %c0_42] : memref<49x512xf32, #tpu.memory_space<vmem>>, vector<1x512xf32>
    %116 = arith.mulf %115, %114 : vector<1x512xf32>
    %117 = arith.addf %101, %116 : vector<1x512xf32>
    %c3_i32 = arith.constant 3 : i32
    %118 = tpu.dynamic_rotate %29 by %c3_i32 dim 1 : vector<1x512xf32>, i32 -> vector<1x512xf32>
    %c21 = arith.constant 21 : index
    %c0_43 = arith.constant 0 : index
    %119 = vector.load %arg4[%c21, %c0_43] : memref<49x512xf32, #tpu.memory_space<vmem>>, vector<1x512xf32>
    %120 = arith.mulf %119, %118 : vector<1x512xf32>
    %121 = arith.addf %105, %120 : vector<1x512xf32>
    %c2_i32 = arith.constant 2 : i32
    %122 = tpu.dynamic_rotate %29 by %c2_i32 dim 1 : vector<1x512xf32>, i32 -> vector<1x512xf32>
    %c22 = arith.constant 22 : index
    %c0_44 = arith.constant 0 : index
    %123 = vector.load %arg4[%c22, %c0_44] : memref<49x512xf32, #tpu.memory_space<vmem>>, vector<1x512xf32>
    %124 = arith.mulf %123, %122 : vector<1x512xf32>
    %125 = arith.addf %109, %124 : vector<1x512xf32>
    %c1_i32 = arith.constant 1 : i32
    %126 = tpu.dynamic_rotate %29 by %c1_i32 dim 1 : vector<1x512xf32>, i32 -> vector<1x512xf32>
    %c23 = arith.constant 23 : index
    %c0_45 = arith.constant 0 : index
    %127 = vector.load %arg4[%c23, %c0_45] : memref<49x512xf32, #tpu.memory_space<vmem>>, vector<1x512xf32>
    %128 = arith.mulf %127, %126 : vector<1x512xf32>
    %129 = arith.addf %113, %128 : vector<1x512xf32>
    %c24 = arith.constant 24 : index
    %c0_46 = arith.constant 0 : index
    %130 = vector.load %arg4[%c24, %c0_46] : memref<49x512xf32, #tpu.memory_space<vmem>>, vector<1x512xf32>
    %131 = arith.mulf %130, %29 : vector<1x512xf32>
    %132 = arith.addf %117, %131 : vector<1x512xf32>
    %c511_i32 = arith.constant 511 : i32
    %133 = tpu.dynamic_rotate %29 by %c511_i32 dim 1 : vector<1x512xf32>, i32 -> vector<1x512xf32>
    %c25 = arith.constant 25 : index
    %c0_47 = arith.constant 0 : index
    %134 = vector.load %arg4[%c25, %c0_47] : memref<49x512xf32, #tpu.memory_space<vmem>>, vector<1x512xf32>
    %135 = arith.mulf %134, %133 : vector<1x512xf32>
    %136 = arith.addf %121, %135 : vector<1x512xf32>
    %c510_i32 = arith.constant 510 : i32
    %137 = tpu.dynamic_rotate %29 by %c510_i32 dim 1 : vector<1x512xf32>, i32 -> vector<1x512xf32>
    %c26 = arith.constant 26 : index
    %c0_48 = arith.constant 0 : index
    %138 = vector.load %arg4[%c26, %c0_48] : memref<49x512xf32, #tpu.memory_space<vmem>>, vector<1x512xf32>
    %139 = arith.mulf %138, %137 : vector<1x512xf32>
    %140 = arith.addf %125, %139 : vector<1x512xf32>
    %c509_i32 = arith.constant 509 : i32
    %141 = tpu.dynamic_rotate %29 by %c509_i32 dim 1 : vector<1x512xf32>, i32 -> vector<1x512xf32>
    %c27 = arith.constant 27 : index
    %c0_49 = arith.constant 0 : index
    %142 = vector.load %arg4[%c27, %c0_49] : memref<49x512xf32, #tpu.memory_space<vmem>>, vector<1x512xf32>
    %143 = arith.mulf %142, %141 : vector<1x512xf32>
    %144 = arith.addf %129, %143 : vector<1x512xf32>
    %c499_i32 = arith.constant 499 : i32
    %145 = tpu.dynamic_rotate %29 by %c499_i32 dim 1 : vector<1x512xf32>, i32 -> vector<1x512xf32>
    %c28 = arith.constant 28 : index
    %c0_50 = arith.constant 0 : index
    %146 = vector.load %arg4[%c28, %c0_50] : memref<49x512xf32, #tpu.memory_space<vmem>>, vector<1x512xf32>
    %147 = arith.mulf %146, %145 : vector<1x512xf32>
    %148 = arith.addf %132, %147 : vector<1x512xf32>
    %c498_i32 = arith.constant 498 : i32
    %149 = tpu.dynamic_rotate %29 by %c498_i32 dim 1 : vector<1x512xf32>, i32 -> vector<1x512xf32>
    %c29 = arith.constant 29 : index
    %c0_51 = arith.constant 0 : index
    %150 = vector.load %arg4[%c29, %c0_51] : memref<49x512xf32, #tpu.memory_space<vmem>>, vector<1x512xf32>
    %151 = arith.mulf %150, %149 : vector<1x512xf32>
    %152 = arith.addf %136, %151 : vector<1x512xf32>
    %c497_i32 = arith.constant 497 : i32
    %153 = tpu.dynamic_rotate %29 by %c497_i32 dim 1 : vector<1x512xf32>, i32 -> vector<1x512xf32>
    %c30 = arith.constant 30 : index
    %c0_52 = arith.constant 0 : index
    %154 = vector.load %arg4[%c30, %c0_52] : memref<49x512xf32, #tpu.memory_space<vmem>>, vector<1x512xf32>
    %155 = arith.mulf %154, %153 : vector<1x512xf32>
    %156 = arith.addf %140, %155 : vector<1x512xf32>
    %c496_i32 = arith.constant 496 : i32
    %157 = tpu.dynamic_rotate %29 by %c496_i32 dim 1 : vector<1x512xf32>, i32 -> vector<1x512xf32>
    %c31 = arith.constant 31 : index
    %c0_53 = arith.constant 0 : index
    %158 = vector.load %arg4[%c31, %c0_53] : memref<49x512xf32, #tpu.memory_space<vmem>>, vector<1x512xf32>
    %159 = arith.mulf %158, %157 : vector<1x512xf32>
    %160 = arith.addf %144, %159 : vector<1x512xf32>
    %c495_i32 = arith.constant 495 : i32
    %161 = tpu.dynamic_rotate %29 by %c495_i32 dim 1 : vector<1x512xf32>, i32 -> vector<1x512xf32>
    %c32 = arith.constant 32 : index
    %c0_54 = arith.constant 0 : index
    %162 = vector.load %arg4[%c32, %c0_54] : memref<49x512xf32, #tpu.memory_space<vmem>>, vector<1x512xf32>
    %163 = arith.mulf %162, %161 : vector<1x512xf32>
    %164 = arith.addf %148, %163 : vector<1x512xf32>
    %c494_i32 = arith.constant 494 : i32
    %165 = tpu.dynamic_rotate %29 by %c494_i32 dim 1 : vector<1x512xf32>, i32 -> vector<1x512xf32>
    %c33 = arith.constant 33 : index
    %c0_55 = arith.constant 0 : index
    %166 = vector.load %arg4[%c33, %c0_55] : memref<49x512xf32, #tpu.memory_space<vmem>>, vector<1x512xf32>
    %167 = arith.mulf %166, %165 : vector<1x512xf32>
    %168 = arith.addf %152, %167 : vector<1x512xf32>
    %c493_i32 = arith.constant 493 : i32
    %169 = tpu.dynamic_rotate %29 by %c493_i32 dim 1 : vector<1x512xf32>, i32 -> vector<1x512xf32>
    %c34 = arith.constant 34 : index
    %c0_56 = arith.constant 0 : index
    %170 = vector.load %arg4[%c34, %c0_56] : memref<49x512xf32, #tpu.memory_space<vmem>>, vector<1x512xf32>
    %171 = arith.mulf %170, %169 : vector<1x512xf32>
    %172 = arith.addf %156, %171 : vector<1x512xf32>
    %c483_i32 = arith.constant 483 : i32
    %173 = tpu.dynamic_rotate %29 by %c483_i32 dim 1 : vector<1x512xf32>, i32 -> vector<1x512xf32>
    %c35 = arith.constant 35 : index
    %c0_57 = arith.constant 0 : index
    %174 = vector.load %arg4[%c35, %c0_57] : memref<49x512xf32, #tpu.memory_space<vmem>>, vector<1x512xf32>
    %175 = arith.mulf %174, %173 : vector<1x512xf32>
    %176 = arith.addf %160, %175 : vector<1x512xf32>
    %c482_i32 = arith.constant 482 : i32
    %177 = tpu.dynamic_rotate %29 by %c482_i32 dim 1 : vector<1x512xf32>, i32 -> vector<1x512xf32>
    %c36 = arith.constant 36 : index
    %c0_58 = arith.constant 0 : index
    %178 = vector.load %arg4[%c36, %c0_58] : memref<49x512xf32, #tpu.memory_space<vmem>>, vector<1x512xf32>
    %179 = arith.mulf %178, %177 : vector<1x512xf32>
    %180 = arith.addf %164, %179 : vector<1x512xf32>
    %c481_i32 = arith.constant 481 : i32
    %181 = tpu.dynamic_rotate %29 by %c481_i32 dim 1 : vector<1x512xf32>, i32 -> vector<1x512xf32>
    %c37 = arith.constant 37 : index
    %c0_59 = arith.constant 0 : index
    %182 = vector.load %arg4[%c37, %c0_59] : memref<49x512xf32, #tpu.memory_space<vmem>>, vector<1x512xf32>
    %183 = arith.mulf %182, %181 : vector<1x512xf32>
    %184 = arith.addf %168, %183 : vector<1x512xf32>
    %c480_i32 = arith.constant 480 : i32
    %185 = tpu.dynamic_rotate %29 by %c480_i32 dim 1 : vector<1x512xf32>, i32 -> vector<1x512xf32>
    %c38 = arith.constant 38 : index
    %c0_60 = arith.constant 0 : index
    %186 = vector.load %arg4[%c38, %c0_60] : memref<49x512xf32, #tpu.memory_space<vmem>>, vector<1x512xf32>
    %187 = arith.mulf %186, %185 : vector<1x512xf32>
    %188 = arith.addf %172, %187 : vector<1x512xf32>
    %c479_i32 = arith.constant 479 : i32
    %189 = tpu.dynamic_rotate %29 by %c479_i32 dim 1 : vector<1x512xf32>, i32 -> vector<1x512xf32>
    %c39 = arith.constant 39 : index
    %c0_61 = arith.constant 0 : index
    %190 = vector.load %arg4[%c39, %c0_61] : memref<49x512xf32, #tpu.memory_space<vmem>>, vector<1x512xf32>
    %191 = arith.mulf %190, %189 : vector<1x512xf32>
    %192 = arith.addf %176, %191 : vector<1x512xf32>
    %c478_i32 = arith.constant 478 : i32
    %193 = tpu.dynamic_rotate %29 by %c478_i32 dim 1 : vector<1x512xf32>, i32 -> vector<1x512xf32>
    %c40 = arith.constant 40 : index
    %c0_62 = arith.constant 0 : index
    %194 = vector.load %arg4[%c40, %c0_62] : memref<49x512xf32, #tpu.memory_space<vmem>>, vector<1x512xf32>
    %195 = arith.mulf %194, %193 : vector<1x512xf32>
    %196 = arith.addf %180, %195 : vector<1x512xf32>
    %c477_i32 = arith.constant 477 : i32
    %197 = tpu.dynamic_rotate %29 by %c477_i32 dim 1 : vector<1x512xf32>, i32 -> vector<1x512xf32>
    %c41 = arith.constant 41 : index
    %c0_63 = arith.constant 0 : index
    %198 = vector.load %arg4[%c41, %c0_63] : memref<49x512xf32, #tpu.memory_space<vmem>>, vector<1x512xf32>
    %199 = arith.mulf %198, %197 : vector<1x512xf32>
    %200 = arith.addf %184, %199 : vector<1x512xf32>
    %c467_i32 = arith.constant 467 : i32
    %201 = tpu.dynamic_rotate %29 by %c467_i32 dim 1 : vector<1x512xf32>, i32 -> vector<1x512xf32>
    %c42 = arith.constant 42 : index
    %c0_64 = arith.constant 0 : index
    %202 = vector.load %arg4[%c42, %c0_64] : memref<49x512xf32, #tpu.memory_space<vmem>>, vector<1x512xf32>
    %203 = arith.mulf %202, %201 : vector<1x512xf32>
    %204 = arith.addf %188, %203 : vector<1x512xf32>
    %c466_i32 = arith.constant 466 : i32
    %205 = tpu.dynamic_rotate %29 by %c466_i32 dim 1 : vector<1x512xf32>, i32 -> vector<1x512xf32>
    %c43 = arith.constant 43 : index
    %c0_65 = arith.constant 0 : index
    %206 = vector.load %arg4[%c43, %c0_65] : memref<49x512xf32, #tpu.memory_space<vmem>>, vector<1x512xf32>
    %207 = arith.mulf %206, %205 : vector<1x512xf32>
    %208 = arith.addf %192, %207 : vector<1x512xf32>
    %c465_i32 = arith.constant 465 : i32
    %209 = tpu.dynamic_rotate %29 by %c465_i32 dim 1 : vector<1x512xf32>, i32 -> vector<1x512xf32>
    %c44 = arith.constant 44 : index
    %c0_66 = arith.constant 0 : index
    %210 = vector.load %arg4[%c44, %c0_66] : memref<49x512xf32, #tpu.memory_space<vmem>>, vector<1x512xf32>
    %211 = arith.mulf %210, %209 : vector<1x512xf32>
    %212 = arith.addf %196, %211 : vector<1x512xf32>
    %c464_i32 = arith.constant 464 : i32
    %213 = tpu.dynamic_rotate %29 by %c464_i32 dim 1 : vector<1x512xf32>, i32 -> vector<1x512xf32>
    %c45 = arith.constant 45 : index
    %c0_67 = arith.constant 0 : index
    %214 = vector.load %arg4[%c45, %c0_67] : memref<49x512xf32, #tpu.memory_space<vmem>>, vector<1x512xf32>
    %215 = arith.mulf %214, %213 : vector<1x512xf32>
    %216 = arith.addf %200, %215 : vector<1x512xf32>
    %c463_i32 = arith.constant 463 : i32
    %217 = tpu.dynamic_rotate %29 by %c463_i32 dim 1 : vector<1x512xf32>, i32 -> vector<1x512xf32>
    %c46 = arith.constant 46 : index
    %c0_68 = arith.constant 0 : index
    %218 = vector.load %arg4[%c46, %c0_68] : memref<49x512xf32, #tpu.memory_space<vmem>>, vector<1x512xf32>
    %219 = arith.mulf %218, %217 : vector<1x512xf32>
    %220 = arith.addf %204, %219 : vector<1x512xf32>
    %c462_i32 = arith.constant 462 : i32
    %221 = tpu.dynamic_rotate %29 by %c462_i32 dim 1 : vector<1x512xf32>, i32 -> vector<1x512xf32>
    %c47 = arith.constant 47 : index
    %c0_69 = arith.constant 0 : index
    %222 = vector.load %arg4[%c47, %c0_69] : memref<49x512xf32, #tpu.memory_space<vmem>>, vector<1x512xf32>
    %223 = arith.mulf %222, %221 : vector<1x512xf32>
    %224 = arith.addf %208, %223 : vector<1x512xf32>
    %c461_i32 = arith.constant 461 : i32
    %225 = tpu.dynamic_rotate %29 by %c461_i32 dim 1 : vector<1x512xf32>, i32 -> vector<1x512xf32>
    %c48 = arith.constant 48 : index
    %c0_70 = arith.constant 0 : index
    %226 = vector.load %arg4[%c48, %c0_70] : memref<49x512xf32, #tpu.memory_space<vmem>>, vector<1x512xf32>
    %227 = arith.mulf %226, %225 : vector<1x512xf32>
    %228 = arith.addf %212, %227 : vector<1x512xf32>
    %229 = arith.addf %228, %216 : vector<1x512xf32>
    %230 = arith.addf %220, %224 : vector<1x512xf32>
    %231 = arith.addf %229, %230 : vector<1x512xf32>
    %232 = vector.extract_strided_slice %231 {offsets = [0, 0], sizes = [1, 256], strides = [1, 1]} : vector<1x512xf32> to vector<1x256xf32>
    %233 = vector.extract_strided_slice %231 {offsets = [0, 256], sizes = [1, 256], strides = [1, 1]} : vector<1x512xf32> to vector<1x256xf32>
    %234 = arith.addf %232, %233 : vector<1x256xf32>
    %c0_71 = arith.constant 0 : index
    %235 = memref.load %arg5[%c0_71] : memref<1xf32, #tpu.memory_space<smem>>
    %236 = vector.broadcast %235 : f32 to vector<1x256xf32>
    %237 = arith.addf %234, %236 : vector<1x256xf32>
    %238 = arith.negf %237 : vector<1x256xf32>
    %239 = math.exp %238 : vector<1x256xf32>
    %cst_72 = arith.constant 1.000000e+00 : f32
    %240 = vector.broadcast %cst_72 : f32 to vector<1x256xf32>
    %241 = arith.addf %240, %239 : vector<1x256xf32>
    %242 = arith.divf %240, %241 : vector<1x256xf32>
    %c0_73 = arith.constant 0 : index
    %c0_74 = arith.constant 0 : index
    %c0_75 = arith.constant 0 : index
    %243 = vector.load %arg1[%c0_73, %c0_74, %c0_75] : memref<1x32x256xf32, #tpu.memory_space<vmem>>, vector<1x32x256xf32>
    %244 = vector.shape_cast %19 : vector<1x32xf32> to vector<1x32x1xf32>
    %245 = vector.broadcast %244 : vector<1x32x1xf32> to vector<1x32x256xf32>
    %246 = arith.mulf %243, %245 : vector<1x32x256xf32>
    %247 = vector.shape_cast %242 : vector<1x256xf32> to vector<1x1x256xf32>
    %248 = vector.broadcast %247 : vector<1x1x256xf32> to vector<1x32x256xf32>
    %249 = arith.mulf %246, %248 : vector<1x32x256xf32>
    %c0_76 = arith.constant 0 : index
    %c0_77 = arith.constant 0 : index
    %c0_78 = arith.constant 0 : index
    %250 = vector.load %arg6[%c0_76, %c0_77, %c0_78] : memref<1x32x256xf32, #tpu.memory_space<vmem>>, vector<1x32x256xf32>
    tpu.vector_store %arg6[%c0_76, %c0_77, %c0_78], %249 {strides = array<i32>} : memref<1x32x256xf32, #tpu.memory_space<vmem>>, vector<1x32x256xf32>,
    return
  }
  func.func @transform_0(%arg0: i32) -> (i32, i32, i32) {
    %c0_i32 = arith.constant 0 : i32
    %c0_i32_0 = arith.constant 0 : i32
    %c0_i32_1 = arith.constant 0 : i32
    return %arg0, %c0_i32, %c0_i32_0 : i32, i32, i32
  }
  func.func @transform_1(%arg0: i32) -> (i32, i32) {
    %c0_i32 = arith.constant 0 : i32
    %c0_i32_0 = arith.constant 0 : i32
    %c0_i32_1 = arith.constant 0 : i32
    return %c0_i32, %c0_i32_0 : i32, i32
  }
  func.func @transform_2(%arg0: i32) -> (i32, i32) {
    %c0_i32 = arith.constant 0 : i32
    %c0_i32_0 = arith.constant 0 : i32
    %c0_i32_1 = arith.constant 0 : i32
    return %c0_i32, %c0_i32_0 : i32, i32
  }
  func.func @transform_3(%arg0: i32) -> (i32, i32) {
    %c0_i32 = arith.constant 0 : i32
    %c0_i32_0 = arith.constant 0 : i32
    %c0_i32_1 = arith.constant 0 : i32
    return %c0_i32, %c0_i32_0 : i32, i32
  }
  func.func @transform_4(%arg0: i32) -> i32 {
    %c0_i32 = arith.constant 0 : i32
    %c0_i32_0 = arith.constant 0 : i32
    return %c0_i32 : i32
  }
  func.func @transform_5(%arg0: i32) -> (i32, i32, i32) {
    %c0_i32 = arith.constant 0 : i32
    %c0_i32_0 = arith.constant 0 : i32
    %c0_i32_1 = arith.constant 0 : i32
    return %arg0, %c0_i32, %c0_i32_0 : i32, i32, i32
  }
}

</mosaic_0001>

<llo_original>
// kernel: tpu_custom_call.1
$region0: #{tpu_custom_call.1}
  #allocation0 [shape = 'u32[]', space=smem, size = 0x4, offset = 0x4, fixed_abs, tag = 'smem constant byte address 0x4 - core index']
  #allocation1 [shape = 'u32[144,128]{1,0:T(1,128)}', space=vmem, size = 0x12000, scoped, tag = 'internal scratch']
  #allocation2 [shape = 'f32[1]{0:T(128)S(6)}', space=smem, size = 0x200, scoped, tag = 'scoped memory for tpu_custom_call.1']
  %s0 = inlined_call_operand.hbm [shape: f32[2,32,256], index: 0, kind: input, shape index: {}]
  %s1 = inlined_call_operand.vmem [shape: f32[32,2], index: 1, kind: input, shape index: {}]
  %s2 = inlined_call_operand.vmem [shape: f32[2,32], index: 2, kind: input, shape index: {}]
  %s3 = inlined_call_operand.hbm [shape: f32[49,512], index: 3, kind: input, shape index: {}]
  %s4 = inlined_call_operand.<no memory space> [shape: f32[1], index: 4, kind: input, shape index: {}]
  %s5 = inlined_call_operand.hbm [shape: f32[2,32,256], index: 5, kind: output, shape index: {}]
  %s6 = sld [smem:[#allocation0]]
  $region61: #{tpu_custom_call.1} parent=0
    _
  %s8 = ssub.s32 1, %s6
  %s9 = scalar_select 0, %s8, %s6
  %10 = sst [smem:[#allocation2]] %s4
  $region1: #{tpu_custom_call.1} parent=0
    #allocation3 [shape = 'u8[65536]{0}', space=vmem, size = 0x10000, scoped, tag = 'input window, operand 0']
    #allocation4 [shape = 's32[2]{0}', space=sflag, size = 0x8, scoped, tag = 'scoped memory for tpu_custom_call.1']
    #allocation5 [shape = 's32[2]{0}', space=sflag, size = 0x8, scoped, tag = 'scoped memory for tpu_custom_call.1']
    #allocation6 [shape = 'u8[114688]{0}', space=vmem, size = 0x1c000, scoped, tag = 'input window, operand 3, single buffered']
    #allocation7 [shape = 's32[1]{0}', space=sflag, size = 0x4, scoped, tag = 'scoped memory for tpu_custom_call.1']
    #allocation8 [shape = 'u8[65536]{0}', space=vmem, size = 0x10000, scoped, tag = 'output window, operand 0']
    %11 = vsyncpa [#allocation4], 0
    %s12 = scalar_lea.sflag [#allocation4], 1
    %13 = vsyncpa %s12, 0
    %14 = vsyncpa [#allocation7], 0
    %15 = vsyncpa [#allocation5], 0
    %s16 = scalar_lea.sflag [#allocation5], 1
    %17 = vsyncpa %s16, 0
    loop: start=0, step=1, limit=4
    $region2: #{tpu_custom_call.1} parent=1 // loop_pre_header
      _
    $region3: #{tpu_custom_call.1} parent=1 // loop_header
      %s19 = sphi 0, %s23
      %p20 = scmp.ge.s32.totalorder %s19, 4
      %s29 = sphi 0, %s31
      %s32 = sphi 0, %s29
      %s33 = sphi 0, %s32
      %s49 = sphi 0, %s33
      %s53 = sphi 0, %s53
      %s55 = sphi 0, %s53
      %s56 = sphi 0, %s55
      %s70 = sphi 0, %s56
      %s74 = sphi 0, %s74
      %s76 = sphi 0, %s74
      %s77 = sphi 0, %s76
      %s91 = sphi 0, %s77
      %s95 = sphi 0, %s95
      %s97 = sphi 0, %s95
      %s98 = sphi 0, %s97
      %s112 = sphi 0, %s98
      %s116 = sphi 0, %s116
      %s118 = sphi 0, %s116
      %s119 = sphi 0, %s118
      %s133 = sphi 0, %s119
      %s139 = sphi 0, %s141
      %s142 = sphi 0, %s139
      %s143 = sphi 0, %s142
      %s159 = sphi 0, %s143
    $region4: #{tpu_custom_call.1} parent=1 // loop_header_branch
      %22 = sbr.rel (%p20) target = $region8
    $region5: #{tpu_custom_call.1} parent=1 // loop_body
      %s24 = ssub.s32 %s19, 1
      %s25 = ssub.s32 %s19, 2
      %s26 = sadd.s32 %s19, 1
      %s27 = ssub.s32 %s19, %s26
      %p28 = scmp.eq.s32.totalorder %s27, 0
      %s30 = sadd.s32 %s29, 1
      %s31 = scalar_select %p28, %s29, %s30
      %p34 = pneg %p28
      %p35 = scmp.eq.s32.totalorder %s19, 1
      %p36 = por %p34, %p35
      %p37 = scmp.ne.s32.totalorder %s29, %s32
      %p38 = scmp.eq.s32.totalorder %s19, 0
      %p39 = por %p37, %p38
      %p40 = scmp.ne.s32.totalorder %s29, %s32
      %p41 = scmp.eq.s32.totalorder %s24, 1
      %p42 = por %p40, %p41
      %p43 = scmp.ne.s32.totalorder %s32, %s33
      %p44 = scmp.eq.s32.totalorder %s24, 0
      %p45 = por %p43, %p44
      %p46 = scmp.ne.s32.totalorder %s32, %s33
      %p47 = scmp.eq.s32.totalorder %s25, 1
      %p48 = por %p46, %p47
      %p50 = scmp.ne.s32.totalorder %s33, %s49
      %p51 = scmp.eq.s32.totalorder %s25, 0
      %p52 = por %p50, %p51
      %s54 = sadd.s32 %s53, 1
      %p57 = scmp.eq.s32.totalorder %s19, 1
      %p58 = scmp.ne.s32.totalorder %s53, %s55
      %p59 = scmp.eq.s32.totalorder %s19, 0
      %p60 = por %p58, %p59
      %p61 = scmp.ne.s32.totalorder %s53, %s55
      %p62 = scmp.eq.s32.totalorder %s24, 1
      %p63 = por %p61, %p62
      %p64 = scmp.ne.s32.totalorder %s55, %s56
      %p65 = scmp.eq.s32.totalorder %s24, 0
      %p66 = por %p64, %p65
      %p67 = scmp.ne.s32.totalorder %s55, %s56
      %p68 = scmp.eq.s32.totalorder %s25, 1
      %p69 = por %p67, %p68
      %p71 = scmp.ne.s32.totalorder %s56, %s70
      %p72 = scmp.eq.s32.totalorder %s25, 0
      %p73 = por %p71, %p72
      %s75 = sadd.s32 %s74, 1
      %p78 = scmp.eq.s32.totalorder %s19, 1
      %p79 = scmp.ne.s32.totalorder %s74, %s76
      %p80 = scmp.eq.s32.totalorder %s19, 0
      %p81 = por %p79, %p80
      %p82 = scmp.ne.s32.totalorder %s74, %s76
      %p83 = scmp.eq.s32.totalorder %s24, 1
      %p84 = por %p82, %p83
      %p85 = scmp.ne.s32.totalorder %s76, %s77
      %p86 = scmp.eq.s32.totalorder %s24, 0
      %p87 = por %p85, %p86
      %p88 = scmp.ne.s32.totalorder %s76, %s77
      %p89 = scmp.eq.s32.totalorder %s25, 1
      %p90 = por %p88, %p89
      %p92 = scmp.ne.s32.totalorder %s77, %s91
      %p93 = scmp.eq.s32.totalorder %s25, 0
      %p94 = por %p92, %p93
      %s96 = sadd.s32 %s95, 1
      %p99 = scmp.eq.s32.totalorder %s19, 1
      %p100 = scmp.ne.s32.totalorder %s95, %s97
      %p101 = scmp.eq.s32.totalorder %s19, 0
      %p102 = por %p100, %p101
      %p103 = scmp.ne.s32.totalorder %s95, %s97
      %p104 = scmp.eq.s32.totalorder %s24, 1
      %p105 = por %p103, %p104
      %p106 = scmp.ne.s32.totalorder %s97, %s98
      %p107 = scmp.eq.s32.totalorder %s24, 0
      %p108 = por %p106, %p107
      %p109 = scmp.ne.s32.totalorder %s97, %s98
      %p110 = scmp.eq.s32.totalorder %s25, 1
      %p111 = por %p109, %p110
      %p113 = scmp.ne.s32.totalorder %s98, %s112
      %p114 = scmp.eq.s32.totalorder %s25, 0
      %p115 = por %p113, %p114
      %s117 = sadd.s32 %s116, 1
      %p120 = scmp.eq.s32.totalorder %s19, 1
      %p121 = scmp.ne.s32.totalorder %s116, %s118
      %p122 = scmp.eq.s32.totalorder %s19, 0
      %p123 = por %p121, %p122
      %p124 = scmp.ne.s32.totalorder %s116, %s118
      %p125 = scmp.eq.s32.totalorder %s24, 1
      %p126 = por %p124, %p125
      %p127 = scmp.ne.s32.totalorder %s118, %s119
      %p128 = scmp.eq.s32.totalorder %s24, 0
      %p129 = por %p127, %p128
      %p130 = scmp.ne.s32.totalorder %s118, %s119
      %p131 = scmp.eq.s32.totalorder %s25, 1
      %p132 = por %p130, %p131
      %p134 = scmp.ne.s32.totalorder %s119, %s133
      %p135 = scmp.eq.s32.totalorder %s25, 0
      %p136 = por %p134, %p135
      %s137 = ssub.s32 %s19, %s26
      %p138 = scmp.eq.s32.totalorder %s137, 0
      %s140 = sadd.s32 %s139, 1
      %s141 = scalar_select %p138, %s139, %s140
      %p144 = pneg %p138
      %p145 = scmp.eq.s32.totalorder %s19, 1
      %p146 = por %p144, %p145
      %p147 = scmp.ne.s32.totalorder %s139, %s142
      %p148 = scmp.eq.s32.totalorder %s19, 0
      %p149 = por %p147, %p148
      %p150 = scmp.ne.s32.totalorder %s139, %s142
      %p151 = scmp.eq.s32.totalorder %s24, 1
      %p152 = por %p150, %p151
      %p153 = scmp.ne.s32.totalorder %s142, %s143
      %p154 = scmp.eq.s32.totalorder %s24, 0
      %p155 = por %p153, %p154
      %p156 = scmp.ne.s32.totalorder %s142, %s143
      %p157 = scmp.eq.s32.totalorder %s25, 1
      %p158 = por %p156, %p157
      %p160 = scmp.ne.s32.totalorder %s143, %s159
      %p161 = scmp.eq.s32.totalorder %s25, 0
      %p162 = por %p160, %p161
      %p163 = scmp.le.s32.totalorder 1, %s19
      %p164 = scmp.lt.s32.totalorder %s19, 3
      %p165 = pnand %p163, %p164
      %p166 = pneg %p165
      // Predicated region
      $region9: #{tpu_custom_call.1} parent=5 // pred_check
        _
      $region10: #{tpu_custom_call.1} parent=5 // pred_check_branch
        %168 = sbr.rel (%p165) target = $region12
      $region11: #{tpu_custom_call.1} parent=5 // pred_region
        %s169 = ssub.s32 %s19, 1
        // Predicated region
        $region13: #{tpu_custom_call.1} parent=11 // pred_check
          %p170 = pneg %p66
        $region14: #{tpu_custom_call.1} parent=11 // pred_check_branch
          %172 = sbr.rel (%p170) target = $region16
        $region15: #{tpu_custom_call.1} parent=11 // pred_region
          _
        $region16: #{tpu_custom_call.1} parent=11 // pred_fallthru
          _
        // Predicated region
        $region17: #{tpu_custom_call.1} parent=11 // pred_check
          %p173 = pneg %p87
        $region18: #{tpu_custom_call.1} parent=11 // pred_check_branch
          %175 = sbr.rel (%p173) target = $region20
        $region19: #{tpu_custom_call.1} parent=11 // pred_region
          _
        $region20: #{tpu_custom_call.1} parent=11 // pred_fallthru
          _
        // Predicated region
        $region21: #{tpu_custom_call.1} parent=11 // pred_check
          %p176 = pneg %p108
        $region22: #{tpu_custom_call.1} parent=11 // pred_check_branch
          %178 = sbr.rel (%p176) target = $region24
        $region23: #{tpu_custom_call.1} parent=11 // pred_region
          %s180 = ssub.s32 3584, 3584
          %181 = vsyncadd [#allocation7], %s180
          %s182 = sshll.u32 [#allocation6], 4
          %s183 = int_to_ptr.vmem [resolvable:$true] %s182
          %188 = dma.hbm_to_vmem [thread:$0]  %s3, 3584, %s183, [#allocation7], 512, 512, 32
        $region24: #{tpu_custom_call.1} parent=11 // pred_fallthru
          _
        // Predicated region
        $region25: #{tpu_custom_call.1} parent=11 // pred_check
          %p189 = pneg %p129
        $region26: #{tpu_custom_call.1} parent=11 // pred_check_branch
          %191 = sbr.rel (%p189) target = $region28
        $region27: #{tpu_custom_call.1} parent=11 // pred_region
          _
        $region28: #{tpu_custom_call.1} parent=11 // pred_fallthru
          _
      $region12: #{tpu_custom_call.1} parent=5 // pred_fallthru
        _
      %p192 = scmp.lt.s32.totalorder %s19, 2
      // Predicated region
      $region29: #{tpu_custom_call.1} parent=5 // pred_check
        %p193 = pneg %p192
      $region30: #{tpu_custom_call.1} parent=5 // pred_check_branch
        %195 = sbr.rel (%p193) target = $region32
      $region31: #{tpu_custom_call.1} parent=5 // pred_region
        // Predicated region
        $region33: #{tpu_custom_call.1} parent=31 // pred_check
          %p196 = pneg %p39
        $region34: #{tpu_custom_call.1} parent=31 // pred_check_branch
          %198 = sbr.rel (%p196) target = $region36
        $region35: #{tpu_custom_call.1} parent=31 // pred_region
          %s199 = sand.u32 %s29, 1
          %s200 = scalar_lea.sflag [#allocation4], %s199
          %s201 = sand.u32 %s29, 1
          %s202 = smul.addr %s201, 64
          %s203 = scalar_lea.vmem [#allocation3], %s202
          %s205 = ssub.s32 1024, 1024
          %206 = vsyncadd %s200, %s205
          %s207 = smul.addr %s19, 8
          %s208 = smul.addr %s207, 128
          %s209 = scalar_lea.hbm %s0, %s208
          %s210 = sshll.u32 %s203, 4
          %s211 = int_to_ptr.vmem [resolvable:$true] %s210
          %216 = dma.hbm_to_vmem [thread:$0]  %s209, 1024, %s211, %s200, 256, 256, 16
        $region36: #{tpu_custom_call.1} parent=31 // pred_fallthru
          _
      $region32: #{tpu_custom_call.1} parent=5 // pred_fallthru
        _
      %p217 = scmp.le.s32.totalorder 1, %s19
      %p218 = scmp.lt.s32.totalorder %s19, 3
      %p219 = pnand %p217, %p218
      %p220 = pneg %p219
      // Predicated region
      $region37: #{tpu_custom_call.1} parent=5 // pred_check
        _
      $region38: #{tpu_custom_call.1} parent=5 // pred_check_branch
        %222 = sbr.rel (%p219) target = $region40
      $region39: #{tpu_custom_call.1} parent=5 // pred_region
        %s223 = ssub.s32 %s19, 1
        %s224 = sand.u32 %s32, 1
        %s225 = scalar_lea.sflag [#allocation4], %s224
        %s226 = sand.u32 %s32, 1
        %s227 = smul.addr %s226, 64
        %s228 = scalar_lea.vmem [#allocation3], %s227
        // Predicated region
        $region41: #{tpu_custom_call.1} parent=39 // pred_check
          %p229 = pneg %p45
        $region42: #{tpu_custom_call.1} parent=39 // pred_check_branch
          %231 = sbr.rel (%p229) target = $region44
        $region43: #{tpu_custom_call.1} parent=39 // pred_region
          %232 = dma.done %s225, 1024
        $region44: #{tpu_custom_call.1} parent=39 // pred_fallthru
          _
        // Predicated region
        $region45: #{tpu_custom_call.1} parent=39 // pred_check
          %p233 = pneg %p108
        $region46: #{tpu_custom_call.1} parent=39 // pred_check_branch
          %235 = sbr.rel (%p233) target = $region48
        $region47: #{tpu_custom_call.1} parent=39 // pred_region
          %236 = dma.done [#allocation7], 3584
        $region48: #{tpu_custom_call.1} parent=39 // pred_fallthru
          _
        %s237 = sand.u32 %s32, 1
        %s238 = scalar_lea.sflag [#allocation4], %s237
        %s239 = sand.u32 %s32, 1
        %s240 = smul.addr %s239, 64
        %s241 = scalar_lea.vmem [#allocation3], %s240
        %p242 = pneg %p45
        %p243 = pneg %p42
        %p244 = pneg %p66
        %p245 = pneg %p63
        %p246 = pneg %p87
        %p247 = pneg %p84
        %p248 = pneg %p108
        %p249 = pneg %p105
        %p250 = pneg %p129
        %p251 = pneg %p126
        %p252 = pneg %p155
        %p253 = pneg %p152
        %s254 = sand.u32 %s142, 1
        %s255 = scalar_lea.sflag [#allocation5], %s254
        %s256 = sand.u32 %s142, 1
        %s257 = smul.addr %s256, 64
        %s258 = scalar_lea.vmem [#allocation8], %s257
        %v259 = vld [vmem:[%s228] sm:$0xff]
        %v260 = vld [vmem:[%s228 + $0x8] sm:$0xff]
        %v261 = vld [vmem:[%s228 + $0x10] sm:$0xff]
        %v262 = vld [vmem:[%s228 + $0x18] sm:$0xff]
        %v263 = vld [vmem:[%s228 + $0x20] sm:$0xff]
        %v264 = vld [vmem:[%s228 + $0x28] sm:$0xff]
        %v265 = vld [vmem:[%s228 + $0x30] sm:$0xff]
        %v266 = vld [vmem:[%s228 + $0x38] sm:$0xff]
        %267 = vmatprep.subr.mxu0 %v260
        %268 = vmatpush1.xpose.msra.mxu0 %v259
        %269 = vmatprep.subr.mxu0 %v262
        %270 = vmatpush1.xpose.msra.mxu0 %v261
        %271 = vmatprep.subr.mxu0 %v264
        %272 = vmatpush1.xpose.msra.mxu0 %v263
        %273 = vmatprep.subr.mxu0 %v266
        %274 = vmatpush1.xpose.msra.mxu0 %v265
        %275 = vmatprep.subr.mxu0 0.0
        %276 = vmatpush1.xpose.msra.mxu0 0.0
        %277 = vmatprep.subr.mxu0 0.0
        %278 = vmatpush1.xpose.msra.mxu0 0.0
        %279 = vmatprep.subr.mxu0 0.0
        %280 = vmatpush1.xpose.msra.mxu0 0.0
        %281 = vmatprep.subr.mxu0 0.0
        %282 = vmatpush1.xpose.msra.mxu0 0.0
        %283 = vmatprep.subr.mxu0 0.0
        %284 = vmatpush1.xpose.msra.mxu0 0.0
        %285 = vmatprep.subr.mxu0 0.0
        %286 = vmatpush1.xpose.msra.mxu0 0.0
        %287 = vmatprep.subr.mxu0 0.0
        %288 = vmatpush1.xpose.msra.mxu0 0.0
        %289 = vmatprep.subr.mxu0 0.0
        %290 = vmatpush1.xpose.msra.mxu0 0.0
        %291 = vmatprep.subr.mxu0 0.0
        %292 = vmatpush1.xpose.msra.mxu0 0.0
        %293 = vmatprep.subr.mxu0 0.0
        %294 = vmatpush1.xpose.msra.mxu0 0.0
        %295 = vmatprep.subr.mxu0 0.0
        %296 = vmatpush1.xpose.msra.mxu0 0.0
        %297 = vmatprep.subr.mxu0 0.0
        %298 = vmatpush1.xpose.msra.mxu0 0.0
        %299 = vmatprep.subr.mxu0 0.0
        %300 = vmatpush1.xpose.msra.mxu0 0.0
        %301 = vmatprep.subr.mxu0 0.0
        %302 = vmatpush1.xpose.msra.mxu0 0.0
        %303 = vmatprep.subr.mxu0 0.0
        %304 = vmatpush1.xpose.msra.mxu0 0.0
        %305 = vmatprep.subr.mxu0 0.0
        %306 = vmatpush1.xpose.msra.mxu0 0.0
        %307 = vmatprep.subr.mxu0 0.0
        %308 = vmatpush1.xpose.msra.mxu0 0.0
        %309 = vmatprep.subr.mxu0 0.0
        %310 = vmatpush1.xpose.msra.mxu0 0.0
        %311 = vmatprep.subr.mxu0 0.0
        %312 = vmatpush1.xpose.msra.mxu0 0.0
        %313 = vmatprep.subr.mxu0 0.0
        %314 = vmatpush1.xpose.msra.mxu0 0.0
        %315 = vmatprep.subr.mxu0 0.0
        %316 = vmatpush1.xpose.msra.mxu0 0.0
        %317 = vmatprep.subr.mxu0 0.0
        %318 = vmatpush1.xpose.msra.mxu0 0.0
        %319 = vmatprep.subr.mxu0 0.0
        %320 = vmatpush1.xpose.msra.mxu0 0.0
        %321 = vmatprep.subr.mxu0 0.0
        %322 = vmatpush1.xpose.msra.mxu0 0.0
        %323 = vmatprep.subr.mxu0 0.0
        %324 = vmatpush1.xpose.msra.mxu0 0.0
        %325 = vmatprep.subr.mxu0 0.0
        %326 = vmatpush1.xpose.msra.mxu0 0.0
        %327 = vmatprep.subr.mxu0 0.0
        %328 = vmatpush1.xpose.msra.mxu0 0.0
        %329 = vmatprep.subr.mxu0 0.0
        %330 = vmatpush1.xpose.msra.mxu0 0.0
        %331 = vmatprep.mubr.f32.mxu0 0.00390625
        %332 = vmatmul.mubr.f32.gmra.mrb[0].mxu0 0.00390625
        %v333 = vpop.f32.mrb[0].mxu0
        %v334 = vadd.f32 0.0, %v333
        %v335 = vpop.f32.mrb[0].mxu0
        %336 = vdwg.mxu0
        %v337 = vmax.f32 %v259, %v260
        %338 = vmax.xlane.f32.xlu0 %v337
        %v339 = vpop.xlane.xlu0 %338
        %v340 = vmax.f32 %v261, %v262
        %341 = vmax.xlane.f32.xlu0 %v340
        %v342 = vpop.xlane.xlu0 %341
        %v343 = vmax.f32 %v263, %v264
        %344 = vmax.xlane.f32.xlu0 %v343
        %v345 = vpop.xlane.xlu0 %344
        %v346 = vmax.f32 %v265, %v266
        %347 = vmax.xlane.f32.xlu0 %v346
        %v348 = vpop.xlane.xlu0 %347
        %v349 = vld [vmem:[%s1] sm:$0xff]
        %v350 = vld [vmem:[%s1 + $0x8] sm:$0xff]
        %v351 = vld [vmem:[%s1 + $0x10] sm:$0xff]
        %v352 = vld [vmem:[%s1 + $0x18] sm:$0xff]
        %v353 = vld [vmem:[%s2] sm:$0x3]
        %vm354 = vcmask 261120
        %v356 = vsel %vm354, %v334, 0
        %358 = vmatprep.subr.mxu0 0.0
        %359 = vmatpush1.msra.mxu0 %v349
        %360 = vmatprep.subr.mxu0 0.0
        %361 = vmatpush1.msra.mxu0 %v350
        %362 = vmatprep.subr.mxu0 0.0
        %363 = vmatpush1.msra.mxu0 %v351
        %364 = vmatprep.subr.mxu0 0.0
        %365 = vmatpush1.msra.mxu0 %v352
        %366 = vmatprep.subr.mxu0 0.0
        %367 = vmatpush1.msra.mxu0 0.0
        %368 = vmatprep.subr.mxu0 0.0
        %369 = vmatpush1.msra.mxu0 0.0
        %370 = vmatprep.subr.mxu0 0.0
        %371 = vmatpush1.msra.mxu0 0.0
        %372 = vmatprep.subr.mxu0 0.0
        %373 = vmatpush1.msra.mxu0 0.0
        %374 = vmatprep.subr.mxu0 0.0
        %375 = vmatpush1.msra.mxu0 0.0
        %376 = vmatprep.subr.mxu0 0.0
        %377 = vmatpush1.msra.mxu0 0.0
        %378 = vmatprep.subr.mxu0 0.0
        %379 = vmatpush1.msra.mxu0 0.0
        %380 = vmatprep.subr.mxu0 0.0
        %381 = vmatpush1.msra.mxu0 0.0
        %382 = vmatprep.subr.mxu0 0.0
        %383 = vmatpush1.msra.mxu0 0.0
        %384 = vmatprep.subr.mxu0 0.0
        %385 = vmatpush1.msra.mxu0 0.0
        %386 = vmatprep.subr.mxu0 0.0
        %387 = vmatpush1.msra.mxu0 0.0
        %388 = vmatprep.subr.mxu0 0.0
        %389 = vmatpush1.msra.mxu0 0.0
        %390 = vmatprep.subr.mxu0 0.0
        %391 = vmatpush1.msra.mxu0 0.0
        %392 = vmatprep.subr.mxu0 0.0
        %393 = vmatpush1.msra.mxu0 0.0
        %394 = vmatprep.subr.mxu0 0.0
        %395 = vmatpush1.msra.mxu0 0.0
        %396 = vmatprep.subr.mxu0 0.0
        %397 = vmatpush1.msra.mxu0 0.0
        %398 = vmatprep.subr.mxu0 0.0
        %399 = vmatpush1.msra.mxu0 0.0
        %400 = vmatprep.subr.mxu0 0.0
        %401 = vmatpush1.msra.mxu0 0.0
        %402 = vmatprep.subr.mxu0 0.0
        %403 = vmatpush1.msra.mxu0 0.0
        %404 = vmatprep.subr.mxu0 0.0
        %405 = vmatpush1.msra.mxu0 0.0
        %406 = vmatprep.subr.mxu0 0.0
        %407 = vmatpush1.msra.mxu0 0.0
        %408 = vmatprep.subr.mxu0 0.0
        %409 = vmatpush1.msra.mxu0 0.0
        %410 = vmatprep.subr.mxu0 0.0
        %411 = vmatpush1.msra.mxu0 0.0
        %412 = vmatprep.subr.mxu0 0.0
        %413 = vmatpush1.msra.mxu0 0.0
        %414 = vmatprep.subr.mxu0 0.0
        %415 = vmatpush1.msra.mxu0 0.0
        %416 = vmatprep.subr.mxu0 0.0
        %417 = vmatpush1.msra.mxu0 0.0
        %418 = vmatprep.subr.mxu0 0.0
        %419 = vmatpush1.msra.mxu0 0.0
        %420 = vmatprep.subr.mxu0 0.0
        %421 = vmatpush1.msra.mxu0 0.0
        %422 = vmatprep.mubr.f32.mxu0 0.0
        %423 = vmatmul.mubr.f32.gmra.mrb[0].mxu0 %v356
        %v424 = vpop.f32.mrb[0].mxu0
        %v425 = vadd.f32 0.0, %v424
        %v426 = vpop.f32.mrb[0].mxu0
        %427 = vdwg.mxu0
        %v428 = vmax.f32 %v425, 0.0
        %v433 = vlaneseq
        %v434 = vand.u32 %v433, 127
        %v435 = vlaneseq
        %v436 = vshrl.u32 %v435, 7
        %v437 = vsub.s32 %v434, %v436
        %v438 = vrot.slane %v339, %v437
        %v439 = vadd.s32 %v434, 4294967288
        %v440 = vlaneseq
        %v441 = vshrl.u32 %v440, 7
        %v442 = vsub.s32 %v439, %v441
        %v443 = vrot.slane %v342, %v442
        %vm444 = vcmask 130112
        %v445 = vsel %vm444, %v443, %v438
        %v446 = vadd.s32 %v434, 4294967280
        %v447 = vlaneseq
        %v448 = vshrl.u32 %v447, 7
        %v449 = vsub.s32 %v446, %v448
        %v450 = vrot.slane %v345, %v449
        %vm451 = vcmask 195712
        %v452 = vsel %vm451, %v450, %v445
        %v453 = vadd.s32 %v434, 4294967272
        %v454 = vlaneseq
        %v455 = vshrl.u32 %v454, 7
        %v456 = vsub.s32 %v453, %v455
        %v457 = vrot.slane %v348, %v456
        %vm458 = vcmask 261312
        %v459 = vsel %vm458, %v457, %v452
        %v460 = vsel %vm354, %v459, 0
        %462 = vmatprep.subr.mxu0 0.0
        %463 = vmatpush1.msra.mxu0 %v349
        %464 = vmatprep.subr.mxu0 0.0
        %465 = vmatpush1.msra.mxu0 %v350
        %466 = vmatprep.subr.mxu0 0.0
        %467 = vmatpush1.msra.mxu0 %v351
        %468 = vmatprep.subr.mxu0 0.0
        %469 = vmatpush1.msra.mxu0 %v352
        %470 = vmatprep.subr.mxu0 0.0
        %471 = vmatpush1.msra.mxu0 0.0
        %472 = vmatprep.subr.mxu0 0.0
        %473 = vmatpush1.msra.mxu0 0.0
        %474 = vmatprep.subr.mxu0 0.0
        %475 = vmatpush1.msra.mxu0 0.0
        %476 = vmatprep.subr.mxu0 0.0
        %477 = vmatpush1.msra.mxu0 0.0
        %478 = vmatprep.subr.mxu0 0.0
        %479 = vmatpush1.msra.mxu0 0.0
        %480 = vmatprep.subr.mxu0 0.0
        %481 = vmatpush1.msra.mxu0 0.0
        %482 = vmatprep.subr.mxu0 0.0
        %483 = vmatpush1.msra.mxu0 0.0
        %484 = vmatprep.subr.mxu0 0.0
        %485 = vmatpush1.msra.mxu0 0.0
        %486 = vmatprep.subr.mxu0 0.0
        %487 = vmatpush1.msra.mxu0 0.0
        %488 = vmatprep.subr.mxu0 0.0
        %489 = vmatpush1.msra.mxu0 0.0
        %490 = vmatprep.subr.mxu0 0.0
        %491 = vmatpush1.msra.mxu0 0.0
        %492 = vmatprep.subr.mxu0 0.0
        %493 = vmatpush1.msra.mxu0 0.0
        %494 = vmatprep.subr.mxu0 0.0
        %495 = vmatpush1.msra.mxu0 0.0
        %496 = vmatprep.subr.mxu0 0.0
        %497 = vmatpush1.msra.mxu0 0.0
        %498 = vmatprep.subr.mxu0 0.0
        %499 = vmatpush1.msra.mxu0 0.0
        %500 = vmatprep.subr.mxu0 0.0
        %501 = vmatpush1.msra.mxu0 0.0
        %502 = vmatprep.subr.mxu0 0.0
        %503 = vmatpush1.msra.mxu0 0.0
        %504 = vmatprep.subr.mxu0 0.0
        %505 = vmatpush1.msra.mxu0 0.0
        %506 = vmatprep.subr.mxu0 0.0
        %507 = vmatpush1.msra.mxu0 0.0
        %508 = vmatprep.subr.mxu0 0.0
        %509 = vmatpush1.msra.mxu0 0.0
        %510 = vmatprep.subr.mxu0 0.0
        %511 = vmatpush1.msra.mxu0 0.0
        %512 = vmatprep.subr.mxu0 0.0
        %513 = vmatpush1.msra.mxu0 0.0
        %514 = vmatprep.subr.mxu0 0.0
        %515 = vmatpush1.msra.mxu0 0.0
        %516 = vmatprep.subr.mxu0 0.0
        %517 = vmatpush1.msra.mxu0 0.0
        %518 = vmatprep.subr.mxu0 0.0
        %519 = vmatpush1.msra.mxu0 0.0
        %520 = vmatprep.subr.mxu0 0.0
        %521 = vmatpush1.msra.mxu0 0.0
        %522 = vmatprep.subr.mxu0 0.0
        %523 = vmatpush1.msra.mxu0 0.0
        %524 = vmatprep.subr.mxu0 0.0
        %525 = vmatpush1.msra.mxu0 0.0
        %526 = vmatprep.mubr.f32.mxu0 0.0
        %527 = vmatmul.mubr.f32.gmra.mrb[0].mxu0 %v460
        %v528 = vpop.f32.mrb[0].mxu0
        %v529 = vadd.f32 0.0, %v528
        %v530 = vpop.f32.mrb[0].mxu0
        %531 = vdwg.mxu0
        %v532 = vmax.f32 %v529, 0.0
        %v533 = vadd.f32 %v428, %v532
        %vm534 = vcmask 15360
        %v536 = vsel %vm534, %v533, 0
        %vm538 = vcmask 1041408
        %v540 = vsel %vm538, %v353, 0
        %542 = vmatprep.subr.mxu0 0.0
        %543 = vmatpush1.msra.mxu0 %v540
        %544 = vmatprep.subr.mxu0 0.0
        %545 = vmatpush1.msra.mxu0 0.0
        %546 = vmatprep.subr.mxu0 0.0
        %547 = vmatpush1.msra.mxu0 0.0
        %548 = vmatprep.subr.mxu0 0.0
        %549 = vmatpush1.msra.mxu0 0.0
        %550 = vmatprep.subr.mxu0 0.0
        %551 = vmatpush1.msra.mxu0 0.0
        %552 = vmatprep.subr.mxu0 0.0
        %553 = vmatpush1.msra.mxu0 0.0
        %554 = vmatprep.subr.mxu0 0.0
        %555 = vmatpush1.msra.mxu0 0.0
        %556 = vmatprep.subr.mxu0 0.0
        %557 = vmatpush1.msra.mxu0 0.0
        %558 = vmatprep.subr.mxu0 0.0
        %559 = vmatpush1.msra.mxu0 0.0
        %560 = vmatprep.subr.mxu0 0.0
        %561 = vmatpush1.msra.mxu0 0.0
        %562 = vmatprep.subr.mxu0 0.0
        %563 = vmatpush1.msra.mxu0 0.0
        %564 = vmatprep.subr.mxu0 0.0
        %565 = vmatpush1.msra.mxu0 0.0
        %566 = vmatprep.subr.mxu0 0.0
        %567 = vmatpush1.msra.mxu0 0.0
        %568 = vmatprep.subr.mxu0 0.0
        %569 = vmatpush1.msra.mxu0 0.0
        %570 = vmatprep.subr.mxu0 0.0
        %571 = vmatpush1.msra.mxu0 0.0
        %572 = vmatprep.subr.mxu0 0.0
        %573 = vmatpush1.msra.mxu0 0.0
        %574 = vmatprep.subr.mxu0 0.0
        %575 = vmatpush1.msra.mxu0 0.0
        %576 = vmatprep.subr.mxu0 0.0
        %577 = vmatpush1.msra.mxu0 0.0
        %578 = vmatprep.subr.mxu0 0.0
        %579 = vmatpush1.msra.mxu0 0.0
        %580 = vmatprep.subr.mxu0 0.0
        %581 = vmatpush1.msra.mxu0 0.0
        %582 = vmatprep.subr.mxu0 0.0
        %583 = vmatpush1.msra.mxu0 0.0
        %584 = vmatprep.subr.mxu0 0.0
        %585 = vmatpush1.msra.mxu0 0.0
        %586 = vmatprep.subr.mxu0 0.0
        %587 = vmatpush1.msra.mxu0 0.0
        %588 = vmatprep.subr.mxu0 0.0
        %589 = vmatpush1.msra.mxu0 0.0
        %590 = vmatprep.subr.mxu0 0.0
        %591 = vmatpush1.msra.mxu0 0.0
        %592 = vmatprep.subr.mxu0 0.0
        %593 = vmatpush1.msra.mxu0 0.0
        %594 = vmatprep.subr.mxu0 0.0
        %595 = vmatpush1.msra.mxu0 0.0
        %596 = vmatprep.subr.mxu0 0.0
        %597 = vmatpush1.msra.mxu0 0.0
        %598 = vmatprep.subr.mxu0 0.0
        %599 = vmatpush1.msra.mxu0 0.0
        %600 = vmatprep.subr.mxu0 0.0
        %601 = vmatpush1.msra.mxu0 0.0
        %602 = vmatprep.subr.mxu0 0.0
        %603 = vmatpush1.msra.mxu0 0.0
        %604 = vmatprep.subr.mxu0 0.0
        %605 = vmatpush1.msra.mxu0 0.0
        %606 = vmatprep.mubr.f32.mxu0 0.0
        %607 = vmatmul.mubr.f32.gmra.mrb[0].mxu0 %v536
        %v608 = vpop.f32.mrb[0].mxu0
        %v609 = vadd.f32 0.0, %v608
        %v610 = vpop.f32.mrb[0].mxu0
        %611 = vdwg.mxu0
        %v612 = vxor.u32 %v609, 2147483648
        %v613 = vmul.f32 %v612, 1.442695
        %v614 = vpow.pop %v613
        %v615 = vadd.f32 %v614, 1.0
        %v616 = vrcp.pop %v615
        %v617 = vmul.f32 1.0, %v616
        %v619 = vsel %vm354, %v617, 0
        %621 = vmatprep.subr.mxu0 %v260
        %622 = vmatpush1.msra.mxu0 %v259
        %623 = vmatprep.subr.mxu0 %v262
        %624 = vmatpush1.msra.mxu0 %v261
        %625 = vmatprep.subr.mxu0 %v264
        %626 = vmatpush1.msra.mxu0 %v263
        %627 = vmatprep.subr.mxu0 %v266
        %628 = vmatpush1.msra.mxu0 %v265
        %629 = vmatprep.subr.mxu0 0.0
        %630 = vmatpush1.msra.mxu0 0.0
        %631 = vmatprep.subr.mxu0 0.0
        %632 = vmatpush1.msra.mxu0 0.0
        %633 = vmatprep.subr.mxu0 0.0
        %634 = vmatpush1.msra.mxu0 0.0
        %635 = vmatprep.subr.mxu0 0.0
        %636 = vmatpush1.msra.mxu0 0.0
        %637 = vmatprep.subr.mxu0 0.0
        %638 = vmatpush1.msra.mxu0 0.0
        %639 = vmatprep.subr.mxu0 0.0
        %640 = vmatpush1.msra.mxu0 0.0
        %641 = vmatprep.subr.mxu0 0.0
        %642 = vmatpush1.msra.mxu0 0.0
        %643 = vmatprep.subr.mxu0 0.0
        %644 = vmatpush1.msra.mxu0 0.0
        %645 = vmatprep.subr.mxu0 0.0
        %646 = vmatpush1.msra.mxu0 0.0
        %647 = vmatprep.subr.mxu0 0.0
        %648 = vmatpush1.msra.mxu0 0.0
        %649 = vmatprep.subr.mxu0 0.0
        %650 = vmatpush1.msra.mxu0 0.0
        %651 = vmatprep.subr.mxu0 0.0
        %652 = vmatpush1.msra.mxu0 0.0
        %653 = vmatprep.subr.mxu0 0.0
        %654 = vmatpush1.msra.mxu0 0.0
        %655 = vmatprep.subr.mxu0 0.0
        %656 = vmatpush1.msra.mxu0 0.0
        %657 = vmatprep.subr.mxu0 0.0
        %658 = vmatpush1.msra.mxu0 0.0
        %659 = vmatprep.subr.mxu0 0.0
        %660 = vmatpush1.msra.mxu0 0.0
        %661 = vmatprep.subr.mxu0 0.0
        %662 = vmatpush1.msra.mxu0 0.0
        %663 = vmatprep.subr.mxu0 0.0
        %664 = vmatpush1.msra.mxu0 0.0
        %665 = vmatprep.subr.mxu0 0.0
        %666 = vmatpush1.msra.mxu0 0.0
        %667 = vmatprep.subr.mxu0 0.0
        %668 = vmatpush1.msra.mxu0 0.0
        %669 = vmatprep.subr.mxu0 0.0
        %670 = vmatpush1.msra.mxu0 0.0
        %671 = vmatprep.subr.mxu0 0.0
        %672 = vmatpush1.msra.mxu0 0.0
        %673 = vmatprep.subr.mxu0 0.0
        %674 = vmatpush1.msra.mxu0 0.0
        %675 = vmatprep.subr.mxu0 0.0
        %676 = vmatpush1.msra.mxu0 0.0
        %677 = vmatprep.subr.mxu0 0.0
        %678 = vmatpush1.msra.mxu0 0.0
        %679 = vmatprep.subr.mxu0 0.0
        %680 = vmatpush1.msra.mxu0 0.0
        %681 = vmatprep.subr.mxu0 0.0
        %682 = vmatpush1.msra.mxu0 0.0
        %683 = vmatprep.subr.mxu0 0.0
        %684 = vmatpush1.msra.mxu0 0.0
        %685 = vmatprep.mubr.f32.mxu0 0.0
        %686 = vmatmul.mubr.f32.gmra.mrb[0].mxu0 %v619
        %v687 = vpop.f32.mrb[0].mxu0
        %v688 = vadd.f32 0.0, %v687
        %v689 = vpop.f32.mrb[0].mxu0
        %v690 = vadd.f32 0.0, %v689
        %691 = vdwg.mxu0
        %v692 = vmul.f32 %v688, 0.03125
        %v693 = vmul.f32 %v690, 0.03125
        %v694 = vlaneseq
        %v695 = vshrl.u32 %v694, 7
        %v696 = vsub.s32 0, %v695
        %v697 = vrot.slane %v617, %v696
        %699 = vbcast.lane.b32.xlu0 %v697, 256
        %v700 = vpop.permute.xlu0 %699
        %s702 = sor.u32 256, 8
        %703 = vbcast.lane.b32.xlu0 %v697, %s702
        %v704 = vpop.permute.xlu0 %703
        %s706 = sor.u32 256, 16
        %707 = vbcast.lane.b32.xlu0 %v697, %s706
        %v708 = vpop.permute.xlu0 %707
        %s710 = sor.u32 256, 24
        %711 = vbcast.lane.b32.xlu0 %v697, %s710
        %v712 = vpop.permute.xlu0 %711
        %v713 = vmul.f32 %v259, %v700
        %v714 = vmul.f32 %v260, %v700
        %v715 = vmul.f32 %v261, %v704
        %v716 = vmul.f32 %v262, %v704
        %v717 = vmul.f32 %v263, %v708
        %v718 = vmul.f32 %v264, %v708
        %v719 = vmul.f32 %v265, %v712
        %v720 = vmul.f32 %v266, %v712
        %v721 = vmax.f32 %v713, %v717
        %v722 = vmax.f32 %v715, %v719
        %v723 = vmax.f32 %v721, %v722
        %v724 = vrot.slane %v723, 4
        %v725 = vmax.f32 %v723, %v724
        %v726 = vrot.slane %v725, 2
        %v727 = vmax.f32 %v725, %v726
        %v728 = vrot.slane %v727, 1
        %v729 = vmax.f32 %v727, %v728
        %v730 = vmax.f32 %v714, %v718
        %v731 = vmax.f32 %v716, %v720
        %v732 = vmax.f32 %v730, %v731
        %v733 = vrot.slane %v732, 4
        %v734 = vmax.f32 %v732, %v733
        %v735 = vrot.slane %v734, 2
        %v736 = vmax.f32 %v734, %v735
        %v737 = vrot.slane %v736, 1
        %v738 = vmax.f32 %v736, %v737
        %739 = vrot.lane.b32.xlu0 %v729, 51
        %v740 = vpop.permute.xlu0 %739
        %741 = vrot.lane.b32.xlu0 %v738, 51
        %v742 = vpop.permute.xlu0 %741
        %743 = vrot.lane.b32.xlu0 %v692, 51
        %v744 = vpop.permute.xlu0 %743
        %745 = vrot.lane.b32.xlu0 %v693, 51
        %v746 = vpop.permute.xlu0 %745
        %vm747 = vcmp.lt.s32.totalorder %v434, 51
        %v748 = vsel %vm747, %v744, %v746
        %v749 = vsel %vm747, %v742, %v744
        %v750 = vsel %vm747, %v740, %v742
        %v751 = vsel %vm747, %v746, %v740
        %v752 = vld [vmem:[#allocation6] ss:$8 sm:$0xf]
        %v757 = vcombine.low %v751, %v750
        %v758 = vcombine.low %v749, %v748
        %v760 = vunpack.c.l.s4 1966171168
        %v761 = vunpack.c.0.s8 %v760
        %v762 = vlaneseq
        %v763 = vshrl.u32 %v762, 7
        %v764 = vsub.s32 %v761, %v763
        %v765 = vrot.slane %v757, %v764
        %v767 = vunpack.c.l.s4 1966171168
        %v768 = vunpack.c.0.s8 %v767
        %v769 = vlaneseq
        %v770 = vshrl.u32 %v769, 7
        %v771 = vsub.s32 %v768, %v770
        %v772 = vrot.slane %v758, %v771
        %v773 = vcombine.low %v765, %v772
        %v775 = vunpack.c.l.s4 1966171168
        %v776 = vunpack.c.0.s8 %v775
        %v777 = vlaneseq
        %v778 = vshrl.u32 %v777, 7
        %v779 = vsub.s32 %v776, %v778
        %v780 = vrot.slane %v773, %v779
        %v782 = vmul.f32 %v752, %v780
        %v783 = vadd.f32 %v782, 0.0
        %784 = vrot.lane.b32.xlu0 %v729, 50
        %v785 = vpop.permute.xlu0 %784
        %786 = vrot.lane.b32.xlu0 %v738, 50
        %v787 = vpop.permute.xlu0 %786
        %788 = vrot.lane.b32.xlu0 %v692, 50
        %v789 = vpop.permute.xlu0 %788
        %790 = vrot.lane.b32.xlu0 %v693, 50
        %v791 = vpop.permute.xlu0 %790
        %vm792 = vcmp.lt.s32.totalorder %v434, 50
        %v793 = vsel %vm792, %v789, %v791
        %v794 = vsel %vm792, %v787, %v789
        %v795 = vsel %vm792, %v785, %v787
        %v796 = vsel %vm792, %v791, %v785
        %s797 = scalar_lea.vmem [#allocation6], 1
        %v798 = vld [vmem:[%s797] ss:$8 sm:$0xf]
        %v803 = vcombine.low %v796, %v795
        %v804 = vcombine.low %v794, %v793
        %v806 = vunpack.c.l.s4 1966171168
        %v807 = vunpack.c.0.s8 %v806
        %v808 = vlaneseq
        %v809 = vshrl.u32 %v808, 7
        %v810 = vsub.s32 %v807, %v809
        %v811 = vrot.slane %v803, %v810
        %v813 = vunpack.c.l.s4 1966171168
        %v814 = vunpack.c.0.s8 %v813
        %v815 = vlaneseq
        %v816 = vshrl.u32 %v815, 7
        %v817 = vsub.s32 %v814, %v816
        %v818 = vrot.slane %v804, %v817
        %v819 = vcombine.low %v811, %v818
        %v821 = vunpack.c.l.s4 1966171168
        %v822 = vunpack.c.0.s8 %v821
        %v823 = vlaneseq
        %v824 = vshrl.u32 %v823, 7
        %v825 = vsub.s32 %v822, %v824
        %v826 = vrot.slane %v819, %v825
        %v828 = vmul.f32 %v798, %v826
        %v829 = vadd.f32 %v828, 0.0
        %830 = vrot.lane.b32.xlu0 %v729, 49
        %v831 = vpop.permute.xlu0 %830
        %832 = vrot.lane.b32.xlu0 %v738, 49
        %v833 = vpop.permute.xlu0 %832
        %834 = vrot.lane.b32.xlu0 %v692, 49
        %v835 = vpop.permute.xlu0 %834
        %836 = vrot.lane.b32.xlu0 %v693, 49
        %v837 = vpop.permute.xlu0 %836
        %vm838 = vcmp.lt.s32.totalorder %v434, 49
        %v839 = vsel %vm838, %v835, %v837
        %v840 = vsel %vm838, %v833, %v835
        %v841 = vsel %vm838, %v831, %v833
        %v842 = vsel %vm838, %v837, %v831
        %s843 = scalar_lea.vmem [#allocation6], 2
        %v844 = vld [vmem:[%s843] ss:$8 sm:$0xf]
        %v849 = vcombine.low %v842, %v841
        %v850 = vcombine.low %v840, %v839
        %v852 = vunpack.c.l.s4 1966171168
        %v853 = vunpack.c.0.s8 %v852
        %v854 = vlaneseq
        %v855 = vshrl.u32 %v854, 7
        %v856 = vsub.s32 %v853, %v855
        %v857 = vrot.slane %v849, %v856
        %v859 = vunpack.c.l.s4 1966171168
        %v860 = vunpack.c.0.s8 %v859
        %v861 = vlaneseq
        %v862 = vshrl.u32 %v861, 7
        %v863 = vsub.s32 %v860, %v862
        %v864 = vrot.slane %v850, %v863
        %v865 = vcombine.low %v857, %v864
        %v867 = vunpack.c.l.s4 1966171168
        %v868 = vunpack.c.0.s8 %v867
        %v869 = vlaneseq
        %v870 = vshrl.u32 %v869, 7
        %v871 = vsub.s32 %v868, %v870
        %v872 = vrot.slane %v865, %v871
        %v874 = vmul.f32 %v844, %v872
        %v875 = vadd.f32 %v874, 0.0
        %876 = vrot.lane.b32.xlu0 %v729, 48
        %v877 = vpop.permute.xlu0 %876
        %878 = vrot.lane.b32.xlu0 %v738, 48
        %v879 = vpop.permute.xlu0 %878
        %880 = vrot.lane.b32.xlu0 %v692, 48
        %v881 = vpop.permute.xlu0 %880
        %882 = vrot.lane.b32.xlu0 %v693, 48
        %v883 = vpop.permute.xlu0 %882
        %vm884 = vcmp.lt.s32.totalorder %v434, 48
        %v885 = vsel %vm884, %v881, %v883
        %v886 = vsel %vm884, %v879, %v881
        %v887 = vsel %vm884, %v877, %v879
        %v888 = vsel %vm884, %v883, %v877
        %s889 = scalar_lea.vmem [#allocation6], 3
        %v890 = vld [vmem:[%s889] ss:$8 sm:$0xf]
        %v895 = vcombine.low %v888, %v887
        %v896 = vcombine.low %v886, %v885
        %v898 = vunpack.c.l.s4 1966171168
        %v899 = vunpack.c.0.s8 %v898
        %v900 = vlaneseq
        %v901 = vshrl.u32 %v900, 7
        %v902 = vsub.s32 %v899, %v901
        %v903 = vrot.slane %v895, %v902
        %v905 = vunpack.c.l.s4 1966171168
        %v906 = vunpack.c.0.s8 %v905
        %v907 = vlaneseq
        %v908 = vshrl.u32 %v907, 7
        %v909 = vsub.s32 %v906, %v908
        %v910 = vrot.slane %v896, %v909
        %v911 = vcombine.low %v903, %v910
        %v913 = vunpack.c.l.s4 1966171168
        %v914 = vunpack.c.0.s8 %v913
        %v915 = vlaneseq
        %v916 = vshrl.u32 %v915, 7
        %v917 = vsub.s32 %v914, %v916
        %v918 = vrot.slane %v911, %v917
        %v920 = vmul.f32 %v890, %v918
        %v921 = vadd.f32 %v920, 0.0
        %922 = vrot.lane.b32.xlu0 %v729, 47
        %v923 = vpop.permute.xlu0 %922
        %924 = vrot.lane.b32.xlu0 %v738, 47
        %v925 = vpop.permute.xlu0 %924
        %926 = vrot.lane.b32.xlu0 %v692, 47
        %v927 = vpop.permute.xlu0 %926
        %928 = vrot.lane.b32.xlu0 %v693, 47
        %v929 = vpop.permute.xlu0 %928
        %vm930 = vcmp.lt.s32.totalorder %v434, 47
        %v931 = vsel %vm930, %v927, %v929
        %v932 = vsel %vm930, %v925, %v927
        %v933 = vsel %vm930, %v923, %v925
        %v934 = vsel %vm930, %v929, %v923
        %s935 = scalar_lea.vmem [#allocation6], 4
        %v936 = vld [vmem:[%s935] ss:$8 sm:$0xf]
        %v941 = vcombine.low %v934, %v933
        %v942 = vcombine.low %v932, %v931
        %v944 = vunpack.c.l.s4 1966171168
        %v945 = vunpack.c.0.s8 %v944
        %v946 = vlaneseq
        %v947 = vshrl.u32 %v946, 7
        %v948 = vsub.s32 %v945, %v947
        %v949 = vrot.slane %v941, %v948
        %v951 = vunpack.c.l.s4 1966171168
        %v952 = vunpack.c.0.s8 %v951
        %v953 = vlaneseq
        %v954 = vshrl.u32 %v953, 7
        %v955 = vsub.s32 %v952, %v954
        %v956 = vrot.slane %v942, %v955
        %v957 = vcombine.low %v949, %v956
        %v959 = vunpack.c.l.s4 1966171168
        %v960 = vunpack.c.0.s8 %v959
        %v961 = vlaneseq
        %v962 = vshrl.u32 %v961, 7
        %v963 = vsub.s32 %v960, %v962
        %v964 = vrot.slane %v957, %v963
        %v966 = vmul.f32 %v936, %v964
        %v967 = vadd.f32 %v783, %v966
        %968 = vrot.lane.b32.xlu0 %v729, 46
        %v969 = vpop.permute.xlu0 %968
        %970 = vrot.lane.b32.xlu0 %v738, 46
        %v971 = vpop.permute.xlu0 %970
        %972 = vrot.lane.b32.xlu0 %v692, 46
        %v973 = vpop.permute.xlu0 %972
        %974 = vrot.lane.b32.xlu0 %v693, 46
        %v975 = vpop.permute.xlu0 %974
        %vm976 = vcmp.lt.s32.totalorder %v434, 46
        %v977 = vsel %vm976, %v973, %v975
        %v978 = vsel %vm976, %v971, %v973
        %v979 = vsel %vm976, %v969, %v971
        %v980 = vsel %vm976, %v975, %v969
        %s981 = scalar_lea.vmem [#allocation6], 5
        %v982 = vld [vmem:[%s981] ss:$8 sm:$0xf]
        %v987 = vcombine.low %v980, %v979
        %v988 = vcombine.low %v978, %v977
        %v990 = vunpack.c.l.s4 1966171168
        %v991 = vunpack.c.0.s8 %v990
        %v992 = vlaneseq
        %v993 = vshrl.u32 %v992, 7
        %v994 = vsub.s32 %v991, %v993
        %v995 = vrot.slane %v987, %v994
        %v997 = vunpack.c.l.s4 1966171168
        %v998 = vunpack.c.0.s8 %v997
        %v999 = vlaneseq
        %v1000 = vshrl.u32 %v999, 7
        %v1001 = vsub.s32 %v998, %v1000
        %v1002 = vrot.slane %v988, %v1001
        %v1003 = vcombine.low %v995, %v1002
        %v1005 = vunpack.c.l.s4 1966171168
        %v1006 = vunpack.c.0.s8 %v1005
        %v1007 = vlaneseq
        %v1008 = vshrl.u32 %v1007, 7
        %v1009 = vsub.s32 %v1006, %v1008
        %v1010 = vrot.slane %v1003, %v1009
        %v1012 = vmul.f32 %v982, %v1010
        %v1013 = vadd.f32 %v829, %v1012
        %1014 = vrot.lane.b32.xlu0 %v729, 45
        %v1015 = vpop.permute.xlu0 %1014
        %1016 = vrot.lane.b32.xlu0 %v738, 45
        %v1017 = vpop.permute.xlu0 %1016
        %1018 = vrot.lane.b32.xlu0 %v692, 45
        %v1019 = vpop.permute.xlu0 %1018
        %1020 = vrot.lane.b32.xlu0 %v693, 45
        %v1021 = vpop.permute.xlu0 %1020
        %vm1022 = vcmp.lt.s32.totalorder %v434, 45
        %v1023 = vsel %vm1022, %v1019, %v1021
        %v1024 = vsel %vm1022, %v1017, %v1019
        %v1025 = vsel %vm1022, %v1015, %v1017
        %v1026 = vsel %vm1022, %v1021, %v1015
        %s1027 = scalar_lea.vmem [#allocation6], 6
        %v1028 = vld [vmem:[%s1027] ss:$8 sm:$0xf]
        %v1033 = vcombine.low %v1026, %v1025
        %v1034 = vcombine.low %v1024, %v1023
        %v1036 = vunpack.c.l.s4 1966171168
        %v1037 = vunpack.c.0.s8 %v1036
        %v1038 = vlaneseq
        %v1039 = vshrl.u32 %v1038, 7
        %v1040 = vsub.s32 %v1037, %v1039
        %v1041 = vrot.slane %v1033, %v1040
        %v1043 = vunpack.c.l.s4 1966171168
        %v1044 = vunpack.c.0.s8 %v1043
        %v1045 = vlaneseq
        %v1046 = vshrl.u32 %v1045, 7
        %v1047 = vsub.s32 %v1044, %v1046
        %v1048 = vrot.slane %v1034, %v1047
        %v1049 = vcombine.low %v1041, %v1048
        %v1051 = vunpack.c.l.s4 1966171168
        %v1052 = vunpack.c.0.s8 %v1051
        %v1053 = vlaneseq
        %v1054 = vshrl.u32 %v1053, 7
        %v1055 = vsub.s32 %v1052, %v1054
        %v1056 = vrot.slane %v1049, %v1055
        %v1058 = vmul.f32 %v1028, %v1056
        %v1059 = vadd.f32 %v875, %v1058
        %1060 = vrot.lane.b32.xlu0 %v729, 35
        %v1061 = vpop.permute.xlu0 %1060
        %1062 = vrot.lane.b32.xlu0 %v738, 35
        %v1063 = vpop.permute.xlu0 %1062
        %1064 = vrot.lane.b32.xlu0 %v692, 35
        %v1065 = vpop.permute.xlu0 %1064
        %1066 = vrot.lane.b32.xlu0 %v693, 35
        %v1067 = vpop.permute.xlu0 %1066
        %vm1068 = vcmp.lt.s32.totalorder %v434, 35
        %v1069 = vsel %vm1068, %v1065, %v1067
        %v1070 = vsel %vm1068, %v1063, %v1065
        %v1071 = vsel %vm1068, %v1061, %v1063
        %v1072 = vsel %vm1068, %v1067, %v1061
        %s1073 = scalar_lea.vmem [#allocation6], 7
        %v1074 = vld [vmem:[%s1073] ss:$8 sm:$0xf]
        %v1079 = vcombine.low %v1072, %v1071
        %v1080 = vcombine.low %v1070, %v1069
        %v1082 = vunpack.c.l.s4 1966171168
        %v1083 = vunpack.c.0.s8 %v1082
        %v1084 = vlaneseq
        %v1085 = vshrl.u32 %v1084, 7
        %v1086 = vsub.s32 %v1083, %v1085
        %v1087 = vrot.slane %v1079, %v1086
        %v1089 = vunpack.c.l.s4 1966171168
        %v1090 = vunpack.c.0.s8 %v1089
        %v1091 = vlaneseq
        %v1092 = vshrl.u32 %v1091, 7
        %v1093 = vsub.s32 %v1090, %v1092
        %v1094 = vrot.slane %v1080, %v1093
        %v1095 = vcombine.low %v1087, %v1094
        %v1097 = vunpack.c.l.s4 1966171168
        %v1098 = vunpack.c.0.s8 %v1097
        %v1099 = vlaneseq
        %v1100 = vshrl.u32 %v1099, 7
        %v1101 = vsub.s32 %v1098, %v1100
        %v1102 = vrot.slane %v1095, %v1101
        %v1104 = vmul.f32 %v1074, %v1102
        %v1105 = vadd.f32 %v921, %v1104
        %1106 = vrot.lane.b32.xlu0 %v729, 34
        %v1107 = vpop.permute.xlu0 %1106
        %1108 = vrot.lane.b32.xlu0 %v738, 34
        %v1109 = vpop.permute.xlu0 %1108
        %1110 = vrot.lane.b32.xlu0 %v692, 34
        %v1111 = vpop.permute.xlu0 %1110
        %1112 = vrot.lane.b32.xlu0 %v693, 34
        %v1113 = vpop.permute.xlu0 %1112
        %vm1114 = vcmp.lt.s32.totalorder %v434, 34
        %v1115 = vsel %vm1114, %v1111, %v1113
        %v1116 = vsel %vm1114, %v1109, %v1111
        %v1117 = vsel %vm1114, %v1107, %v1109
        %v1118 = vsel %vm1114, %v1113, %v1107
        %s1119 = scalar_lea.vmem [#allocation6], 32
        %v1120 = vld [vmem:[%s1119] ss:$8 sm:$0xf]
        %v1125 = vcombine.low %v1118, %v1117
        %v1126 = vcombine.low %v1116, %v1115
        %v1128 = vunpack.c.l.s4 1966171168
        %v1129 = vunpack.c.0.s8 %v1128
        %v1130 = vlaneseq
        %v1131 = vshrl.u32 %v1130, 7
        %v1132 = vsub.s32 %v1129, %v1131
        %v1133 = vrot.slane %v1125, %v1132
        %v1135 = vunpack.c.l.s4 1966171168
        %v1136 = vunpack.c.0.s8 %v1135
        %v1137 = vlaneseq
        %v1138 = vshrl.u32 %v1137, 7
        %v1139 = vsub.s32 %v1136, %v1138
        %v1140 = vrot.slane %v1126, %v1139
        %v1141 = vcombine.low %v1133, %v1140
        %v1143 = vunpack.c.l.s4 1966171168
        %v1144 = vunpack.c.0.s8 %v1143
        %v1145 = vlaneseq
        %v1146 = vshrl.u32 %v1145, 7
        %v1147 = vsub.s32 %v1144, %v1146
        %v1148 = vrot.slane %v1141, %v1147
        %v1150 = vmul.f32 %v1120, %v1148
        %v1151 = vadd.f32 %v967, %v1150
        %1152 = vrot.lane.b32.xlu0 %v729, 33
        %v1153 = vpop.permute.xlu0 %1152
        %1154 = vrot.lane.b32.xlu0 %v738, 33
        %v1155 = vpop.permute.xlu0 %1154
        %1156 = vrot.lane.b32.xlu0 %v692, 33
        %v1157 = vpop.permute.xlu0 %1156
        %1158 = vrot.lane.b32.xlu0 %v693, 33
        %v1159 = vpop.permute.xlu0 %1158
        %vm1160 = vcmp.lt.s32.totalorder %v434, 33
        %v1161 = vsel %vm1160, %v1157, %v1159
        %v1162 = vsel %vm1160, %v1155, %v1157
        %v1163 = vsel %vm1160, %v1153, %v1155
        %v1164 = vsel %vm1160, %v1159, %v1153
        %s1165 = scalar_lea.vmem [#allocation6], 33
        %v1166 = vld [vmem:[%s1165] ss:$8 sm:$0xf]
        %v1171 = vcombine.low %v1164, %v1163
        %v1172 = vcombine.low %v1162, %v1161
        %v1174 = vunpack.c.l.s4 1966171168
        %v1175 = vunpack.c.0.s8 %v1174
        %v1176 = vlaneseq
        %v1177 = vshrl.u32 %v1176, 7
        %v1178 = vsub.s32 %v1175, %v1177
        %v1179 = vrot.slane %v1171, %v1178
        %v1181 = vunpack.c.l.s4 1966171168
        %v1182 = vunpack.c.0.s8 %v1181
        %v1183 = vlaneseq
        %v1184 = vshrl.u32 %v1183, 7
        %v1185 = vsub.s32 %v1182, %v1184
        %v1186 = vrot.slane %v1172, %v1185
        %v1187 = vcombine.low %v1179, %v1186
        %v1189 = vunpack.c.l.s4 1966171168
        %v1190 = vunpack.c.0.s8 %v1189
        %v1191 = vlaneseq
        %v1192 = vshrl.u32 %v1191, 7
        %v1193 = vsub.s32 %v1190, %v1192
        %v1194 = vrot.slane %v1187, %v1193
        %v1196 = vmul.f32 %v1166, %v1194
        %v1197 = vadd.f32 %v1013, %v1196
        %1198 = vrot.lane.b32.xlu0 %v729, 32
        %v1199 = vpop.permute.xlu0 %1198
        %1200 = vrot.lane.b32.xlu0 %v738, 32
        %v1201 = vpop.permute.xlu0 %1200
        %1202 = vrot.lane.b32.xlu0 %v692, 32
        %v1203 = vpop.permute.xlu0 %1202
        %1204 = vrot.lane.b32.xlu0 %v693, 32
        %v1205 = vpop.permute.xlu0 %1204
        %vm1206 = vcmp.lt.s32.totalorder %v434, 32
        %v1207 = vsel %vm1206, %v1203, %v1205
        %v1208 = vsel %vm1206, %v1201, %v1203
        %v1209 = vsel %vm1206, %v1199, %v1201
        %v1210 = vsel %vm1206, %v1205, %v1199
        %s1211 = scalar_lea.vmem [#allocation6], 34
        %v1212 = vld [vmem:[%s1211] ss:$8 sm:$0xf]
        %v1217 = vcombine.low %v1210, %v1209
        %v1218 = vcombine.low %v1208, %v1207
        %v1220 = vunpack.c.l.s4 1966171168
        %v1221 = vunpack.c.0.s8 %v1220
        %v1222 = vlaneseq
        %v1223 = vshrl.u32 %v1222, 7
        %v1224 = vsub.s32 %v1221, %v1223
        %v1225 = vrot.slane %v1217, %v1224
        %v1227 = vunpack.c.l.s4 1966171168
        %v1228 = vunpack.c.0.s8 %v1227
        %v1229 = vlaneseq
        %v1230 = vshrl.u32 %v1229, 7
        %v1231 = vsub.s32 %v1228, %v1230
        %v1232 = vrot.slane %v1218, %v1231
        %v1233 = vcombine.low %v1225, %v1232
        %v1235 = vunpack.c.l.s4 1966171168
        %v1236 = vunpack.c.0.s8 %v1235
        %v1237 = vlaneseq
        %v1238 = vshrl.u32 %v1237, 7
        %v1239 = vsub.s32 %v1236, %v1238
        %v1240 = vrot.slane %v1233, %v1239
        %v1242 = vmul.f32 %v1212, %v1240
        %v1243 = vadd.f32 %v1059, %v1242
        %1244 = vrot.lane.b32.xlu0 %v729, 31
        %v1245 = vpop.permute.xlu0 %1244
        %1246 = vrot.lane.b32.xlu0 %v738, 31
        %v1247 = vpop.permute.xlu0 %1246
        %1248 = vrot.lane.b32.xlu0 %v692, 31
        %v1249 = vpop.permute.xlu0 %1248
        %1250 = vrot.lane.b32.xlu0 %v693, 31
        %v1251 = vpop.permute.xlu0 %1250
        %vm1252 = vcmp.lt.s32.totalorder %v434, 31
        %v1253 = vsel %vm1252, %v1249, %v1251
        %v1254 = vsel %vm1252, %v1247, %v1249
        %v1255 = vsel %vm1252, %v1245, %v1247
        %v1256 = vsel %vm1252, %v1251, %v1245
        %s1257 = scalar_lea.vmem [#allocation6], 35
        %v1258 = vld [vmem:[%s1257] ss:$8 sm:$0xf]
        %v1263 = vcombine.low %v1256, %v1255
        %v1264 = vcombine.low %v1254, %v1253
        %v1266 = vunpack.c.l.s4 1966171168
        %v1267 = vunpack.c.0.s8 %v1266
        %v1268 = vlaneseq
        %v1269 = vshrl.u32 %v1268, 7
        %v1270 = vsub.s32 %v1267, %v1269
        %v1271 = vrot.slane %v1263, %v1270
        %v1273 = vunpack.c.l.s4 1966171168
        %v1274 = vunpack.c.0.s8 %v1273
        %v1275 = vlaneseq
        %v1276 = vshrl.u32 %v1275, 7
        %v1277 = vsub.s32 %v1274, %v1276
        %v1278 = vrot.slane %v1264, %v1277
        %v1279 = vcombine.low %v1271, %v1278
        %v1281 = vunpack.c.l.s4 1966171168
        %v1282 = vunpack.c.0.s8 %v1281
        %v1283 = vlaneseq
        %v1284 = vshrl.u32 %v1283, 7
        %v1285 = vsub.s32 %v1282, %v1284
        %v1286 = vrot.slane %v1279, %v1285
        %v1288 = vmul.f32 %v1258, %v1286
        %v1289 = vadd.f32 %v1105, %v1288
        %1290 = vrot.lane.b32.xlu0 %v729, 30
        %v1291 = vpop.permute.xlu0 %1290
        %1292 = vrot.lane.b32.xlu0 %v738, 30
        %v1293 = vpop.permute.xlu0 %1292
        %1294 = vrot.lane.b32.xlu0 %v692, 30
        %v1295 = vpop.permute.xlu0 %1294
        %1296 = vrot.lane.b32.xlu0 %v693, 30
        %v1297 = vpop.permute.xlu0 %1296
        %vm1298 = vcmp.lt.s32.totalorder %v434, 30
        %v1299 = vsel %vm1298, %v1295, %v1297
        %v1300 = vsel %vm1298, %v1293, %v1295
        %v1301 = vsel %vm1298, %v1291, %v1293
        %v1302 = vsel %vm1298, %v1297, %v1291
        %s1303 = scalar_lea.vmem [#allocation6], 36
        %v1304 = vld [vmem:[%s1303] ss:$8 sm:$0xf]
        %v1309 = vcombine.low %v1302, %v1301
        %v1310 = vcombine.low %v1300, %v1299
        %v1312 = vunpack.c.l.s4 1966171168
        %v1313 = vunpack.c.0.s8 %v1312
        %v1314 = vlaneseq
        %v1315 = vshrl.u32 %v1314, 7
        %v1316 = vsub.s32 %v1313, %v1315
        %v1317 = vrot.slane %v1309, %v1316
        %v1319 = vunpack.c.l.s4 1966171168
        %v1320 = vunpack.c.0.s8 %v1319
        %v1321 = vlaneseq
        %v1322 = vshrl.u32 %v1321, 7
        %v1323 = vsub.s32 %v1320, %v1322
        %v1324 = vrot.slane %v1310, %v1323
        %v1325 = vcombine.low %v1317, %v1324
        %v1327 = vunpack.c.l.s4 1966171168
        %v1328 = vunpack.c.0.s8 %v1327
        %v1329 = vlaneseq
        %v1330 = vshrl.u32 %v1329, 7
        %v1331 = vsub.s32 %v1328, %v1330
        %v1332 = vrot.slane %v1325, %v1331
        %v1334 = vmul.f32 %v1304, %v1332
        %v1335 = vadd.f32 %v1151, %v1334
        %1336 = vrot.lane.b32.xlu0 %v729, 29
        %v1337 = vpop.permute.xlu0 %1336
        %1338 = vrot.lane.b32.xlu0 %v738, 29
        %v1339 = vpop.permute.xlu0 %1338
        %1340 = vrot.lane.b32.xlu0 %v692, 29
        %v1341 = vpop.permute.xlu0 %1340
        %1342 = vrot.lane.b32.xlu0 %v693, 29
        %v1343 = vpop.permute.xlu0 %1342
        %vm1344 = vcmp.lt.s32.totalorder %v434, 29
        %v1345 = vsel %vm1344, %v1341, %v1343
        %v1346 = vsel %vm1344, %v1339, %v1341
        %v1347 = vsel %vm1344, %v1337, %v1339
        %v1348 = vsel %vm1344, %v1343, %v1337
        %s1349 = scalar_lea.vmem [#allocation6], 37
        %v1350 = vld [vmem:[%s1349] ss:$8 sm:$0xf]
        %v1355 = vcombine.low %v1348, %v1347
        %v1356 = vcombine.low %v1346, %v1345
        %v1358 = vunpack.c.l.s4 1966171168
        %v1359 = vunpack.c.0.s8 %v1358
        %v1360 = vlaneseq
        %v1361 = vshrl.u32 %v1360, 7
        %v1362 = vsub.s32 %v1359, %v1361
        %v1363 = vrot.slane %v1355, %v1362
        %v1365 = vunpack.c.l.s4 1966171168
        %v1366 = vunpack.c.0.s8 %v1365
        %v1367 = vlaneseq
        %v1368 = vshrl.u32 %v1367, 7
        %v1369 = vsub.s32 %v1366, %v1368
        %v1370 = vrot.slane %v1356, %v1369
        %v1371 = vcombine.low %v1363, %v1370
        %v1373 = vunpack.c.l.s4 1966171168
        %v1374 = vunpack.c.0.s8 %v1373
        %v1375 = vlaneseq
        %v1376 = vshrl.u32 %v1375, 7
        %v1377 = vsub.s32 %v1374, %v1376
        %v1378 = vrot.slane %v1371, %v1377
        %v1380 = vmul.f32 %v1350, %v1378
        %v1381 = vadd.f32 %v1197, %v1380
        %1382 = vrot.lane.b32.xlu0 %v729, 19
        %v1383 = vpop.permute.xlu0 %1382
        %1384 = vrot.lane.b32.xlu0 %v738, 19
        %v1385 = vpop.permute.xlu0 %1384
        %1386 = vrot.lane.b32.xlu0 %v692, 19
        %v1387 = vpop.permute.xlu0 %1386
        %1388 = vrot.lane.b32.xlu0 %v693, 19
        %v1389 = vpop.permute.xlu0 %1388
        %vm1390 = vcmp.lt.s32.totalorder %v434, 19
        %v1391 = vsel %vm1390, %v1387, %v1389
        %v1392 = vsel %vm1390, %v1385, %v1387
        %v1393 = vsel %vm1390, %v1383, %v1385
        %v1394 = vsel %vm1390, %v1389, %v1383
        %s1395 = scalar_lea.vmem [#allocation6], 38
        %v1396 = vld [vmem:[%s1395] ss:$8 sm:$0xf]
        %v1401 = vcombine.low %v1394, %v1393
        %v1402 = vcombine.low %v1392, %v1391
        %v1404 = vunpack.c.l.s4 1966171168
        %v1405 = vunpack.c.0.s8 %v1404
        %v1406 = vlaneseq
        %v1407 = vshrl.u32 %v1406, 7
        %v1408 = vsub.s32 %v1405, %v1407
        %v1409 = vrot.slane %v1401, %v1408
        %v1411 = vunpack.c.l.s4 1966171168
        %v1412 = vunpack.c.0.s8 %v1411
        %v1413 = vlaneseq
        %v1414 = vshrl.u32 %v1413, 7
        %v1415 = vsub.s32 %v1412, %v1414
        %v1416 = vrot.slane %v1402, %v1415
        %v1417 = vcombine.low %v1409, %v1416
        %v1419 = vunpack.c.l.s4 1966171168
        %v1420 = vunpack.c.0.s8 %v1419
        %v1421 = vlaneseq
        %v1422 = vshrl.u32 %v1421, 7
        %v1423 = vsub.s32 %v1420, %v1422
        %v1424 = vrot.slane %v1417, %v1423
        %v1426 = vmul.f32 %v1396, %v1424
        %v1427 = vadd.f32 %v1243, %v1426
        %1428 = vrot.lane.b32.xlu0 %v729, 18
        %v1429 = vpop.permute.xlu0 %1428
        %1430 = vrot.lane.b32.xlu0 %v738, 18
        %v1431 = vpop.permute.xlu0 %1430
        %1432 = vrot.lane.b32.xlu0 %v692, 18
        %v1433 = vpop.permute.xlu0 %1432
        %1434 = vrot.lane.b32.xlu0 %v693, 18
        %v1435 = vpop.permute.xlu0 %1434
        %vm1436 = vcmp.lt.s32.totalorder %v434, 18
        %v1437 = vsel %vm1436, %v1433, %v1435
        %v1438 = vsel %vm1436, %v1431, %v1433
        %v1439 = vsel %vm1436, %v1429, %v1431
        %v1440 = vsel %vm1436, %v1435, %v1429
        %s1441 = scalar_lea.vmem [#allocation6], 39
        %v1442 = vld [vmem:[%s1441] ss:$8 sm:$0xf]
        %v1447 = vcombine.low %v1440, %v1439
        %v1448 = vcombine.low %v1438, %v1437
        %v1450 = vunpack.c.l.s4 1966171168
        %v1451 = vunpack.c.0.s8 %v1450
        %v1452 = vlaneseq
        %v1453 = vshrl.u32 %v1452, 7
        %v1454 = vsub.s32 %v1451, %v1453
        %v1455 = vrot.slane %v1447, %v1454
        %v1457 = vunpack.c.l.s4 1966171168
        %v1458 = vunpack.c.0.s8 %v1457
        %v1459 = vlaneseq
        %v1460 = vshrl.u32 %v1459, 7
        %v1461 = vsub.s32 %v1458, %v1460
        %v1462 = vrot.slane %v1448, %v1461
        %v1463 = vcombine.low %v1455, %v1462
        %v1465 = vunpack.c.l.s4 1966171168
        %v1466 = vunpack.c.0.s8 %v1465
        %v1467 = vlaneseq
        %v1468 = vshrl.u32 %v1467, 7
        %v1469 = vsub.s32 %v1466, %v1468
        %v1470 = vrot.slane %v1463, %v1469
        %v1472 = vmul.f32 %v1442, %v1470
        %v1473 = vadd.f32 %v1289, %v1472
        %1474 = vrot.lane.b32.xlu0 %v729, 17
        %v1475 = vpop.permute.xlu0 %1474
        %1476 = vrot.lane.b32.xlu0 %v738, 17
        %v1477 = vpop.permute.xlu0 %1476
        %1478 = vrot.lane.b32.xlu0 %v692, 17
        %v1479 = vpop.permute.xlu0 %1478
        %1480 = vrot.lane.b32.xlu0 %v693, 17
        %v1481 = vpop.permute.xlu0 %1480
        %vm1482 = vcmp.lt.s32.totalorder %v434, 17
        %v1483 = vsel %vm1482, %v1479, %v1481
        %v1484 = vsel %vm1482, %v1477, %v1479
        %v1485 = vsel %vm1482, %v1475, %v1477
        %v1486 = vsel %vm1482, %v1481, %v1475
        %s1487 = scalar_lea.vmem [#allocation6], 64
        %v1488 = vld [vmem:[%s1487] ss:$8 sm:$0xf]
        %v1493 = vcombine.low %v1486, %v1485
        %v1494 = vcombine.low %v1484, %v1483
        %v1496 = vunpack.c.l.s4 1966171168
        %v1497 = vunpack.c.0.s8 %v1496
        %v1498 = vlaneseq
        %v1499 = vshrl.u32 %v1498, 7
        %v1500 = vsub.s32 %v1497, %v1499
        %v1501 = vrot.slane %v1493, %v1500
        %v1503 = vunpack.c.l.s4 1966171168
        %v1504 = vunpack.c.0.s8 %v1503
        %v1505 = vlaneseq
        %v1506 = vshrl.u32 %v1505, 7
        %v1507 = vsub.s32 %v1504, %v1506
        %v1508 = vrot.slane %v1494, %v1507
        %v1509 = vcombine.low %v1501, %v1508
        %v1511 = vunpack.c.l.s4 1966171168
        %v1512 = vunpack.c.0.s8 %v1511
        %v1513 = vlaneseq
        %v1514 = vshrl.u32 %v1513, 7
        %v1515 = vsub.s32 %v1512, %v1514
        %v1516 = vrot.slane %v1509, %v1515
        %v1518 = vmul.f32 %v1488, %v1516
        %v1519 = vadd.f32 %v1335, %v1518
        %1520 = vrot.lane.b32.xlu0 %v729, 16
        %v1521 = vpop.permute.xlu0 %1520
        %1522 = vrot.lane.b32.xlu0 %v738, 16
        %v1523 = vpop.permute.xlu0 %1522
        %1524 = vrot.lane.b32.xlu0 %v692, 16
        %v1525 = vpop.permute.xlu0 %1524
        %1526 = vrot.lane.b32.xlu0 %v693, 16
        %v1527 = vpop.permute.xlu0 %1526
        %vm1528 = vcmp.lt.s32.totalorder %v434, 16
        %v1529 = vsel %vm1528, %v1525, %v1527
        %v1530 = vsel %vm1528, %v1523, %v1525
        %v1531 = vsel %vm1528, %v1521, %v1523
        %v1532 = vsel %vm1528, %v1527, %v1521
        %s1533 = scalar_lea.vmem [#allocation6], 65
        %v1534 = vld [vmem:[%s1533] ss:$8 sm:$0xf]
        %v1539 = vcombine.low %v1532, %v1531
        %v1540 = vcombine.low %v1530, %v1529
        %v1542 = vunpack.c.l.s4 1966171168
        %v1543 = vunpack.c.0.s8 %v1542
        %v1544 = vlaneseq
        %v1545 = vshrl.u32 %v1544, 7
        %v1546 = vsub.s32 %v1543, %v1545
        %v1547 = vrot.slane %v1539, %v1546
        %v1549 = vunpack.c.l.s4 1966171168
        %v1550 = vunpack.c.0.s8 %v1549
        %v1551 = vlaneseq
        %v1552 = vshrl.u32 %v1551, 7
        %v1553 = vsub.s32 %v1550, %v1552
        %v1554 = vrot.slane %v1540, %v1553
        %v1555 = vcombine.low %v1547, %v1554
        %v1557 = vunpack.c.l.s4 1966171168
        %v1558 = vunpack.c.0.s8 %v1557
        %v1559 = vlaneseq
        %v1560 = vshrl.u32 %v1559, 7
        %v1561 = vsub.s32 %v1558, %v1560
        %v1562 = vrot.slane %v1555, %v1561
        %v1564 = vmul.f32 %v1534, %v1562
        %v1565 = vadd.f32 %v1381, %v1564
        %1566 = vrot.lane.b32.xlu0 %v729, 15
        %v1567 = vpop.permute.xlu0 %1566
        %1568 = vrot.lane.b32.xlu0 %v738, 15
        %v1569 = vpop.permute.xlu0 %1568
        %1570 = vrot.lane.b32.xlu0 %v692, 15
        %v1571 = vpop.permute.xlu0 %1570
        %1572 = vrot.lane.b32.xlu0 %v693, 15
        %v1573 = vpop.permute.xlu0 %1572
        %vm1574 = vcmp.lt.s32.totalorder %v434, 15
        %v1575 = vsel %vm1574, %v1571, %v1573
        %v1576 = vsel %vm1574, %v1569, %v1571
        %v1577 = vsel %vm1574, %v1567, %v1569
        %v1578 = vsel %vm1574, %v1573, %v1567
        %s1579 = scalar_lea.vmem [#allocation6], 66
        %v1580 = vld [vmem:[%s1579] ss:$8 sm:$0xf]
        %v1585 = vcombine.low %v1578, %v1577
        %v1586 = vcombine.low %v1576, %v1575
        %v1588 = vunpack.c.l.s4 1966171168
        %v1589 = vunpack.c.0.s8 %v1588
        %v1590 = vlaneseq
        %v1591 = vshrl.u32 %v1590, 7
        %v1592 = vsub.s32 %v1589, %v1591
        %v1593 = vrot.slane %v1585, %v1592
        %v1595 = vunpack.c.l.s4 1966171168
        %v1596 = vunpack.c.0.s8 %v1595
        %v1597 = vlaneseq
        %v1598 = vshrl.u32 %v1597, 7
        %v1599 = vsub.s32 %v1596, %v1598
        %v1600 = vrot.slane %v1586, %v1599
        %v1601 = vcombine.low %v1593, %v1600
        %v1603 = vunpack.c.l.s4 1966171168
        %v1604 = vunpack.c.0.s8 %v1603
        %v1605 = vlaneseq
        %v1606 = vshrl.u32 %v1605, 7
        %v1607 = vsub.s32 %v1604, %v1606
        %v1608 = vrot.slane %v1601, %v1607
        %v1610 = vmul.f32 %v1580, %v1608
        %v1611 = vadd.f32 %v1427, %v1610
        %1612 = vrot.lane.b32.xlu0 %v729, 14
        %v1613 = vpop.permute.xlu0 %1612
        %1614 = vrot.lane.b32.xlu0 %v738, 14
        %v1615 = vpop.permute.xlu0 %1614
        %1616 = vrot.lane.b32.xlu0 %v692, 14
        %v1617 = vpop.permute.xlu0 %1616
        %1618 = vrot.lane.b32.xlu0 %v693, 14
        %v1619 = vpop.permute.xlu0 %1618
        %vm1620 = vcmp.lt.s32.totalorder %v434, 14
        %v1621 = vsel %vm1620, %v1617, %v1619
        %v1622 = vsel %vm1620, %v1615, %v1617
        %v1623 = vsel %vm1620, %v1613, %v1615
        %v1624 = vsel %vm1620, %v1619, %v1613
        %s1625 = scalar_lea.vmem [#allocation6], 67
        %v1626 = vld [vmem:[%s1625] ss:$8 sm:$0xf]
        %v1631 = vcombine.low %v1624, %v1623
        %v1632 = vcombine.low %v1622, %v1621
        %v1634 = vunpack.c.l.s4 1966171168
        %v1635 = vunpack.c.0.s8 %v1634
        %v1636 = vlaneseq
        %v1637 = vshrl.u32 %v1636, 7
        %v1638 = vsub.s32 %v1635, %v1637
        %v1639 = vrot.slane %v1631, %v1638
        %v1641 = vunpack.c.l.s4 1966171168
        %v1642 = vunpack.c.0.s8 %v1641
        %v1643 = vlaneseq
        %v1644 = vshrl.u32 %v1643, 7
        %v1645 = vsub.s32 %v1642, %v1644
        %v1646 = vrot.slane %v1632, %v1645
        %v1647 = vcombine.low %v1639, %v1646
        %v1649 = vunpack.c.l.s4 1966171168
        %v1650 = vunpack.c.0.s8 %v1649
        %v1651 = vlaneseq
        %v1652 = vshrl.u32 %v1651, 7
        %v1653 = vsub.s32 %v1650, %v1652
        %v1654 = vrot.slane %v1647, %v1653
        %v1656 = vmul.f32 %v1626, %v1654
        %v1657 = vadd.f32 %v1473, %v1656
        %1658 = vrot.lane.b32.xlu0 %v729, 13
        %v1659 = vpop.permute.xlu0 %1658
        %1660 = vrot.lane.b32.xlu0 %v738, 13
        %v1661 = vpop.permute.xlu0 %1660
        %1662 = vrot.lane.b32.xlu0 %v692, 13
        %v1663 = vpop.permute.xlu0 %1662
        %1664 = vrot.lane.b32.xlu0 %v693, 13
        %v1665 = vpop.permute.xlu0 %1664
        %vm1666 = vcmp.lt.s32.totalorder %v434, 13
        %v1667 = vsel %vm1666, %v1663, %v1665
        %v1668 = vsel %vm1666, %v1661, %v1663
        %v1669 = vsel %vm1666, %v1659, %v1661
        %v1670 = vsel %vm1666, %v1665, %v1659
        %s1671 = scalar_lea.vmem [#allocation6], 68
        %v1672 = vld [vmem:[%s1671] ss:$8 sm:$0xf]
        %v1677 = vcombine.low %v1670, %v1669
        %v1678 = vcombine.low %v1668, %v1667
        %v1680 = vunpack.c.l.s4 1966171168
        %v1681 = vunpack.c.0.s8 %v1680
        %v1682 = vlaneseq
        %v1683 = vshrl.u32 %v1682, 7
        %v1684 = vsub.s32 %v1681, %v1683
        %v1685 = vrot.slane %v1677, %v1684
        %v1687 = vunpack.c.l.s4 1966171168
        %v1688 = vunpack.c.0.s8 %v1687
        %v1689 = vlaneseq
        %v1690 = vshrl.u32 %v1689, 7
        %v1691 = vsub.s32 %v1688, %v1690
        %v1692 = vrot.slane %v1678, %v1691
        %v1693 = vcombine.low %v1685, %v1692
        %v1695 = vunpack.c.l.s4 1966171168
        %v1696 = vunpack.c.0.s8 %v1695
        %v1697 = vlaneseq
        %v1698 = vshrl.u32 %v1697, 7
        %v1699 = vsub.s32 %v1696, %v1698
        %v1700 = vrot.slane %v1693, %v1699
        %v1702 = vmul.f32 %v1672, %v1700
        %v1703 = vadd.f32 %v1519, %v1702
        %1704 = vrot.lane.b32.xlu0 %v729, 3
        %v1705 = vpop.permute.xlu0 %1704
        %1706 = vrot.lane.b32.xlu0 %v738, 3
        %v1707 = vpop.permute.xlu0 %1706
        %1708 = vrot.lane.b32.xlu0 %v692, 3
        %v1709 = vpop.permute.xlu0 %1708
        %1710 = vrot.lane.b32.xlu0 %v693, 3
        %v1711 = vpop.permute.xlu0 %1710
        %vm1712 = vcmp.lt.s32.totalorder %v434, 3
        %v1713 = vsel %vm1712, %v1709, %v1711
        %v1714 = vsel %vm1712, %v1707, %v1709
        %v1715 = vsel %vm1712, %v1705, %v1707
        %v1716 = vsel %vm1712, %v1711, %v1705
        %s1717 = scalar_lea.vmem [#allocation6], 69
        %v1718 = vld [vmem:[%s1717] ss:$8 sm:$0xf]
        %v1723 = vcombine.low %v1716, %v1715
        %v1724 = vcombine.low %v1714, %v1713
        %v1726 = vunpack.c.l.s4 1966171168
        %v1727 = vunpack.c.0.s8 %v1726
        %v1728 = vlaneseq
        %v1729 = vshrl.u32 %v1728, 7
        %v1730 = vsub.s32 %v1727, %v1729
        %v1731 = vrot.slane %v1723, %v1730
        %v1733 = vunpack.c.l.s4 1966171168
        %v1734 = vunpack.c.0.s8 %v1733
        %v1735 = vlaneseq
        %v1736 = vshrl.u32 %v1735, 7
        %v1737 = vsub.s32 %v1734, %v1736
        %v1738 = vrot.slane %v1724, %v1737
        %v1739 = vcombine.low %v1731, %v1738
        %v1741 = vunpack.c.l.s4 1966171168
        %v1742 = vunpack.c.0.s8 %v1741
        %v1743 = vlaneseq
        %v1744 = vshrl.u32 %v1743, 7
        %v1745 = vsub.s32 %v1742, %v1744
        %v1746 = vrot.slane %v1739, %v1745
        %v1748 = vmul.f32 %v1718, %v1746
        %v1749 = vadd.f32 %v1565, %v1748
        %1750 = vrot.lane.b32.xlu0 %v729, 2
        %v1751 = vpop.permute.xlu0 %1750
        %1752 = vrot.lane.b32.xlu0 %v738, 2
        %v1753 = vpop.permute.xlu0 %1752
        %1754 = vrot.lane.b32.xlu0 %v692, 2
        %v1755 = vpop.permute.xlu0 %1754
        %1756 = vrot.lane.b32.xlu0 %v693, 2
        %v1757 = vpop.permute.xlu0 %1756
        %vm1758 = vcmp.lt.s32.totalorder %v434, 2
        %v1759 = vsel %vm1758, %v1755, %v1757
        %v1760 = vsel %vm1758, %v1753, %v1755
        %v1761 = vsel %vm1758, %v1751, %v1753
        %v1762 = vsel %vm1758, %v1757, %v1751
        %s1763 = scalar_lea.vmem [#allocation6], 70
        %v1764 = vld [vmem:[%s1763] ss:$8 sm:$0xf]
        %v1769 = vcombine.low %v1762, %v1761
        %v1770 = vcombine.low %v1760, %v1759
        %v1772 = vunpack.c.l.s4 1966171168
        %v1773 = vunpack.c.0.s8 %v1772
        %v1774 = vlaneseq
        %v1775 = vshrl.u32 %v1774, 7
        %v1776 = vsub.s32 %v1773, %v1775
        %v1777 = vrot.slane %v1769, %v1776
        %v1779 = vunpack.c.l.s4 1966171168
        %v1780 = vunpack.c.0.s8 %v1779
        %v1781 = vlaneseq
        %v1782 = vshrl.u32 %v1781, 7
        %v1783 = vsub.s32 %v1780, %v1782
        %v1784 = vrot.slane %v1770, %v1783
        %v1785 = vcombine.low %v1777, %v1784
        %v1787 = vunpack.c.l.s4 1966171168
        %v1788 = vunpack.c.0.s8 %v1787
        %v1789 = vlaneseq
        %v1790 = vshrl.u32 %v1789, 7
        %v1791 = vsub.s32 %v1788, %v1790
        %v1792 = vrot.slane %v1785, %v1791
        %v1794 = vmul.f32 %v1764, %v1792
        %v1795 = vadd.f32 %v1611, %v1794
        %1796 = vrot.lane.b32.xlu0 %v729, 1
        %v1797 = vpop.permute.xlu0 %1796
        %1798 = vrot.lane.b32.xlu0 %v738, 1
        %v1799 = vpop.permute.xlu0 %1798
        %1800 = vrot.lane.b32.xlu0 %v692, 1
        %v1801 = vpop.permute.xlu0 %1800
        %1802 = vrot.lane.b32.xlu0 %v693, 1
        %v1803 = vpop.permute.xlu0 %1802
        %vm1804 = vcmp.lt.s32.totalorder %v434, 1
        %v1805 = vsel %vm1804, %v1801, %v1803
        %v1806 = vsel %vm1804, %v1799, %v1801
        %v1807 = vsel %vm1804, %v1797, %v1799
        %v1808 = vsel %vm1804, %v1803, %v1797
        %s1809 = scalar_lea.vmem [#allocation6], 71
        %v1810 = vld [vmem:[%s1809] ss:$8 sm:$0xf]
        %v1815 = vcombine.low %v1808, %v1807
        %v1816 = vcombine.low %v1806, %v1805
        %v1818 = vunpack.c.l.s4 1966171168
        %v1819 = vunpack.c.0.s8 %v1818
        %v1820 = vlaneseq
        %v1821 = vshrl.u32 %v1820, 7
        %v1822 = vsub.s32 %v1819, %v1821
        %v1823 = vrot.slane %v1815, %v1822
        %v1825 = vunpack.c.l.s4 1966171168
        %v1826 = vunpack.c.0.s8 %v1825
        %v1827 = vlaneseq
        %v1828 = vshrl.u32 %v1827, 7
        %v1829 = vsub.s32 %v1826, %v1828
        %v1830 = vrot.slane %v1816, %v1829
        %v1831 = vcombine.low %v1823, %v1830
        %v1833 = vunpack.c.l.s4 1966171168
        %v1834 = vunpack.c.0.s8 %v1833
        %v1835 = vlaneseq
        %v1836 = vshrl.u32 %v1835, 7
        %v1837 = vsub.s32 %v1834, %v1836
        %v1838 = vrot.slane %v1831, %v1837
        %v1840 = vmul.f32 %v1810, %v1838
        %v1841 = vadd.f32 %v1657, %v1840
        %s1842 = scalar_lea.vmem [#allocation6], 96
        %v1843 = vld [vmem:[%s1842] ss:$8 sm:$0xf]
        %v1848 = vcombine.low %v729, %v738
        %v1849 = vcombine.low %v692, %v693
        %v1851 = vunpack.c.l.s4 1966171168
        %v1852 = vunpack.c.0.s8 %v1851
        %v1853 = vlaneseq
        %v1854 = vshrl.u32 %v1853, 7
        %v1855 = vsub.s32 %v1852, %v1854
        %v1856 = vrot.slane %v1848, %v1855
        %v1858 = vunpack.c.l.s4 1966171168
        %v1859 = vunpack.c.0.s8 %v1858
        %v1860 = vlaneseq
        %v1861 = vshrl.u32 %v1860, 7
        %v1862 = vsub.s32 %v1859, %v1861
        %v1863 = vrot.slane %v1849, %v1862
        %v1864 = vcombine.low %v1856, %v1863
        %v1866 = vunpack.c.l.s4 1966171168
        %v1867 = vunpack.c.0.s8 %v1866
        %v1868 = vlaneseq
        %v1869 = vshrl.u32 %v1868, 7
        %v1870 = vsub.s32 %v1867, %v1869
        %v1871 = vrot.slane %v1864, %v1870
        %v1873 = vmul.f32 %v1843, %v1871
        %v1874 = vadd.f32 %v1703, %v1873
        %1875 = vrot.lane.b32.xlu0 %v729, 127
        %v1876 = vpop.permute.xlu0 %1875
        %1877 = vrot.lane.b32.xlu0 %v738, 127
        %v1878 = vpop.permute.xlu0 %1877
        %1879 = vrot.lane.b32.xlu0 %v692, 127
        %v1880 = vpop.permute.xlu0 %1879
        %1881 = vrot.lane.b32.xlu0 %v693, 127
        %v1882 = vpop.permute.xlu0 %1881
        %vm1883 = vcmp.lt.s32.totalorder %v434, 127
        %v1884 = vsel %vm1883, %v1880, %v1882
        %v1885 = vsel %vm1883, %v1878, %v1880
        %v1886 = vsel %vm1883, %v1876, %v1878
        %v1887 = vsel %vm1883, %v1882, %v1876
        %s1888 = scalar_lea.vmem [#allocation6], 97
        %v1889 = vld [vmem:[%s1888] ss:$8 sm:$0xf]
        %v1894 = vcombine.low %v1886, %v1885
        %v1895 = vcombine.low %v1884, %v1887
        %v1897 = vunpack.c.l.s4 1966171168
        %v1898 = vunpack.c.0.s8 %v1897
        %v1899 = vlaneseq
        %v1900 = vshrl.u32 %v1899, 7
        %v1901 = vsub.s32 %v1898, %v1900
        %v1902 = vrot.slane %v1894, %v1901
        %v1904 = vunpack.c.l.s4 1966171168
        %v1905 = vunpack.c.0.s8 %v1904
        %v1906 = vlaneseq
        %v1907 = vshrl.u32 %v1906, 7
        %v1908 = vsub.s32 %v1905, %v1907
        %v1909 = vrot.slane %v1895, %v1908
        %v1910 = vcombine.low %v1902, %v1909
        %v1912 = vunpack.c.l.s4 1966171168
        %v1913 = vunpack.c.0.s8 %v1912
        %v1914 = vlaneseq
        %v1915 = vshrl.u32 %v1914, 7
        %v1916 = vsub.s32 %v1913, %v1915
        %v1917 = vrot.slane %v1910, %v1916
        %v1919 = vmul.f32 %v1889, %v1917
        %v1920 = vadd.f32 %v1749, %v1919
        %1921 = vrot.lane.b32.xlu0 %v729, 126
        %v1922 = vpop.permute.xlu0 %1921
        %1923 = vrot.lane.b32.xlu0 %v738, 126
        %v1924 = vpop.permute.xlu0 %1923
        %1925 = vrot.lane.b32.xlu0 %v692, 126
        %v1926 = vpop.permute.xlu0 %1925
        %1927 = vrot.lane.b32.xlu0 %v693, 126
        %v1928 = vpop.permute.xlu0 %1927
        %vm1929 = vcmp.lt.s32.totalorder %v434, 126
        %v1930 = vsel %vm1929, %v1926, %v1928
        %v1931 = vsel %vm1929, %v1924, %v1926
        %v1932 = vsel %vm1929, %v1922, %v1924
        %v1933 = vsel %vm1929, %v1928, %v1922
        %s1934 = scalar_lea.vmem [#allocation6], 98
        %v1935 = vld [vmem:[%s1934] ss:$8 sm:$0xf]
        %v1940 = vcombine.low %v1932, %v1931
        %v1941 = vcombine.low %v1930, %v1933
        %v1943 = vunpack.c.l.s4 1966171168
        %v1944 = vunpack.c.0.s8 %v1943
        %v1945 = vlaneseq
        %v1946 = vshrl.u32 %v1945, 7
        %v1947 = vsub.s32 %v1944, %v1946
        %v1948 = vrot.slane %v1940, %v1947
        %v1950 = vunpack.c.l.s4 1966171168
        %v1951 = vunpack.c.0.s8 %v1950
        %v1952 = vlaneseq
        %v1953 = vshrl.u32 %v1952, 7
        %v1954 = vsub.s32 %v1951, %v1953
        %v1955 = vrot.slane %v1941, %v1954
        %v1956 = vcombine.low %v1948, %v1955
        %v1958 = vunpack.c.l.s4 1966171168
        %v1959 = vunpack.c.0.s8 %v1958
        %v1960 = vlaneseq
        %v1961 = vshrl.u32 %v1960, 7
        %v1962 = vsub.s32 %v1959, %v1961
        %v1963 = vrot.slane %v1956, %v1962
        %v1965 = vmul.f32 %v1935, %v1963
        %v1966 = vadd.f32 %v1795, %v1965
        %1967 = vrot.lane.b32.xlu0 %v729, 125
        %v1968 = vpop.permute.xlu0 %1967
        %1969 = vrot.lane.b32.xlu0 %v738, 125
        %v1970 = vpop.permute.xlu0 %1969
        %1971 = vrot.lane.b32.xlu0 %v692, 125
        %v1972 = vpop.permute.xlu0 %1971
        %1973 = vrot.lane.b32.xlu0 %v693, 125
        %v1974 = vpop.permute.xlu0 %1973
        %vm1975 = vcmp.lt.s32.totalorder %v434, 125
        %v1976 = vsel %vm1975, %v1972, %v1974
        %v1977 = vsel %vm1975, %v1970, %v1972
        %v1978 = vsel %vm1975, %v1968, %v1970
        %v1979 = vsel %vm1975, %v1974, %v1968
        %s1980 = scalar_lea.vmem [#allocation6], 99
        %v1981 = vld [vmem:[%s1980] ss:$8 sm:$0xf]
        %v1986 = vcombine.low %v1978, %v1977
        %v1987 = vcombine.low %v1976, %v1979
        %v1989 = vunpack.c.l.s4 1966171168
        %v1990 = vunpack.c.0.s8 %v1989
        %v1991 = vlaneseq
        %v1992 = vshrl.u32 %v1991, 7
        %v1993 = vsub.s32 %v1990, %v1992
        %v1994 = vrot.slane %v1986, %v1993
        %v1996 = vunpack.c.l.s4 1966171168
        %v1997 = vunpack.c.0.s8 %v1996
        %v1998 = vlaneseq
        %v1999 = vshrl.u32 %v1998, 7
        %v2000 = vsub.s32 %v1997, %v1999
        %v2001 = vrot.slane %v1987, %v2000
        %v2002 = vcombine.low %v1994, %v2001
        %v2004 = vunpack.c.l.s4 1966171168
        %v2005 = vunpack.c.0.s8 %v2004
        %v2006 = vlaneseq
        %v2007 = vshrl.u32 %v2006, 7
        %v2008 = vsub.s32 %v2005, %v2007
        %v2009 = vrot.slane %v2002, %v2008
        %v2011 = vmul.f32 %v1981, %v2009
        %v2012 = vadd.f32 %v1841, %v2011
        %2013 = vrot.lane.b32.xlu0 %v729, 115
        %v2014 = vpop.permute.xlu0 %2013
        %2015 = vrot.lane.b32.xlu0 %v738, 115
        %v2016 = vpop.permute.xlu0 %2015
        %2017 = vrot.lane.b32.xlu0 %v692, 115
        %v2018 = vpop.permute.xlu0 %2017
        %2019 = vrot.lane.b32.xlu0 %v693, 115
        %v2020 = vpop.permute.xlu0 %2019
        %vm2021 = vcmp.lt.s32.totalorder %v434, 115
        %v2022 = vsel %vm2021, %v2018, %v2020
        %v2023 = vsel %vm2021, %v2016, %v2018
        %v2024 = vsel %vm2021, %v2014, %v2016
        %v2025 = vsel %vm2021, %v2020, %v2014
        %s2026 = scalar_lea.vmem [#allocation6], 100
        %v2027 = vld [vmem:[%s2026] ss:$8 sm:$0xf]
        %v2032 = vcombine.low %v2024, %v2023
        %v2033 = vcombine.low %v2022, %v2025
        %v2035 = vunpack.c.l.s4 1966171168
        %v2036 = vunpack.c.0.s8 %v2035
        %v2037 = vlaneseq
        %v2038 = vshrl.u32 %v2037, 7
        %v2039 = vsub.s32 %v2036, %v2038
        %v2040 = vrot.slane %v2032, %v2039
        %v2042 = vunpack.c.l.s4 1966171168
        %v2043 = vunpack.c.0.s8 %v2042
        %v2044 = vlaneseq
        %v2045 = vshrl.u32 %v2044, 7
        %v2046 = vsub.s32 %v2043, %v2045
        %v2047 = vrot.slane %v2033, %v2046
        %v2048 = vcombine.low %v2040, %v2047
        %v2050 = vunpack.c.l.s4 1966171168
        %v2051 = vunpack.c.0.s8 %v2050
        %v2052 = vlaneseq
        %v2053 = vshrl.u32 %v2052, 7
        %v2054 = vsub.s32 %v2051, %v2053
        %v2055 = vrot.slane %v2048, %v2054
        %v2057 = vmul.f32 %v2027, %v2055
        %v2058 = vadd.f32 %v1874, %v2057
        %2059 = vrot.lane.b32.xlu0 %v729, 114
        %v2060 = vpop.permute.xlu0 %2059
        %2061 = vrot.lane.b32.xlu0 %v738, 114
        %v2062 = vpop.permute.xlu0 %2061
        %2063 = vrot.lane.b32.xlu0 %v692, 114
        %v2064 = vpop.permute.xlu0 %2063
        %2065 = vrot.lane.b32.xlu0 %v693, 114
        %v2066 = vpop.permute.xlu0 %2065
        %vm2067 = vcmp.lt.s32.totalorder %v434, 114
        %v2068 = vsel %vm2067, %v2064, %v2066
        %v2069 = vsel %vm2067, %v2062, %v2064
        %v2070 = vsel %vm2067, %v2060, %v2062
        %v2071 = vsel %vm2067, %v2066, %v2060
        %s2072 = scalar_lea.vmem [#allocation6], 101
        %v2073 = vld [vmem:[%s2072] ss:$8 sm:$0xf]
        %v2078 = vcombine.low %v2070, %v2069
        %v2079 = vcombine.low %v2068, %v2071
        %v2081 = vunpack.c.l.s4 1966171168
        %v2082 = vunpack.c.0.s8 %v2081
        %v2083 = vlaneseq
        %v2084 = vshrl.u32 %v2083, 7
        %v2085 = vsub.s32 %v2082, %v2084
        %v2086 = vrot.slane %v2078, %v2085
        %v2088 = vunpack.c.l.s4 1966171168
        %v2089 = vunpack.c.0.s8 %v2088
        %v2090 = vlaneseq
        %v2091 = vshrl.u32 %v2090, 7
        %v2092 = vsub.s32 %v2089, %v2091
        %v2093 = vrot.slane %v2079, %v2092
        %v2094 = vcombine.low %v2086, %v2093
        %v2096 = vunpack.c.l.s4 1966171168
        %v2097 = vunpack.c.0.s8 %v2096
        %v2098 = vlaneseq
        %v2099 = vshrl.u32 %v2098, 7
        %v2100 = vsub.s32 %v2097, %v2099
        %v2101 = vrot.slane %v2094, %v2100
        %v2103 = vmul.f32 %v2073, %v2101
        %v2104 = vadd.f32 %v1920, %v2103
        %2105 = vrot.lane.b32.xlu0 %v729, 113
        %v2106 = vpop.permute.xlu0 %2105
        %2107 = vrot.lane.b32.xlu0 %v738, 113
        %v2108 = vpop.permute.xlu0 %2107
        %2109 = vrot.lane.b32.xlu0 %v692, 113
        %v2110 = vpop.permute.xlu0 %2109
        %2111 = vrot.lane.b32.xlu0 %v693, 113
        %v2112 = vpop.permute.xlu0 %2111
        %vm2113 = vcmp.lt.s32.totalorder %v434, 113
        %v2114 = vsel %vm2113, %v2110, %v2112
        %v2115 = vsel %vm2113, %v2108, %v2110
        %v2116 = vsel %vm2113, %v2106, %v2108
        %v2117 = vsel %vm2113, %v2112, %v2106
        %s2118 = scalar_lea.vmem [#allocation6], 102
        %v2119 = vld [vmem:[%s2118] ss:$8 sm:$0xf]
        %v2124 = vcombine.low %v2116, %v2115
        %v2125 = vcombine.low %v2114, %v2117
        %v2127 = vunpack.c.l.s4 1966171168
        %v2128 = vunpack.c.0.s8 %v2127
        %v2129 = vlaneseq
        %v2130 = vshrl.u32 %v2129, 7
        %v2131 = vsub.s32 %v2128, %v2130
        %v2132 = vrot.slane %v2124, %v2131
        %v2134 = vunpack.c.l.s4 1966171168
        %v2135 = vunpack.c.0.s8 %v2134
        %v2136 = vlaneseq
        %v2137 = vshrl.u32 %v2136, 7
        %v2138 = vsub.s32 %v2135, %v2137
        %v2139 = vrot.slane %v2125, %v2138
        %v2140 = vcombine.low %v2132, %v2139
        %v2142 = vunpack.c.l.s4 1966171168
        %v2143 = vunpack.c.0.s8 %v2142
        %v2144 = vlaneseq
        %v2145 = vshrl.u32 %v2144, 7
        %v2146 = vsub.s32 %v2143, %v2145
        %v2147 = vrot.slane %v2140, %v2146
        %v2149 = vmul.f32 %v2119, %v2147
        %v2150 = vadd.f32 %v1966, %v2149
        %2151 = vrot.lane.b32.xlu0 %v729, 112
        %v2152 = vpop.permute.xlu0 %2151
        %2153 = vrot.lane.b32.xlu0 %v738, 112
        %v2154 = vpop.permute.xlu0 %2153
        %2155 = vrot.lane.b32.xlu0 %v692, 112
        %v2156 = vpop.permute.xlu0 %2155
        %2157 = vrot.lane.b32.xlu0 %v693, 112
        %v2158 = vpop.permute.xlu0 %2157
        %vm2159 = vcmp.lt.s32.totalorder %v434, 112
        %v2160 = vsel %vm2159, %v2156, %v2158
        %v2161 = vsel %vm2159, %v2154, %v2156
        %v2162 = vsel %vm2159, %v2152, %v2154
        %v2163 = vsel %vm2159, %v2158, %v2152
        %s2164 = scalar_lea.vmem [#allocation6], 103
        %v2165 = vld [vmem:[%s2164] ss:$8 sm:$0xf]
        %v2170 = vcombine.low %v2162, %v2161
        %v2171 = vcombine.low %v2160, %v2163
        %v2173 = vunpack.c.l.s4 1966171168
        %v2174 = vunpack.c.0.s8 %v2173
        %v2175 = vlaneseq
        %v2176 = vshrl.u32 %v2175, 7
        %v2177 = vsub.s32 %v2174, %v2176
        %v2178 = vrot.slane %v2170, %v2177
        %v2180 = vunpack.c.l.s4 1966171168
        %v2181 = vunpack.c.0.s8 %v2180
        %v2182 = vlaneseq
        %v2183 = vshrl.u32 %v2182, 7
        %v2184 = vsub.s32 %v2181, %v2183
        %v2185 = vrot.slane %v2171, %v2184
        %v2186 = vcombine.low %v2178, %v2185
        %v2188 = vunpack.c.l.s4 1966171168
        %v2189 = vunpack.c.0.s8 %v2188
        %v2190 = vlaneseq
        %v2191 = vshrl.u32 %v2190, 7
        %v2192 = vsub.s32 %v2189, %v2191
        %v2193 = vrot.slane %v2186, %v2192
        %v2195 = vmul.f32 %v2165, %v2193
        %v2196 = vadd.f32 %v2012, %v2195
        %2197 = vrot.lane.b32.xlu0 %v729, 111
        %v2198 = vpop.permute.xlu0 %2197
        %2199 = vrot.lane.b32.xlu0 %v738, 111
        %v2200 = vpop.permute.xlu0 %2199
        %2201 = vrot.lane.b32.xlu0 %v692, 111
        %v2202 = vpop.permute.xlu0 %2201
        %2203 = vrot.lane.b32.xlu0 %v693, 111
        %v2204 = vpop.permute.xlu0 %2203
        %vm2205 = vcmp.lt.s32.totalorder %v434, 111
        %v2206 = vsel %vm2205, %v2202, %v2204
        %v2207 = vsel %vm2205, %v2200, %v2202
        %v2208 = vsel %vm2205, %v2198, %v2200
        %v2209 = vsel %vm2205, %v2204, %v2198
        %s2210 = scalar_lea.vmem [#allocation6], 128
        %v2211 = vld [vmem:[%s2210] ss:$8 sm:$0xf]
        %v2216 = vcombine.low %v2208, %v2207
        %v2217 = vcombine.low %v2206, %v2209
        %v2219 = vunpack.c.l.s4 1966171168
        %v2220 = vunpack.c.0.s8 %v2219
        %v2221 = vlaneseq
        %v2222 = vshrl.u32 %v2221, 7
        %v2223 = vsub.s32 %v2220, %v2222
        %v2224 = vrot.slane %v2216, %v2223
        %v2226 = vunpack.c.l.s4 1966171168
        %v2227 = vunpack.c.0.s8 %v2226
        %v2228 = vlaneseq
        %v2229 = vshrl.u32 %v2228, 7
        %v2230 = vsub.s32 %v2227, %v2229
        %v2231 = vrot.slane %v2217, %v2230
        %v2232 = vcombine.low %v2224, %v2231
        %v2234 = vunpack.c.l.s4 1966171168
        %v2235 = vunpack.c.0.s8 %v2234
        %v2236 = vlaneseq
        %v2237 = vshrl.u32 %v2236, 7
        %v2238 = vsub.s32 %v2235, %v2237
        %v2239 = vrot.slane %v2232, %v2238
        %v2241 = vmul.f32 %v2211, %v2239
        %v2242 = vadd.f32 %v2058, %v2241
        %2243 = vrot.lane.b32.xlu0 %v729, 110
        %v2244 = vpop.permute.xlu0 %2243
        %2245 = vrot.lane.b32.xlu0 %v738, 110
        %v2246 = vpop.permute.xlu0 %2245
        %2247 = vrot.lane.b32.xlu0 %v692, 110
        %v2248 = vpop.permute.xlu0 %2247
        %2249 = vrot.lane.b32.xlu0 %v693, 110
        %v2250 = vpop.permute.xlu0 %2249
        %vm2251 = vcmp.lt.s32.totalorder %v434, 110
        %v2252 = vsel %vm2251, %v2248, %v2250
        %v2253 = vsel %vm2251, %v2246, %v2248
        %v2254 = vsel %vm2251, %v2244, %v2246
        %v2255 = vsel %vm2251, %v2250, %v2244
        %s2256 = scalar_lea.vmem [#allocation6], 129
        %v2257 = vld [vmem:[%s2256] ss:$8 sm:$0xf]
        %v2262 = vcombine.low %v2254, %v2253
        %v2263 = vcombine.low %v2252, %v2255
        %v2265 = vunpack.c.l.s4 1966171168
        %v2266 = vunpack.c.0.s8 %v2265
        %v2267 = vlaneseq
        %v2268 = vshrl.u32 %v2267, 7
        %v2269 = vsub.s32 %v2266, %v2268
        %v2270 = vrot.slane %v2262, %v2269
        %v2272 = vunpack.c.l.s4 1966171168
        %v2273 = vunpack.c.0.s8 %v2272
        %v2274 = vlaneseq
        %v2275 = vshrl.u32 %v2274, 7
        %v2276 = vsub.s32 %v2273, %v2275
        %v2277 = vrot.slane %v2263, %v2276
        %v2278 = vcombine.low %v2270, %v2277
        %v2280 = vunpack.c.l.s4 1966171168
        %v2281 = vunpack.c.0.s8 %v2280
        %v2282 = vlaneseq
        %v2283 = vshrl.u32 %v2282, 7
        %v2284 = vsub.s32 %v2281, %v2283
        %v2285 = vrot.slane %v2278, %v2284
        %v2287 = vmul.f32 %v2257, %v2285
        %v2288 = vadd.f32 %v2104, %v2287
        %2289 = vrot.lane.b32.xlu0 %v729, 109
        %v2290 = vpop.permute.xlu0 %2289
        %2291 = vrot.lane.b32.xlu0 %v738, 109
        %v2292 = vpop.permute.xlu0 %2291
        %2293 = vrot.lane.b32.xlu0 %v692, 109
        %v2294 = vpop.permute.xlu0 %2293
        %2295 = vrot.lane.b32.xlu0 %v693, 109
        %v2296 = vpop.permute.xlu0 %2295
        %vm2297 = vcmp.lt.s32.totalorder %v434, 109
        %v2298 = vsel %vm2297, %v2294, %v2296
        %v2299 = vsel %vm2297, %v2292, %v2294
        %v2300 = vsel %vm2297, %v2290, %v2292
        %v2301 = vsel %vm2297, %v2296, %v2290
        %s2302 = scalar_lea.vmem [#allocation6], 130
        %v2303 = vld [vmem:[%s2302] ss:$8 sm:$0xf]
        %v2308 = vcombine.low %v2300, %v2299
        %v2309 = vcombine.low %v2298, %v2301
        %v2311 = vunpack.c.l.s4 1966171168
        %v2312 = vunpack.c.0.s8 %v2311
        %v2313 = vlaneseq
        %v2314 = vshrl.u32 %v2313, 7
        %v2315 = vsub.s32 %v2312, %v2314
        %v2316 = vrot.slane %v2308, %v2315
        %v2318 = vunpack.c.l.s4 1966171168
        %v2319 = vunpack.c.0.s8 %v2318
        %v2320 = vlaneseq
        %v2321 = vshrl.u32 %v2320, 7
        %v2322 = vsub.s32 %v2319, %v2321
        %v2323 = vrot.slane %v2309, %v2322
        %v2324 = vcombine.low %v2316, %v2323
        %v2326 = vunpack.c.l.s4 1966171168
        %v2327 = vunpack.c.0.s8 %v2326
        %v2328 = vlaneseq
        %v2329 = vshrl.u32 %v2328, 7
        %v2330 = vsub.s32 %v2327, %v2329
        %v2331 = vrot.slane %v2324, %v2330
        %v2333 = vmul.f32 %v2303, %v2331
        %v2334 = vadd.f32 %v2150, %v2333
        %2335 = vrot.lane.b32.xlu0 %v729, 99
        %v2336 = vpop.permute.xlu0 %2335
        %2337 = vrot.lane.b32.xlu0 %v738, 99
        %v2338 = vpop.permute.xlu0 %2337
        %2339 = vrot.lane.b32.xlu0 %v692, 99
        %v2340 = vpop.permute.xlu0 %2339
        %2341 = vrot.lane.b32.xlu0 %v693, 99
        %v2342 = vpop.permute.xlu0 %2341
        %vm2343 = vcmp.lt.s32.totalorder %v434, 99
        %v2344 = vsel %vm2343, %v2340, %v2342
        %v2345 = vsel %vm2343, %v2338, %v2340
        %v2346 = vsel %vm2343, %v2336, %v2338
        %v2347 = vsel %vm2343, %v2342, %v2336
        %s2348 = scalar_lea.vmem [#allocation6], 131
        %v2349 = vld [vmem:[%s2348] ss:$8 sm:$0xf]
        %v2354 = vcombine.low %v2346, %v2345
        %v2355 = vcombine.low %v2344, %v2347
        %v2357 = vunpack.c.l.s4 1966171168
        %v2358 = vunpack.c.0.s8 %v2357
        %v2359 = vlaneseq
        %v2360 = vshrl.u32 %v2359, 7
        %v2361 = vsub.s32 %v2358, %v2360
        %v2362 = vrot.slane %v2354, %v2361
        %v2364 = vunpack.c.l.s4 1966171168
        %v2365 = vunpack.c.0.s8 %v2364
        %v2366 = vlaneseq
        %v2367 = vshrl.u32 %v2366, 7
        %v2368 = vsub.s32 %v2365, %v2367
        %v2369 = vrot.slane %v2355, %v2368
        %v2370 = vcombine.low %v2362, %v2369
        %v2372 = vunpack.c.l.s4 1966171168
        %v2373 = vunpack.c.0.s8 %v2372
        %v2374 = vlaneseq
        %v2375 = vshrl.u32 %v2374, 7
        %v2376 = vsub.s32 %v2373, %v2375
        %v2377 = vrot.slane %v2370, %v2376
        %v2379 = vmul.f32 %v2349, %v2377
        %v2380 = vadd.f32 %v2196, %v2379
        %2381 = vrot.lane.b32.xlu0 %v729, 98
        %v2382 = vpop.permute.xlu0 %2381
        %2383 = vrot.lane.b32.xlu0 %v738, 98
        %v2384 = vpop.permute.xlu0 %2383
        %2385 = vrot.lane.b32.xlu0 %v692, 98
        %v2386 = vpop.permute.xlu0 %2385
        %2387 = vrot.lane.b32.xlu0 %v693, 98
        %v2388 = vpop.permute.xlu0 %2387
        %vm2389 = vcmp.lt.s32.totalorder %v434, 98
        %v2390 = vsel %vm2389, %v2386, %v2388
        %v2391 = vsel %vm2389, %v2384, %v2386
        %v2392 = vsel %vm2389, %v2382, %v2384
        %v2393 = vsel %vm2389, %v2388, %v2382
        %s2394 = scalar_lea.vmem [#allocation6], 132
        %v2395 = vld [vmem:[%s2394] ss:$8 sm:$0xf]
        %v2400 = vcombine.low %v2392, %v2391
        %v2401 = vcombine.low %v2390, %v2393
        %v2403 = vunpack.c.l.s4 1966171168
        %v2404 = vunpack.c.0.s8 %v2403
        %v2405 = vlaneseq
        %v2406 = vshrl.u32 %v2405, 7
        %v2407 = vsub.s32 %v2404, %v2406
        %v2408 = vrot.slane %v2400, %v2407
        %v2410 = vunpack.c.l.s4 1966171168
        %v2411 = vunpack.c.0.s8 %v2410
        %v2412 = vlaneseq
        %v2413 = vshrl.u32 %v2412, 7
        %v2414 = vsub.s32 %v2411, %v2413
        %v2415 = vrot.slane %v2401, %v2414
        %v2416 = vcombine.low %v2408, %v2415
        %v2418 = vunpack.c.l.s4 1966171168
        %v2419 = vunpack.c.0.s8 %v2418
        %v2420 = vlaneseq
        %v2421 = vshrl.u32 %v2420, 7
        %v2422 = vsub.s32 %v2419, %v2421
        %v2423 = vrot.slane %v2416, %v2422
        %v2425 = vmul.f32 %v2395, %v2423
        %v2426 = vadd.f32 %v2242, %v2425
        %2427 = vrot.lane.b32.xlu0 %v729, 97
        %v2428 = vpop.permute.xlu0 %2427
        %2429 = vrot.lane.b32.xlu0 %v738, 97
        %v2430 = vpop.permute.xlu0 %2429
        %2431 = vrot.lane.b32.xlu0 %v692, 97
        %v2432 = vpop.permute.xlu0 %2431
        %2433 = vrot.lane.b32.xlu0 %v693, 97
        %v2434 = vpop.permute.xlu0 %2433
        %vm2435 = vcmp.lt.s32.totalorder %v434, 97
        %v2436 = vsel %vm2435, %v2432, %v2434
        %v2437 = vsel %vm2435, %v2430, %v2432
        %v2438 = vsel %vm2435, %v2428, %v2430
        %v2439 = vsel %vm2435, %v2434, %v2428
        %s2440 = scalar_lea.vmem [#allocation6], 133
        %v2441 = vld [vmem:[%s2440] ss:$8 sm:$0xf]
        %v2446 = vcombine.low %v2438, %v2437
        %v2447 = vcombine.low %v2436, %v2439
        %v2449 = vunpack.c.l.s4 1966171168
        %v2450 = vunpack.c.0.s8 %v2449
        %v2451 = vlaneseq
        %v2452 = vshrl.u32 %v2451, 7
        %v2453 = vsub.s32 %v2450, %v2452
        %v2454 = vrot.slane %v2446, %v2453
        %v2456 = vunpack.c.l.s4 1966171168
        %v2457 = vunpack.c.0.s8 %v2456
        %v2458 = vlaneseq
        %v2459 = vshrl.u32 %v2458, 7
        %v2460 = vsub.s32 %v2457, %v2459
        %v2461 = vrot.slane %v2447, %v2460
        %v2462 = vcombine.low %v2454, %v2461
        %v2464 = vunpack.c.l.s4 1966171168
        %v2465 = vunpack.c.0.s8 %v2464
        %v2466 = vlaneseq
        %v2467 = vshrl.u32 %v2466, 7
        %v2468 = vsub.s32 %v2465, %v2467
        %v2469 = vrot.slane %v2462, %v2468
        %v2471 = vmul.f32 %v2441, %v2469
        %v2472 = vadd.f32 %v2288, %v2471
        %2473 = vrot.lane.b32.xlu0 %v729, 96
        %v2474 = vpop.permute.xlu0 %2473
        %2475 = vrot.lane.b32.xlu0 %v738, 96
        %v2476 = vpop.permute.xlu0 %2475
        %2477 = vrot.lane.b32.xlu0 %v692, 96
        %v2478 = vpop.permute.xlu0 %2477
        %2479 = vrot.lane.b32.xlu0 %v693, 96
        %v2480 = vpop.permute.xlu0 %2479
        %vm2481 = vcmp.lt.s32.totalorder %v434, 96
        %v2482 = vsel %vm2481, %v2478, %v2480
        %v2483 = vsel %vm2481, %v2476, %v2478
        %v2484 = vsel %vm2481, %v2474, %v2476
        %v2485 = vsel %vm2481, %v2480, %v2474
        %s2486 = scalar_lea.vmem [#allocation6], 134
        %v2487 = vld [vmem:[%s2486] ss:$8 sm:$0xf]
        %v2492 = vcombine.low %v2484, %v2483
        %v2493 = vcombine.low %v2482, %v2485
        %v2495 = vunpack.c.l.s4 1966171168
        %v2496 = vunpack.c.0.s8 %v2495
        %v2497 = vlaneseq
        %v2498 = vshrl.u32 %v2497, 7
        %v2499 = vsub.s32 %v2496, %v2498
        %v2500 = vrot.slane %v2492, %v2499
        %v2502 = vunpack.c.l.s4 1966171168
        %v2503 = vunpack.c.0.s8 %v2502
        %v2504 = vlaneseq
        %v2505 = vshrl.u32 %v2504, 7
        %v2506 = vsub.s32 %v2503, %v2505
        %v2507 = vrot.slane %v2493, %v2506
        %v2508 = vcombine.low %v2500, %v2507
        %v2510 = vunpack.c.l.s4 1966171168
        %v2511 = vunpack.c.0.s8 %v2510
        %v2512 = vlaneseq
        %v2513 = vshrl.u32 %v2512, 7
        %v2514 = vsub.s32 %v2511, %v2513
        %v2515 = vrot.slane %v2508, %v2514
        %v2517 = vmul.f32 %v2487, %v2515
        %v2518 = vadd.f32 %v2334, %v2517
        %2519 = vrot.lane.b32.xlu0 %v729, 95
        %v2520 = vpop.permute.xlu0 %2519
        %2521 = vrot.lane.b32.xlu0 %v738, 95
        %v2522 = vpop.permute.xlu0 %2521
        %2523 = vrot.lane.b32.xlu0 %v692, 95
        %v2524 = vpop.permute.xlu0 %2523
        %2525 = vrot.lane.b32.xlu0 %v693, 95
        %v2526 = vpop.permute.xlu0 %2525
        %vm2527 = vcmp.lt.s32.totalorder %v434, 95
        %v2528 = vsel %vm2527, %v2524, %v2526
        %v2529 = vsel %vm2527, %v2522, %v2524
        %v2530 = vsel %vm2527, %v2520, %v2522
        %v2531 = vsel %vm2527, %v2526, %v2520
        %s2532 = scalar_lea.vmem [#allocation6], 135
        %v2533 = vld [vmem:[%s2532] ss:$8 sm:$0xf]
        %v2538 = vcombine.low %v2530, %v2529
        %v2539 = vcombine.low %v2528, %v2531
        %v2541 = vunpack.c.l.s4 1966171168
        %v2542 = vunpack.c.0.s8 %v2541
        %v2543 = vlaneseq
        %v2544 = vshrl.u32 %v2543, 7
        %v2545 = vsub.s32 %v2542, %v2544
        %v2546 = vrot.slane %v2538, %v2545
        %v2548 = vunpack.c.l.s4 1966171168
        %v2549 = vunpack.c.0.s8 %v2548
        %v2550 = vlaneseq
        %v2551 = vshrl.u32 %v2550, 7
        %v2552 = vsub.s32 %v2549, %v2551
        %v2553 = vrot.slane %v2539, %v2552
        %v2554 = vcombine.low %v2546, %v2553
        %v2556 = vunpack.c.l.s4 1966171168
        %v2557 = vunpack.c.0.s8 %v2556
        %v2558 = vlaneseq
        %v2559 = vshrl.u32 %v2558, 7
        %v2560 = vsub.s32 %v2557, %v2559
        %v2561 = vrot.slane %v2554, %v2560
        %v2563 = vmul.f32 %v2533, %v2561
        %v2564 = vadd.f32 %v2380, %v2563
        %2565 = vrot.lane.b32.xlu0 %v729, 94
        %v2566 = vpop.permute.xlu0 %2565
        %2567 = vrot.lane.b32.xlu0 %v738, 94
        %v2568 = vpop.permute.xlu0 %2567
        %2569 = vrot.lane.b32.xlu0 %v692, 94
        %v2570 = vpop.permute.xlu0 %2569
        %2571 = vrot.lane.b32.xlu0 %v693, 94
        %v2572 = vpop.permute.xlu0 %2571
        %vm2573 = vcmp.lt.s32.totalorder %v434, 94
        %v2574 = vsel %vm2573, %v2570, %v2572
        %v2575 = vsel %vm2573, %v2568, %v2570
        %v2576 = vsel %vm2573, %v2566, %v2568
        %v2577 = vsel %vm2573, %v2572, %v2566
        %s2578 = scalar_lea.vmem [#allocation6], 160
        %v2579 = vld [vmem:[%s2578] ss:$8 sm:$0xf]
        %v2584 = vcombine.low %v2576, %v2575
        %v2585 = vcombine.low %v2574, %v2577
        %v2587 = vunpack.c.l.s4 1966171168
        %v2588 = vunpack.c.0.s8 %v2587
        %v2589 = vlaneseq
        %v2590 = vshrl.u32 %v2589, 7
        %v2591 = vsub.s32 %v2588, %v2590
        %v2592 = vrot.slane %v2584, %v2591
        %v2594 = vunpack.c.l.s4 1966171168
        %v2595 = vunpack.c.0.s8 %v2594
        %v2596 = vlaneseq
        %v2597 = vshrl.u32 %v2596, 7
        %v2598 = vsub.s32 %v2595, %v2597
        %v2599 = vrot.slane %v2585, %v2598
        %v2600 = vcombine.low %v2592, %v2599
        %v2602 = vunpack.c.l.s4 1966171168
        %v2603 = vunpack.c.0.s8 %v2602
        %v2604 = vlaneseq
        %v2605 = vshrl.u32 %v2604, 7
        %v2606 = vsub.s32 %v2603, %v2605
        %v2607 = vrot.slane %v2600, %v2606
        %v2609 = vmul.f32 %v2579, %v2607
        %v2610 = vadd.f32 %v2426, %v2609
        %2611 = vrot.lane.b32.xlu0 %v729, 93
        %v2612 = vpop.permute.xlu0 %2611
        %2613 = vrot.lane.b32.xlu0 %v738, 93
        %v2614 = vpop.permute.xlu0 %2613
        %2615 = vrot.lane.b32.xlu0 %v692, 93
        %v2616 = vpop.permute.xlu0 %2615
        %2617 = vrot.lane.b32.xlu0 %v693, 93
        %v2618 = vpop.permute.xlu0 %2617
        %vm2619 = vcmp.lt.s32.totalorder %v434, 93
        %v2620 = vsel %vm2619, %v2616, %v2618
        %v2621 = vsel %vm2619, %v2614, %v2616
        %v2622 = vsel %vm2619, %v2612, %v2614
        %v2623 = vsel %vm2619, %v2618, %v2612
        %s2624 = scalar_lea.vmem [#allocation6], 161
        %v2625 = vld [vmem:[%s2624] ss:$8 sm:$0xf]
        %v2630 = vcombine.low %v2622, %v2621
        %v2631 = vcombine.low %v2620, %v2623
        %v2633 = vunpack.c.l.s4 1966171168
        %v2634 = vunpack.c.0.s8 %v2633
        %v2635 = vlaneseq
        %v2636 = vshrl.u32 %v2635, 7
        %v2637 = vsub.s32 %v2634, %v2636
        %v2638 = vrot.slane %v2630, %v2637
        %v2640 = vunpack.c.l.s4 1966171168
        %v2641 = vunpack.c.0.s8 %v2640
        %v2642 = vlaneseq
        %v2643 = vshrl.u32 %v2642, 7
        %v2644 = vsub.s32 %v2641, %v2643
        %v2645 = vrot.slane %v2631, %v2644
        %v2646 = vcombine.low %v2638, %v2645
        %v2648 = vunpack.c.l.s4 1966171168
        %v2649 = vunpack.c.0.s8 %v2648
        %v2650 = vlaneseq
        %v2651 = vshrl.u32 %v2650, 7
        %v2652 = vsub.s32 %v2649, %v2651
        %v2653 = vrot.slane %v2646, %v2652
        %v2655 = vmul.f32 %v2625, %v2653
        %v2656 = vadd.f32 %v2472, %v2655
        %2657 = vrot.lane.b32.xlu0 %v729, 83
        %v2658 = vpop.permute.xlu0 %2657
        %2659 = vrot.lane.b32.xlu0 %v738, 83
        %v2660 = vpop.permute.xlu0 %2659
        %2661 = vrot.lane.b32.xlu0 %v692, 83
        %v2662 = vpop.permute.xlu0 %2661
        %2663 = vrot.lane.b32.xlu0 %v693, 83
        %v2664 = vpop.permute.xlu0 %2663
        %vm2665 = vcmp.lt.s32.totalorder %v434, 83
        %v2666 = vsel %vm2665, %v2662, %v2664
        %v2667 = vsel %vm2665, %v2660, %v2662
        %v2668 = vsel %vm2665, %v2658, %v2660
        %v2669 = vsel %vm2665, %v2664, %v2658
        %s2670 = scalar_lea.vmem [#allocation6], 162
        %v2671 = vld [vmem:[%s2670] ss:$8 sm:$0xf]
        %v2676 = vcombine.low %v2668, %v2667
        %v2677 = vcombine.low %v2666, %v2669
        %v2679 = vunpack.c.l.s4 1966171168
        %v2680 = vunpack.c.0.s8 %v2679
        %v2681 = vlaneseq
        %v2682 = vshrl.u32 %v2681, 7
        %v2683 = vsub.s32 %v2680, %v2682
        %v2684 = vrot.slane %v2676, %v2683
        %v2686 = vunpack.c.l.s4 1966171168
        %v2687 = vunpack.c.0.s8 %v2686
        %v2688 = vlaneseq
        %v2689 = vshrl.u32 %v2688, 7
        %v2690 = vsub.s32 %v2687, %v2689
        %v2691 = vrot.slane %v2677, %v2690
        %v2692 = vcombine.low %v2684, %v2691
        %v2694 = vunpack.c.l.s4 1966171168
        %v2695 = vunpack.c.0.s8 %v2694
        %v2696 = vlaneseq
        %v2697 = vshrl.u32 %v2696, 7
        %v2698 = vsub.s32 %v2695, %v2697
        %v2699 = vrot.slane %v2692, %v2698
        %v2701 = vmul.f32 %v2671, %v2699
        %v2702 = vadd.f32 %v2518, %v2701
        %2703 = vrot.lane.b32.xlu0 %v729, 82
        %v2704 = vpop.permute.xlu0 %2703
        %2705 = vrot.lane.b32.xlu0 %v738, 82
        %v2706 = vpop.permute.xlu0 %2705
        %2707 = vrot.lane.b32.xlu0 %v692, 82
        %v2708 = vpop.permute.xlu0 %2707
        %2709 = vrot.lane.b32.xlu0 %v693, 82
        %v2710 = vpop.permute.xlu0 %2709
        %vm2711 = vcmp.lt.s32.totalorder %v434, 82
        %v2712 = vsel %vm2711, %v2708, %v2710
        %v2713 = vsel %vm2711, %v2706, %v2708
        %v2714 = vsel %vm2711, %v2704, %v2706
        %v2715 = vsel %vm2711, %v2710, %v2704
        %s2716 = scalar_lea.vmem [#allocation6], 163
        %v2717 = vld [vmem:[%s2716] ss:$8 sm:$0xf]
        %v2722 = vcombine.low %v2714, %v2713
        %v2723 = vcombine.low %v2712, %v2715
        %v2725 = vunpack.c.l.s4 1966171168
        %v2726 = vunpack.c.0.s8 %v2725
        %v2727 = vlaneseq
        %v2728 = vshrl.u32 %v2727, 7
        %v2729 = vsub.s32 %v2726, %v2728
        %v2730 = vrot.slane %v2722, %v2729
        %v2732 = vunpack.c.l.s4 1966171168
        %v2733 = vunpack.c.0.s8 %v2732
        %v2734 = vlaneseq
        %v2735 = vshrl.u32 %v2734, 7
        %v2736 = vsub.s32 %v2733, %v2735
        %v2737 = vrot.slane %v2723, %v2736
        %v2738 = vcombine.low %v2730, %v2737
        %v2740 = vunpack.c.l.s4 1966171168
        %v2741 = vunpack.c.0.s8 %v2740
        %v2742 = vlaneseq
        %v2743 = vshrl.u32 %v2742, 7
        %v2744 = vsub.s32 %v2741, %v2743
        %v2745 = vrot.slane %v2738, %v2744
        %v2747 = vmul.f32 %v2717, %v2745
        %v2748 = vadd.f32 %v2564, %v2747
        %2749 = vrot.lane.b32.xlu0 %v729, 81
        %v2750 = vpop.permute.xlu0 %2749
        %2751 = vrot.lane.b32.xlu0 %v738, 81
        %v2752 = vpop.permute.xlu0 %2751
        %2753 = vrot.lane.b32.xlu0 %v692, 81
        %v2754 = vpop.permute.xlu0 %2753
        %2755 = vrot.lane.b32.xlu0 %v693, 81
        %v2756 = vpop.permute.xlu0 %2755
        %vm2757 = vcmp.lt.s32.totalorder %v434, 81
        %v2758 = vsel %vm2757, %v2754, %v2756
        %v2759 = vsel %vm2757, %v2752, %v2754
        %v2760 = vsel %vm2757, %v2750, %v2752
        %v2761 = vsel %vm2757, %v2756, %v2750
        %s2762 = scalar_lea.vmem [#allocation6], 164
        %v2763 = vld [vmem:[%s2762] ss:$8 sm:$0xf]
        %v2768 = vcombine.low %v2760, %v2759
        %v2769 = vcombine.low %v2758, %v2761
        %v2771 = vunpack.c.l.s4 1966171168
        %v2772 = vunpack.c.0.s8 %v2771
        %v2773 = vlaneseq
        %v2774 = vshrl.u32 %v2773, 7
        %v2775 = vsub.s32 %v2772, %v2774
        %v2776 = vrot.slane %v2768, %v2775
        %v2778 = vunpack.c.l.s4 1966171168
        %v2779 = vunpack.c.0.s8 %v2778
        %v2780 = vlaneseq
        %v2781 = vshrl.u32 %v2780, 7
        %v2782 = vsub.s32 %v2779, %v2781
        %v2783 = vrot.slane %v2769, %v2782
        %v2784 = vcombine.low %v2776, %v2783
        %v2786 = vunpack.c.l.s4 1966171168
        %v2787 = vunpack.c.0.s8 %v2786
        %v2788 = vlaneseq
        %v2789 = vshrl.u32 %v2788, 7
        %v2790 = vsub.s32 %v2787, %v2789
        %v2791 = vrot.slane %v2784, %v2790
        %v2793 = vmul.f32 %v2763, %v2791
        %v2794 = vadd.f32 %v2610, %v2793
        %2795 = vrot.lane.b32.xlu0 %v729, 80
        %v2796 = vpop.permute.xlu0 %2795
        %2797 = vrot.lane.b32.xlu0 %v738, 80
        %v2798 = vpop.permute.xlu0 %2797
        %2799 = vrot.lane.b32.xlu0 %v692, 80
        %v2800 = vpop.permute.xlu0 %2799
        %2801 = vrot.lane.b32.xlu0 %v693, 80
        %v2802 = vpop.permute.xlu0 %2801
        %vm2803 = vcmp.lt.s32.totalorder %v434, 80
        %v2804 = vsel %vm2803, %v2800, %v2802
        %v2805 = vsel %vm2803, %v2798, %v2800
        %v2806 = vsel %vm2803, %v2796, %v2798
        %v2807 = vsel %vm2803, %v2802, %v2796
        %s2808 = scalar_lea.vmem [#allocation6], 165
        %v2809 = vld [vmem:[%s2808] ss:$8 sm:$0xf]
        %v2814 = vcombine.low %v2806, %v2805
        %v2815 = vcombine.low %v2804, %v2807
        %v2817 = vunpack.c.l.s4 1966171168
        %v2818 = vunpack.c.0.s8 %v2817
        %v2819 = vlaneseq
        %v2820 = vshrl.u32 %v2819, 7
        %v2821 = vsub.s32 %v2818, %v2820
        %v2822 = vrot.slane %v2814, %v2821
        %v2824 = vunpack.c.l.s4 1966171168
        %v2825 = vunpack.c.0.s8 %v2824
        %v2826 = vlaneseq
        %v2827 = vshrl.u32 %v2826, 7
        %v2828 = vsub.s32 %v2825, %v2827
        %v2829 = vrot.slane %v2815, %v2828
        %v2830 = vcombine.low %v2822, %v2829
        %v2832 = vunpack.c.l.s4 1966171168
        %v2833 = vunpack.c.0.s8 %v2832
        %v2834 = vlaneseq
        %v2835 = vshrl.u32 %v2834, 7
        %v2836 = vsub.s32 %v2833, %v2835
        %v2837 = vrot.slane %v2830, %v2836
        %v2839 = vmul.f32 %v2809, %v2837
        %v2840 = vadd.f32 %v2656, %v2839
        %2841 = vrot.lane.b32.xlu0 %v729, 79
        %v2842 = vpop.permute.xlu0 %2841
        %2843 = vrot.lane.b32.xlu0 %v738, 79
        %v2844 = vpop.permute.xlu0 %2843
        %2845 = vrot.lane.b32.xlu0 %v692, 79
        %v2846 = vpop.permute.xlu0 %2845
        %2847 = vrot.lane.b32.xlu0 %v693, 79
        %v2848 = vpop.permute.xlu0 %2847
        %vm2849 = vcmp.lt.s32.totalorder %v434, 79
        %v2850 = vsel %vm2849, %v2846, %v2848
        %v2851 = vsel %vm2849, %v2844, %v2846
        %v2852 = vsel %vm2849, %v2842, %v2844
        %v2853 = vsel %vm2849, %v2848, %v2842
        %s2854 = scalar_lea.vmem [#allocation6], 166
        %v2855 = vld [vmem:[%s2854] ss:$8 sm:$0xf]
        %v2860 = vcombine.low %v2852, %v2851
        %v2861 = vcombine.low %v2850, %v2853
        %v2863 = vunpack.c.l.s4 1966171168
        %v2864 = vunpack.c.0.s8 %v2863
        %v2865 = vlaneseq
        %v2866 = vshrl.u32 %v2865, 7
        %v2867 = vsub.s32 %v2864, %v2866
        %v2868 = vrot.slane %v2860, %v2867
        %v2870 = vunpack.c.l.s4 1966171168
        %v2871 = vunpack.c.0.s8 %v2870
        %v2872 = vlaneseq
        %v2873 = vshrl.u32 %v2872, 7
        %v2874 = vsub.s32 %v2871, %v2873
        %v2875 = vrot.slane %v2861, %v2874
        %v2876 = vcombine.low %v2868, %v2875
        %v2878 = vunpack.c.l.s4 1966171168
        %v2879 = vunpack.c.0.s8 %v2878
        %v2880 = vlaneseq
        %v2881 = vshrl.u32 %v2880, 7
        %v2882 = vsub.s32 %v2879, %v2881
        %v2883 = vrot.slane %v2876, %v2882
        %v2885 = vmul.f32 %v2855, %v2883
        %v2886 = vadd.f32 %v2702, %v2885
        %2887 = vrot.lane.b32.xlu0 %v729, 78
        %v2888 = vpop.permute.xlu0 %2887
        %2889 = vrot.lane.b32.xlu0 %v738, 78
        %v2890 = vpop.permute.xlu0 %2889
        %2891 = vrot.lane.b32.xlu0 %v692, 78
        %v2892 = vpop.permute.xlu0 %2891
        %2893 = vrot.lane.b32.xlu0 %v693, 78
        %v2894 = vpop.permute.xlu0 %2893
        %vm2895 = vcmp.lt.s32.totalorder %v434, 78
        %v2896 = vsel %vm2895, %v2892, %v2894
        %v2897 = vsel %vm2895, %v2890, %v2892
        %v2898 = vsel %vm2895, %v2888, %v2890
        %v2899 = vsel %vm2895, %v2894, %v2888
        %s2900 = scalar_lea.vmem [#allocation6], 167
        %v2901 = vld [vmem:[%s2900] ss:$8 sm:$0xf]
        %v2906 = vcombine.low %v2898, %v2897
        %v2907 = vcombine.low %v2896, %v2899
        %v2909 = vunpack.c.l.s4 1966171168
        %v2910 = vunpack.c.0.s8 %v2909
        %v2911 = vlaneseq
        %v2912 = vshrl.u32 %v2911, 7
        %v2913 = vsub.s32 %v2910, %v2912
        %v2914 = vrot.slane %v2906, %v2913
        %v2916 = vunpack.c.l.s4 1966171168
        %v2917 = vunpack.c.0.s8 %v2916
        %v2918 = vlaneseq
        %v2919 = vshrl.u32 %v2918, 7
        %v2920 = vsub.s32 %v2917, %v2919
        %v2921 = vrot.slane %v2907, %v2920
        %v2922 = vcombine.low %v2914, %v2921
        %v2924 = vunpack.c.l.s4 1966171168
        %v2925 = vunpack.c.0.s8 %v2924
        %v2926 = vlaneseq
        %v2927 = vshrl.u32 %v2926, 7
        %v2928 = vsub.s32 %v2925, %v2927
        %v2929 = vrot.slane %v2922, %v2928
        %v2931 = vmul.f32 %v2901, %v2929
        %v2932 = vadd.f32 %v2748, %v2931
        %2933 = vrot.lane.b32.xlu0 %v729, 77
        %v2934 = vpop.permute.xlu0 %2933
        %2935 = vrot.lane.b32.xlu0 %v738, 77
        %v2936 = vpop.permute.xlu0 %2935
        %2937 = vrot.lane.b32.xlu0 %v692, 77
        %v2938 = vpop.permute.xlu0 %2937
        %2939 = vrot.lane.b32.xlu0 %v693, 77
        %v2940 = vpop.permute.xlu0 %2939
        %vm2941 = vcmp.lt.s32.totalorder %v434, 77
        %v2942 = vsel %vm2941, %v2938, %v2940
        %v2943 = vsel %vm2941, %v2936, %v2938
        %v2944 = vsel %vm2941, %v2934, %v2936
        %v2945 = vsel %vm2941, %v2940, %v2934
        %s2946 = scalar_lea.vmem [#allocation6], 192
        %v2947 = vld [vmem:[%s2946] ss:$8 sm:$0xf]
        %v2952 = vcombine.low %v2944, %v2943
        %v2953 = vcombine.low %v2942, %v2945
        %v2955 = vunpack.c.l.s4 1966171168
        %v2956 = vunpack.c.0.s8 %v2955
        %v2957 = vlaneseq
        %v2958 = vshrl.u32 %v2957, 7
        %v2959 = vsub.s32 %v2956, %v2958
        %v2960 = vrot.slane %v2952, %v2959
        %v2962 = vunpack.c.l.s4 1966171168
        %v2963 = vunpack.c.0.s8 %v2962
        %v2964 = vlaneseq
        %v2965 = vshrl.u32 %v2964, 7
        %v2966 = vsub.s32 %v2963, %v2965
        %v2967 = vrot.slane %v2953, %v2966
        %v2968 = vcombine.low %v2960, %v2967
        %v2970 = vunpack.c.l.s4 1966171168
        %v2971 = vunpack.c.0.s8 %v2970
        %v2972 = vlaneseq
        %v2973 = vshrl.u32 %v2972, 7
        %v2974 = vsub.s32 %v2971, %v2973
        %v2975 = vrot.slane %v2968, %v2974
        %v2977 = vmul.f32 %v2947, %v2975
        %v2978 = vadd.f32 %v2794, %v2977
        %v2979 = vadd.f32 %v2978, %v2840
        %v2980 = vadd.f32 %v2886, %v2932
        %v2981 = vadd.f32 %v2979, %v2980
        %v2983 = vrot.slane %v2981, 2
        %v2985 = vadd.f32 %v2981, %v2983
        %s2986 = sld [smem:[#allocation2]]
        %v2987 = vstv %s2986
        %v2988 = vadd.f32 %v2985, %v2987
        %v2989 = vxor.u32 %v2988, 2147483648
        %v2990 = vmul.f32 %v2989, 1.442695
        %v2991 = vpow.pop %v2990
        %v2992 = vadd.f32 %v2991, 1.0
        %v2993 = vrcp.pop %v2992
        %v2994 = vmul.f32 1.0, %v2993
        %v2995 = vld [vmem:[%s228] sm:$0xff]
        %v2996 = vld [vmem:[%s228 + $0x8] sm:$0xff]
        %v2997 = vld [vmem:[%s228 + $0x10] sm:$0xff]
        %v2998 = vld [vmem:[%s228 + $0x18] sm:$0xff]
        %v2999 = vld [vmem:[%s228 + $0x20] sm:$0xff]
        %v3000 = vld [vmem:[%s228 + $0x28] sm:$0xff]
        %v3001 = vld [vmem:[%s228 + $0x30] sm:$0xff]
        %v3002 = vld [vmem:[%s228 + $0x38] sm:$0xff]
        %v3003 = vmul.f32 %v2995, %v700
        %v3004 = vmul.f32 %v2996, %v700
        %v3005 = vmul.f32 %v2997, %v704
        %v3006 = vmul.f32 %v2998, %v704
        %v3007 = vmul.f32 %v2999, %v708
        %v3008 = vmul.f32 %v3000, %v708
        %v3009 = vmul.f32 %v3001, %v712
        %v3010 = vmul.f32 %v3002, %v712
        %v3012 = vlaneseq
        %v3013 = vshrl.u32 %v3012, 7
        %v3014 = vsub.s32 0, %v3013
        %v3015 = vrot.slane %v2994, %v3014
        %v3016 = vlaneseq
        %v3017 = vshrl.u32 %v3016, 7
        %v3018 = vsub.s32 1, %v3017
        %v3019 = vrot.slane %v2994, %v3018
        %v3022 = vmul.f32 %v3003, %v3015
        %v3023 = vmul.f32 %v3004, %v3019
        %v3024 = vmul.f32 %v3005, %v3015
        %v3025 = vmul.f32 %v3006, %v3019
        %v3026 = vmul.f32 %v3007, %v3015
        %v3027 = vmul.f32 %v3008, %v3019
        %v3028 = vmul.f32 %v3009, %v3015
        %v3029 = vmul.f32 %v3010, %v3019
        %3030 = vst [vmem:[%s258] sm:$0xff] %v3022
        %3031 = vst [vmem:[%s258 + $0x8] sm:$0xff] %v3023
        %3032 = vst [vmem:[%s258 + $0x10] sm:$0xff] %v3024
        %3033 = vst [vmem:[%s258 + $0x18] sm:$0xff] %v3025
        %3034 = vst [vmem:[%s258 + $0x20] sm:$0xff] %v3026
        %3035 = vst [vmem:[%s258 + $0x28] sm:$0xff] %v3027
        %3036 = vst [vmem:[%s258 + $0x30] sm:$0xff] %v3028
        %3037 = vst [vmem:[%s258 + $0x38] sm:$0xff] %v3029
        %s3038 = sand.u32 %s142, 1
        %s3039 = scalar_lea.sflag [#allocation5], %s3038
        %s3040 = sand.u32 %s142, 1
        %s3041 = smul.addr %s3040, 64
        %s3042 = scalar_lea.vmem [#allocation8], %s3041
        // Predicated region
        $region49: #{tpu_custom_call.1} parent=39 // pred_check
          %p3043 = pneg %p152
        $region50: #{tpu_custom_call.1} parent=39 // pred_check_branch
          %3045 = sbr.rel (%p3043) target = $region52
        $region51: #{tpu_custom_call.1} parent=39 // pred_region
          %s3047 = ssub.s32 1024, 1024
          %3048 = vsyncadd %s3039, %s3047
          %s3049 = smul.addr %s24, 8
          %s3050 = smul.addr %s3049, 128
          %s3051 = scalar_lea.hbm %s5, %s3050
          %s3052 = sshll.u32 %s3042, 4
          %s3053 = int_to_ptr.vmem [resolvable:$true] %s3052
          %3058 = dma.vmem_to_hbm [thread:$0]  %s3053, 1024, %s3051, %s3039, 256, 256, 16
        $region52: #{tpu_custom_call.1} parent=39 // pred_fallthru
          _
      $region40: #{tpu_custom_call.1} parent=5 // pred_fallthru
        _
      %p3059 = scmp.le.s32.totalorder 2, %s19
      // Predicated region
      $region53: #{tpu_custom_call.1} parent=5 // pred_check
        %p3060 = pneg %p3059
      $region54: #{tpu_custom_call.1} parent=5 // pred_check_branch
        %3062 = sbr.rel (%p3060) target = $region56
      $region55: #{tpu_custom_call.1} parent=5 // pred_region
        %s3063 = ssub.s32 %s19, 2
        // Predicated region
        $region57: #{tpu_custom_call.1} parent=55 // pred_check
          %p3064 = pneg %p158
        $region58: #{tpu_custom_call.1} parent=55 // pred_check_branch
          %3066 = sbr.rel (%p3064) target = $region60
        $region59: #{tpu_custom_call.1} parent=55 // pred_region
          %s3067 = sand.u32 %s143, 1
          %s3068 = scalar_lea.sflag [#allocation5], %s3067
          %s3069 = sand.u32 %s143, 1
          %s3070 = smul.addr %s3069, 64
          %s3071 = scalar_lea.vmem [#allocation8], %s3070
          %3072 = dma.done %s3068, 1024
        $region60: #{tpu_custom_call.1} parent=55 // pred_fallthru
          _
      $region56: #{tpu_custom_call.1} parent=5 // pred_fallthru
        _
    $region6: #{tpu_custom_call.1} parent=1 // loop_footer
      %s23 = sadd.s32 1, %s19
    $region7: #{tpu_custom_call.1} parent=1 // loop_footer_branch
      %18 = sbr.rel target = $region3
    $region8: #{tpu_custom_call.1} parent=1 // loop_exit
      _
    %3073 = vsyncpa [#allocation4], 1
    %s3074 = scalar_lea.sflag [#allocation4], 1
    %3075 = vsyncpa %s3074, 1
    %3076 = vsyncpa [#allocation7], 1
    %3077 = vsyncpa [#allocation5], 1
    %s3078 = scalar_lea.sflag [#allocation5], 1
    %3079 = vsyncpa %s3078, 1

// kernel: tpu_custom_call.1
$region0: #{tpu_custom_call.1}
  #allocation0 [shape = 'u32[]', space=smem, size = 0x4, offset = 0x4, fixed_abs, tag = 'smem constant byte address 0x4 - core index']
  #allocation1 [shape = 'u32[144,128]{1,0:T(1,128)}', space=vmem, size = 0x12000, scoped, tag = 'internal scratch']
  #allocation2 [shape = 'f32[1]{0:T(128)S(6)}', space=smem, size = 0x200, scoped, tag = 'scoped memory for tpu_custom_call.1']
  %s0 = inlined_call_operand.hbm [shape: f32[2,32,256], index: 0, kind: input, shape index: {}]
  %s1 = inlined_call_operand.vmem [shape: f32[32,2], index: 1, kind: input, shape index: {}]
  %s2 = inlined_call_operand.vmem [shape: f32[2,32], index: 2, kind: input, shape index: {}]
  %s3 = inlined_call_operand.hbm [shape: f32[49,512], index: 3, kind: input, shape index: {}]
  %s4 = inlined_call_operand.<no memory space> [shape: f32[1], index: 4, kind: input, shape index: {}]
  %s5 = inlined_call_operand.hbm [shape: f32[2,32,256], index: 5, kind: output, shape index: {}]
  %s6 = sld [smem:[#allocation0]]
  $region61: #{tpu_custom_call.1} parent=0
    _
  %s8 = ssub.s32 1, %s6
  %s9 = scalar_select 0, %s8, %s6
  %10 = sst [smem:[#allocation2]] %s4
  $region1: #{tpu_custom_call.1} parent=0
    #allocation3 [shape = 'u8[65536]{0}', space=vmem, size = 0x10000, scoped, tag = 'input window, operand 0']
    #allocation4 [shape = 's32[2]{0}', space=sflag, size = 0x8, scoped, tag = 'scoped memory for tpu_custom_call.1']
    #allocation5 [shape = 's32[2]{0}', space=sflag, size = 0x8, scoped, tag = 'scoped memory for tpu_custom_call.1']
    #allocation6 [shape = 'u8[114688]{0}', space=vmem, size = 0x1c000, scoped, tag = 'input window, operand 3, single buffered']
    #allocation7 [shape = 's32[1]{0}', space=sflag, size = 0x4, scoped, tag = 'scoped memory for tpu_custom_call.1']
    #allocation8 [shape = 'u8[65536]{0}', space=vmem, size = 0x10000, scoped, tag = 'output window, operand 0']
    %11 = vsyncpa [#allocation4], 0
    %s12 = scalar_lea.sflag [#allocation4], 1
    %13 = vsyncpa %s12, 0
    %14 = vsyncpa [#allocation7], 0
    %15 = vsyncpa [#allocation5], 0
    %s16 = scalar_lea.sflag [#allocation5], 1
    %17 = vsyncpa %s16, 0
    loop: start=0, step=1, limit=4
    $region2: #{tpu_custom_call.1} parent=1 // loop_pre_header
      _
    $region3: #{tpu_custom_call.1} parent=1 // loop_header
      %s19 = sphi 0, %s23
      %p20 = scmp.ge.s32.totalorder %s19, 4
      %s29 = sphi 0, %s31
      %s32 = sphi 0, %s29
      %s33 = sphi 0, %s32
      %s49 = sphi 0, %s33
      %s53 = sphi 0, %s53
      %s55 = sphi 0, %s53
      %s56 = sphi 0, %s55
      %s70 = sphi 0, %s56
      %s74 = sphi 0, %s74
      %s76 = sphi 0, %s74
      %s77 = sphi 0, %s76
      %s91 = sphi 0, %s77
      %s95 = sphi 0, %s95
      %s97 = sphi 0, %s95
      %s98 = sphi 0, %s97
      %s112 = sphi 0, %s98
      %s116 = sphi 0, %s116
      %s118 = sphi 0, %s116
      %s119 = sphi 0, %s118
      %s133 = sphi 0, %s119
      %s139 = sphi 0, %s141
      %s142 = sphi 0, %s139
      %s143 = sphi 0, %s142
      %s159 = sphi 0, %s143
    $region4: #{tpu_custom_call.1} parent=1 // loop_header_branch
      %22 = sbr.rel (%p20) target = $region8
    $region5: #{tpu_custom_call.1} parent=1 // loop_body
      %s24 = ssub.s32 %s19, 1
      %s25 = ssub.s32 %s19, 2
      %s26 = sadd.s32 %s19, 1
      %s27 = ssub.s32 %s19, %s26
      %p28 = scmp.eq.s32.totalorder %s27, 0
      %s30 = sadd.s32 %s29, 1
      %s31 = scalar_select %p28, %s29, %s30
      %p34 = pneg %p28
      %p35 = scmp.eq.s32.totalorder %s19, 1
      %p36 = por %p34, %p35
      %p37 = scmp.ne.s32.totalorder %s29, %s32
      %p38 = scmp.eq.s32.totalorder %s19, 0
      %p39 = por %p37, %p38
      %p40 = scmp.ne.s32.totalorder %s29, %s32
      %p41 = scmp.eq.s32.totalorder %s24, 1
      %p42 = por %p40, %p41
      %p43 = scmp.ne.s32.totalorder %s32, %s33
      %p44 = scmp.eq.s32.totalorder %s24, 0
      %p45 = por %p43, %p44
      %p46 = scmp.ne.s32.totalorder %s32, %s33
      %p47 = scmp.eq.s32.totalorder %s25, 1
      %p48 = por %p46, %p47
      %p50 = scmp.ne.s32.totalorder %s33, %s49
      %p51 = scmp.eq.s32.totalorder %s25, 0
      %p52 = por %p50, %p51
      %s54 = sadd.s32 %s53, 1
      %p57 = scmp.eq.s32.totalorder %s19, 1
      %p58 = scmp.ne.s32.totalorder %s53, %s55
      %p59 = scmp.eq.s32.totalorder %s19, 0
      %p60 = por %p58, %p59
      %p61 = scmp.ne.s32.totalorder %s53, %s55
      %p62 = scmp.eq.s32.totalorder %s24, 1
      %p63 = por %p61, %p62
      %p64 = scmp.ne.s32.totalorder %s55, %s56
      %p65 = scmp.eq.s32.totalorder %s24, 0
      %p66 = por %p64, %p65
      %p67 = scmp.ne.s32.totalorder %s55, %s56
      %p68 = scmp.eq.s32.totalorder %s25, 1
      %p69 = por %p67, %p68
      %p71 = scmp.ne.s32.totalorder %s56, %s70
      %p72 = scmp.eq.s32.totalorder %s25, 0
      %p73 = por %p71, %p72
      %s75 = sadd.s32 %s74, 1
      %p78 = scmp.eq.s32.totalorder %s19, 1
      %p79 = scmp.ne.s32.totalorder %s74, %s76
      %p80 = scmp.eq.s32.totalorder %s19, 0
      %p81 = por %p79, %p80
      %p82 = scmp.ne.s32.totalorder %s74, %s76
      %p83 = scmp.eq.s32.totalorder %s24, 1
      %p84 = por %p82, %p83
      %p85 = scmp.ne.s32.totalorder %s76, %s77
      %p86 = scmp.eq.s32.totalorder %s24, 0
      %p87 = por %p85, %p86
      %p88 = scmp.ne.s32.totalorder %s76, %s77
      %p89 = scmp.eq.s32.totalorder %s25, 1
      %p90 = por %p88, %p89
      %p92 = scmp.ne.s32.totalorder %s77, %s91
      %p93 = scmp.eq.s32.totalorder %s25, 0
      %p94 = por %p92, %p93
      %s96 = sadd.s32 %s95, 1
      %p99 = scmp.eq.s32.totalorder %s19, 1
      %p100 = scmp.ne.s32.totalorder %s95, %s97
      %p101 = scmp.eq.s32.totalorder %s19, 0
      %p102 = por %p100, %p101
      %p103 = scmp.ne.s32.totalorder %s95, %s97
      %p104 = scmp.eq.s32.totalorder %s24, 1
      %p105 = por %p103, %p104
      %p106 = scmp.ne.s32.totalorder %s97, %s98
      %p107 = scmp.eq.s32.totalorder %s24, 0
      %p108 = por %p106, %p107
      %p109 = scmp.ne.s32.totalorder %s97, %s98
      %p110 = scmp.eq.s32.totalorder %s25, 1
      %p111 = por %p109, %p110
      %p113 = scmp.ne.s32.totalorder %s98, %s112
      %p114 = scmp.eq.s32.totalorder %s25, 0
      %p115 = por %p113, %p114
      %s117 = sadd.s32 %s116, 1
      %p120 = scmp.eq.s32.totalorder %s19, 1
      %p121 = scmp.ne.s32.totalorder %s116, %s118
      %p122 = scmp.eq.s32.totalorder %s19, 0
      %p123 = por %p121, %p122
      %p124 = scmp.ne.s32.totalorder %s116, %s118
      %p125 = scmp.eq.s32.totalorder %s24, 1
      %p126 = por %p124, %p125
      %p127 = scmp.ne.s32.totalorder %s118, %s119
      %p128 = scmp.eq.s32.totalorder %s24, 0
      %p129 = por %p127, %p128
      %p130 = scmp.ne.s32.totalorder %s118, %s119
      %p131 = scmp.eq.s32.totalorder %s25, 1
      %p132 = por %p130, %p131
      %p134 = scmp.ne.s32.totalorder %s119, %s133
      %p135 = scmp.eq.s32.totalorder %s25, 0
      %p136 = por %p134, %p135
      %s137 = ssub.s32 %s19, %s26
      %p138 = scmp.eq.s32.totalorder %s137, 0
      %s140 = sadd.s32 %s139, 1
      %s141 = scalar_select %p138, %s139, %s140
      %p144 = pneg %p138
      %p145 = scmp.eq.s32.totalorder %s19, 1
      %p146 = por %p144, %p145
      %p147 = scmp.ne.s32.totalorder %s139, %s142
      %p148 = scmp.eq.s32.totalorder %s19, 0
      %p149 = por %p147, %p148
      %p150 = scmp.ne.s32.totalorder %s139, %s142
      %p151 = scmp.eq.s32.totalorder %s24, 1
      %p152 = por %p150, %p151
      %p153 = scmp.ne.s32.totalorder %s142, %s143
      %p154 = scmp.eq.s32.totalorder %s24, 0
      %p155 = por %p153, %p154
      %p156 = scmp.ne.s32.totalorder %s142, %s143
      %p157 = scmp.eq.s32.totalorder %s25, 1
      %p158 = por %p156, %p157
      %p160 = scmp.ne.s32.totalorder %s143, %s159
      %p161 = scmp.eq.s32.totalorder %s25, 0
      %p162 = por %p160, %p161
      %p163 = scmp.le.s32.totalorder 1, %s19
      %p164 = scmp.lt.s32.totalorder %s19, 3
      %p165 = pnand %p163, %p164
      %p166 = pneg %p165
      // Predicated region
      $region9: #{tpu_custom_call.1} parent=5 // pred_check
        _
      $region10: #{tpu_custom_call.1} parent=5 // pred_check_branch
        %168 = sbr.rel (%p165) target = $region12
      $region11: #{tpu_custom_call.1} parent=5 // pred_region
        %s169 = ssub.s32 %s19, 1
        // Predicated region
        $region13: #{tpu_custom_call.1} parent=11 // pred_check
          %p170 = pneg %p66
        $region14: #{tpu_custom_call.1} parent=11 // pred_check_branch
          %172 = sbr.rel (%p170) target = $region16
        $region15: #{tpu_custom_call.1} parent=11 // pred_region
          _
        $region16: #{tpu_custom_call.1} parent=11 // pred_fallthru
          _
        // Predicated region
        $region17: #{tpu_custom_call.1} parent=11 // pred_check
          %p173 = pneg %p87
        $region18: #{tpu_custom_call.1} parent=11 // pred_check_branch
          %175 = sbr.rel (%p173) target = $region20
        $region19: #{tpu_custom_call.1} parent=11 // pred_region
          _
        $region20: #{tpu_custom_call.1} parent=11 // pred_fallthru
          _
        // Predicated region
        $region21: #{tpu_custom_call.1} parent=11 // pred_check
          %p176 = pneg %p108
        $region22: #{tpu_custom_call.1} parent=11 // pred_check_branch
          %178 = sbr.rel (%p176) target = $region24
        $region23: #{tpu_custom_call.1} parent=11 // pred_region
          %s180 = ssub.s32 3584, 3584
          %181 = vsyncadd [#allocation7], %s180
          %s182 = sshll.u32 [#allocation6], 4
          %s183 = int_to_ptr.vmem [resolvable:$true] %s182
          %188 = dma.hbm_to_vmem [thread:$0]  %s3, 3584, %s183, [#allocation7], 512, 512, 32
        $region24: #{tpu_custom_call.1} parent=11 // pred_fallthru
          _
        // Predicated region
        $region25: #{tpu_custom_call.1} parent=11 // pred_check
          %p189 = pneg %p129
        $region26: #{tpu_custom_call.1} parent=11 // pred_check_branch
          %191 = sbr.rel (%p189) target = $region28
        $region27: #{tpu_custom_call.1} parent=11 // pred_region
          _
        $region28: #{tpu_custom_call.1} parent=11 // pred_fallthru
          _
      $region12: #{tpu_custom_call.1} parent=5 // pred_fallthru
        _
      %p192 = scmp.lt.s32.totalorder %s19, 2
      // Predicated region
      $region29: #{tpu_custom_call.1} parent=5 // pred_check
        %p193 = pneg %p192
      $region30: #{tpu_custom_call.1} parent=5 // pred_check_branch
        %195 = sbr.rel (%p193) target = $region32
      $region31: #{tpu_custom_call.1} parent=5 // pred_region
        // Predicated region
        $region33: #{tpu_custom_call.1} parent=31 // pred_check
          %p196 = pneg %p39
        $region34: #{tpu_custom_call.1} parent=31 // pred_check_branch
          %198 = sbr.rel (%p196) target = $region36
        $region35: #{tpu_custom_call.1} parent=31 // pred_region
          %s199 = sand.u32 %s29, 1
          %s200 = scalar_lea.sflag [#allocation4], %s199
          %s201 = sand.u32 %s29, 1
          %s202 = smul.addr %s201, 64
          %s203 = scalar_lea.vmem [#allocation3], %s202
          %s205 = ssub.s32 1024, 1024
          %206 = vsyncadd %s200, %s205
          %s207 = smul.addr %s19, 8
          %s208 = smul.addr %s207, 128
          %s209 = scalar_lea.hbm %s0, %s208
          %s210 = sshll.u32 %s203, 4
          %s211 = int_to_ptr.vmem [resolvable:$true] %s210
          %216 = dma.hbm_to_vmem [thread:$0]  %s209, 1024, %s211, %s200, 256, 256, 16
        $region36: #{tpu_custom_call.1} parent=31 // pred_fallthru
          _
      $region32: #{tpu_custom_call.1} parent=5 // pred_fallthru
        _
      %p217 = scmp.le.s32.totalorder 1, %s19
      %p218 = scmp.lt.s32.totalorder %s19, 3
      %p219 = pnand %p217, %p218
      %p220 = pneg %p219
      // Predicated region
      $region37: #{tpu_custom_call.1} parent=5 // pred_check
        _
      $region38: #{tpu_custom_call.1} parent=5 // pred_check_branch
        %222 = sbr.rel (%p219) target = $region40
      $region39: #{tpu_custom_call.1} parent=5 // pred_region
        %s223 = ssub.s32 %s19, 1
        %s224 = sand.u32 %s32, 1
        %s225 = scalar_lea.sflag [#allocation4], %s224
        %s226 = sand.u32 %s32, 1
        %s227 = smul.addr %s226, 64
        %s228 = scalar_lea.vmem [#allocation3], %s227
        // Predicated region
        $region41: #{tpu_custom_call.1} parent=39 // pred_check
          %p229 = pneg %p45
        $region42: #{tpu_custom_call.1} parent=39 // pred_check_branch
          %231 = sbr.rel (%p229) target = $region44
        $region43: #{tpu_custom_call.1} parent=39 // pred_region
          %232 = dma.done %s225, 1024
        $region44: #{tpu_custom_call.1} parent=39 // pred_fallthru
          _
        // Predicated region
        $region45: #{tpu_custom_call.1} parent=39 // pred_check
          %p233 = pneg %p108
        $region46: #{tpu_custom_call.1} parent=39 // pred_check_branch
          %235 = sbr.rel (%p233) target = $region48
        $region47: #{tpu_custom_call.1} parent=39 // pred_region
          %236 = dma.done [#allocation7], 3584
        $region48: #{tpu_custom_call.1} parent=39 // pred_fallthru
          _
        %s237 = sand.u32 %s32, 1
        %s238 = scalar_lea.sflag [#allocation4], %s237
        %s239 = sand.u32 %s32, 1
        %s240 = smul.addr %s239, 64
        %s241 = scalar_lea.vmem [#allocation3], %s240
        %p242 = pneg %p45
        %p243 = pneg %p42
        %p244 = pneg %p66
        %p245 = pneg %p63
        %p246 = pneg %p87
        %p247 = pneg %p84
        %p248 = pneg %p108
        %p249 = pneg %p105
        %p250 = pneg %p129
        %p251 = pneg %p126
        %p252 = pneg %p155
        %p253 = pneg %p152
        %s254 = sand.u32 %s142, 1
        %s255 = scalar_lea.sflag [#allocation5], %s254
        %s256 = sand.u32 %s142, 1
        %s257 = smul.addr %s256, 64
        %s258 = scalar_lea.vmem [#allocation8], %s257
        %v259 = vld [vmem:[%s228] sm:$0xff]
        %v260 = vld [vmem:[%s228 + $0x8] sm:$0xff]
        %v261 = vld [vmem:[%s228 + $0x10] sm:$0xff]
        %v262 = vld [vmem:[%s228 + $0x18] sm:$0xff]
        %v263 = vld [vmem:[%s228 + $0x20] sm:$0xff]
        %v264 = vld [vmem:[%s228 + $0x28] sm:$0xff]
        %v265 = vld [vmem:[%s228 + $0x30] sm:$0xff]
        %v266 = vld [vmem:[%s228 + $0x38] sm:$0xff]
        %267 = vmatprep.subr.mxu0 %v260
        %268 = vmatpush1.xpose.msra.mxu0 %v259
        %269 = vmatprep.subr.mxu0 %v262
        %270 = vmatpush1.xpose.msra.mxu0 %v261
        %271 = vmatprep.subr.mxu0 %v264
        %272 = vmatpush1.xpose.msra.mxu0 %v263
        %273 = vmatprep.subr.mxu0 %v266
        %274 = vmatpush1.xpose.msra.mxu0 %v265
        %275 = vmatprep.subr.mxu0 0.0
        %276 = vmatpush1.xpose.msra.mxu0 0.0
        %277 = vmatprep.subr.mxu0 0.0
        %278 = vmatpush1.xpose.msra.mxu0 0.0
        %279 = vmatprep.subr.mxu0 0.0
        %280 = vmatpush1.xpose.msra.mxu0 0.0
        %281 = vmatprep.subr.mxu0 0.0
        %282 = vmatpush1.xpose.msra.mxu0 0.0
        %283 = vmatprep.subr.mxu0 0.0
        %284 = vmatpush1.xpose.msra.mxu0 0.0
        %285 = vmatprep.subr.mxu0 0.0
        %286 = vmatpush1.xpose.msra.mxu0 0.0
        %287 = vmatprep.subr.mxu0 0.0
        %288 = vmatpush1.xpose.msra.mxu0 0.0
        %289 = vmatprep.subr.mxu0 0.0
        %290 = vmatpush1.xpose.msra.mxu0 0.0
        %291 = vmatprep.subr.mxu0 0.0
        %292 = vmatpush1.xpose.msra.mxu0 0.0
        %293 = vmatprep.subr.mxu0 0.0
        %294 = vmatpush1.xpose.msra.mxu0 0.0
        %295 = vmatprep.subr.mxu0 0.0
        %296 = vmatpush1.xpose.msra.mxu0 0.0
        %297 = vmatprep.subr.mxu0 0.0
        %298 = vmatpush1.xpose.msra.mxu0 0.0
        %299 = vmatprep.subr.mxu0 0.0
        %300 = vmatpush1.xpose.msra.mxu0 0.0
        %301 = vmatprep.subr.mxu0 0.0
        %302 = vmatpush1.xpose.msra.mxu0 0.0
        %303 = vmatprep.subr.mxu0 0.0
        %304 = vmatpush1.xpose.msra.mxu0 0.0
        %305 = vmatprep.subr.mxu0 0.0
        %306 = vmatpush1.xpose.msra.mxu0 0.0
        %307 = vmatprep.subr.mxu0 0.0
        %308 = vmatpush1.xpose.msra.mxu0 0.0
        %309 = vmatprep.subr.mxu0 0.0
        %310 = vmatpush1.xpose.msra.mxu0 0.0
        %311 = vmatprep.subr.mxu0 0.0
        %312 = vmatpush1.xpose.msra.mxu0 0.0
        %313 = vmatprep.subr.mxu0 0.0
        %314 = vmatpush1.xpose.msra.mxu0 0.0
        %315 = vmatprep.subr.mxu0 0.0
        %316 = vmatpush1.xpose.msra.mxu0 0.0
        %317 = vmatprep.subr.mxu0 0.0
        %318 = vmatpush1.xpose.msra.mxu0 0.0
        %319 = vmatprep.subr.mxu0 0.0
        %320 = vmatpush1.xpose.msra.mxu0 0.0
        %321 = vmatprep.subr.mxu0 0.0
        %322 = vmatpush1.xpose.msra.mxu0 0.0
        %323 = vmatprep.subr.mxu0 0.0
        %324 = vmatpush1.xpose.msra.mxu0 0.0
        %325 = vmatprep.subr.mxu0 0.0
        %326 = vmatpush1.xpose.msra.mxu0 0.0
        %327 = vmatprep.subr.mxu0 0.0
        %328 = vmatpush1.xpose.msra.mxu0 0.0
        %329 = vmatprep.subr.mxu0 0.0
        %330 = vmatpush1.xpose.msra.mxu0 0.0
        %331 = vmatprep.mubr.f32.mxu0 0.00390625
        %332 = vmatmul.mubr.f32.gmra.mrb[0].mxu0 0.00390625
        %v333 = vpop.f32.mrb[0].mxu0
        %v334 = vadd.f32 0.0, %v333
        %v335 = vpop.f32.mrb[0].mxu0
        %336 = vdwg.mxu0
        %v337 = vmax.f32 %v259, %v260
        %338 = vmax.xlane.f32.xlu0 %v337
        %v339 = vpop.xlane.xlu0 %338
        %v340 = vmax.f32 %v261, %v262
        %341 = vmax.xlane.f32.xlu0 %v340
        %v342 = vpop.xlane.xlu0 %341
        %v343 = vmax.f32 %v263, %v264
        %344 = vmax.xlane.f32.xlu0 %v343
        %v345 = vpop.xlane.xlu0 %344
        %v346 = vmax.f32 %v265, %v266
        %347 = vmax.xlane.f32.xlu0 %v346
        %v348 = vpop.xlane.xlu0 %347
        %v349 = vld [vmem:[%s1] sm:$0xff]
        %v350 = vld [vmem:[%s1 + $0x8] sm:$0xff]
        %v351 = vld [vmem:[%s1 + $0x10] sm:$0xff]
        %v352 = vld [vmem:[%s1 + $0x18] sm:$0xff]
        %v353 = vld [vmem:[%s2] sm:$0x3]
        %vm354 = vcmask 261120
        %v356 = vsel %vm354, %v334, 0
        %358 = vmatprep.subr.mxu0 0.0
        %359 = vmatpush1.msra.mxu0 %v349
        %360 = vmatprep.subr.mxu0 0.0
        %361 = vmatpush1.msra.mxu0 %v350
        %362 = vmatprep.subr.mxu0 0.0
        %363 = vmatpush1.msra.mxu0 %v351
        %364 = vmatprep.subr.mxu0 0.0
        %365 = vmatpush1.msra.mxu0 %v352
        %366 = vmatprep.subr.mxu0 0.0
        %367 = vmatpush1.msra.mxu0 0.0
        %368 = vmatprep.subr.mxu0 0.0
        %369 = vmatpush1.msra.mxu0 0.0
        %370 = vmatprep.subr.mxu0 0.0
        %371 = vmatpush1.msra.mxu0 0.0
        %372 = vmatprep.subr.mxu0 0.0
        %373 = vmatpush1.msra.mxu0 0.0
        %374 = vmatprep.subr.mxu0 0.0
        %375 = vmatpush1.msra.mxu0 0.0
        %376 = vmatprep.subr.mxu0 0.0
        %377 = vmatpush1.msra.mxu0 0.0
        %378 = vmatprep.subr.mxu0 0.0
        %379 = vmatpush1.msra.mxu0 0.0
        %380 = vmatprep.subr.mxu0 0.0
        %381 = vmatpush1.msra.mxu0 0.0
        %382 = vmatprep.subr.mxu0 0.0
        %383 = vmatpush1.msra.mxu0 0.0
        %384 = vmatprep.subr.mxu0 0.0
        %385 = vmatpush1.msra.mxu0 0.0
        %386 = vmatprep.subr.mxu0 0.0
        %387 = vmatpush1.msra.mxu0 0.0
        %388 = vmatprep.subr.mxu0 0.0
        %389 = vmatpush1.msra.mxu0 0.0
        %390 = vmatprep.subr.mxu0 0.0
        %391 = vmatpush1.msra.mxu0 0.0
        %392 = vmatprep.subr.mxu0 0.0
        %393 = vmatpush1.msra.mxu0 0.0
        %394 = vmatprep.subr.mxu0 0.0
        %395 = vmatpush1.msra.mxu0 0.0
        %396 = vmatprep.subr.mxu0 0.0
        %397 = vmatpush1.msra.mxu0 0.0
        %398 = vmatprep.subr.mxu0 0.0
        %399 = vmatpush1.msra.mxu0 0.0
        %400 = vmatprep.subr.mxu0 0.0
        %401 = vmatpush1.msra.mxu0 0.0
        %402 = vmatprep.subr.mxu0 0.0
        %403 = vmatpush1.msra.mxu0 0.0
        %404 = vmatprep.subr.mxu0 0.0
        %405 = vmatpush1.msra.mxu0 0.0
        %406 = vmatprep.subr.mxu0 0.0
        %407 = vmatpush1.msra.mxu0 0.0
        %408 = vmatprep.subr.mxu0 0.0
        %409 = vmatpush1.msra.mxu0 0.0
        %410 = vmatprep.subr.mxu0 0.0
        %411 = vmatpush1.msra.mxu0 0.0
        %412 = vmatprep.subr.mxu0 0.0
        %413 = vmatpush1.msra.mxu0 0.0
        %414 = vmatprep.subr.mxu0 0.0
        %415 = vmatpush1.msra.mxu0 0.0
        %416 = vmatprep.subr.mxu0 0.0
        %417 = vmatpush1.msra.mxu0 0.0
        %418 = vmatprep.subr.mxu0 0.0
        %419 = vmatpush1.msra.mxu0 0.0
        %420 = vmatprep.subr.mxu0 0.0
        %421 = vmatpush1.msra.mxu0 0.0
        %422 = vmatprep.mubr.f32.mxu0 0.0
        %423 = vmatmul.mubr.f32.gmra.mrb[0].mxu0 %v356
        %v424 = vpop.f32.mrb[0].mxu0
        %v425 = vadd.f32 0.0, %v424
        %v426 = vpop.f32.mrb[0].mxu0
        %427 = vdwg.mxu0
        %v428 = vmax.f32 %v425, 0.0
        %v433 = vlaneseq
        %v434 = vand.u32 %v433, 127
        %v435 = vlaneseq
        %v436 = vshrl.u32 %v435, 7
        %v437 = vsub.s32 %v434, %v436
        %v438 = vrot.slane %v339, %v437
        %v439 = vadd.s32 %v434, 4294967288
        %v440 = vlaneseq
        %v441 = vshrl.u32 %v440, 7
        %v442 = vsub.s32 %v439, %v441
        %v443 = vrot.slane %v342, %v442
        %vm444 = vcmask 130112
        %v445 = vsel %vm444, %v443, %v438
        %v446 = vadd.s32 %v434, 4294967280
        %v447 = vlaneseq
        %v448 = vshrl.u32 %v447, 7
        %v449 = vsub.s32 %v446, %v448
        %v450 = vrot.slane %v345, %v449
        %vm451 = vcmask 195712
        %v452 = vsel %vm451, %v450, %v445
        %v453 = vadd.s32 %v434, 4294967272
        %v454 = vlaneseq
        %v455 = vshrl.u32 %v454, 7
        %v456 = vsub.s32 %v453, %v455
        %v457 = vrot.slane %v348, %v456
        %vm458 = vcmask 261312
        %v459 = vsel %vm458, %v457, %v452
        %v460 = vsel %vm354, %v459, 0
        %462 = vmatprep.subr.mxu0 0.0
        %463 = vmatpush1.msra.mxu0 %v349
        %464 = vmatprep.subr.mxu0 0.0
        %465 = vmatpush1.msra.mxu0 %v350
        %466 = vmatprep.subr.mxu0 0.0
        %467 = vmatpush1.msra.mxu0 %v351
        %468 = vmatprep.subr.mxu0 0.0
        %469 = vmatpush1.msra.mxu0 %v352
        %470 = vmatprep.subr.mxu0 0.0
        %471 = vmatpush1.msra.mxu0 0.0
        %472 = vmatprep.subr.mxu0 0.0
        %473 = vmatpush1.msra.mxu0 0.0
        %474 = vmatprep.subr.mxu0 0.0
        %475 = vmatpush1.msra.mxu0 0.0
        %476 = vmatprep.subr.mxu0 0.0
        %477 = vmatpush1.msra.mxu0 0.0
        %478 = vmatprep.subr.mxu0 0.0
        %479 = vmatpush1.msra.mxu0 0.0
        %480 = vmatprep.subr.mxu0 0.0
        %481 = vmatpush1.msra.mxu0 0.0
        %482 = vmatprep.subr.mxu0 0.0
        %483 = vmatpush1.msra.mxu0 0.0
        %484 = vmatprep.subr.mxu0 0.0
        %485 = vmatpush1.msra.mxu0 0.0
        %486 = vmatprep.subr.mxu0 0.0
        %487 = vmatpush1.msra.mxu0 0.0
        %488 = vmatprep.subr.mxu0 0.0
        %489 = vmatpush1.msra.mxu0 0.0
        %490 = vmatprep.subr.mxu0 0.0
        %491 = vmatpush1.msra.mxu0 0.0
        %492 = vmatprep.subr.mxu0 0.0
        %493 = vmatpush1.msra.mxu0 0.0
        %494 = vmatprep.subr.mxu0 0.0
        %495 = vmatpush1.msra.mxu0 0.0
        %496 = vmatprep.subr.mxu0 0.0
        %497 = vmatpush1.msra.mxu0 0.0
        %498 = vmatprep.subr.mxu0 0.0
        %499 = vmatpush1.msra.mxu0 0.0
        %500 = vmatprep.subr.mxu0 0.0
        %501 = vmatpush1.msra.mxu0 0.0
        %502 = vmatprep.subr.mxu0 0.0
        %503 = vmatpush1.msra.mxu0 0.0
        %504 = vmatprep.subr.mxu0 0.0
        %505 = vmatpush1.msra.mxu0 0.0
        %506 = vmatprep.subr.mxu0 0.0
        %507 = vmatpush1.msra.mxu0 0.0
        %508 = vmatprep.subr.mxu0 0.0
        %509 = vmatpush1.msra.mxu0 0.0
        %510 = vmatprep.subr.mxu0 0.0
        %511 = vmatpush1.msra.mxu0 0.0
        %512 = vmatprep.subr.mxu0 0.0
        %513 = vmatpush1.msra.mxu0 0.0
        %514 = vmatprep.subr.mxu0 0.0
        %515 = vmatpush1.msra.mxu0 0.0
        %516 = vmatprep.subr.mxu0 0.0
        %517 = vmatpush1.msra.mxu0 0.0
        %518 = vmatprep.subr.mxu0 0.0
        %519 = vmatpush1.msra.mxu0 0.0
        %520 = vmatprep.subr.mxu0 0.0
        %521 = vmatpush1.msra.mxu0 0.0
        %522 = vmatprep.subr.mxu0 0.0
        %523 = vmatpush1.msra.mxu0 0.0
        %524 = vmatprep.subr.mxu0 0.0
        %525 = vmatpush1.msra.mxu0 0.0
        %526 = vmatprep.mubr.f32.mxu0 0.0
        %527 = vmatmul.mubr.f32.gmra.mrb[0].mxu0 %v460
        %v528 = vpop.f32.mrb[0].mxu0
        %v529 = vadd.f32 0.0, %v528
        %v530 = vpop.f32.mrb[0].mxu0
        %531 = vdwg.mxu0
        %v532 = vmax.f32 %v529, 0.0
        %v533 = vadd.f32 %v428, %v532
        %vm534 = vcmask 15360
        %v536 = vsel %vm534, %v533, 0
        %vm538 = vcmask 1041408
        %v540 = vsel %vm538, %v353, 0
        %542 = vmatprep.subr.mxu0 0.0
        %543 = vmatpush1.msra.mxu0 %v540
        %544 = vmatprep.subr.mxu0 0.0
        %545 = vmatpush1.msra.mxu0 0.0
        %546 = vmatprep.subr.mxu0 0.0
        %547 = vmatpush1.msra.mxu0 0.0
        %548 = vmatprep.subr.mxu0 0.0
        %549 = vmatpush1.msra.mxu0 0.0
        %550 = vmatprep.subr.mxu0 0.0
        %551 = vmatpush1.msra.mxu0 0.0
        %552 = vmatprep.subr.mxu0 0.0
        %553 = vmatpush1.msra.mxu0 0.0
        %554 = vmatprep.subr.mxu0 0.0
        %555 = vmatpush1.msra.mxu0 0.0
        %556 = vmatprep.subr.mxu0 0.0
        %557 = vmatpush1.msra.mxu0 0.0
        %558 = vmatprep.subr.mxu0 0.0
        %559 = vmatpush1.msra.mxu0 0.0
        %560 = vmatprep.subr.mxu0 0.0
        %561 = vmatpush1.msra.mxu0 0.0
        %562 = vmatprep.subr.mxu0 0.0
        %563 = vmatpush1.msra.mxu0 0.0
        %564 = vmatprep.subr.mxu0 0.0
        %565 = vmatpush1.msra.mxu0 0.0
        %566 = vmatprep.subr.mxu0 0.0
        %567 = vmatpush1.msra.mxu0 0.0
        %568 = vmatprep.subr.mxu0 0.0
        %569 = vmatpush1.msra.mxu0 0.0
        %570 = vmatprep.subr.mxu0 0.0
        %571 = vmatpush1.msra.mxu0 0.0
        %572 = vmatprep.subr.mxu0 0.0
        %573 = vmatpush1.msra.mxu0 0.0
        %574 = vmatprep.subr.mxu0 0.0
        %575 = vmatpush1.msra.mxu0 0.0
        %576 = vmatprep.subr.mxu0 0.0
        %577 = vmatpush1.msra.mxu0 0.0
        %578 = vmatprep.subr.mxu0 0.0
        %579 = vmatpush1.msra.mxu0 0.0
        %580 = vmatprep.subr.mxu0 0.0
        %581 = vmatpush1.msra.mxu0 0.0
        %582 = vmatprep.subr.mxu0 0.0
        %583 = vmatpush1.msra.mxu0 0.0
        %584 = vmatprep.subr.mxu0 0.0
        %585 = vmatpush1.msra.mxu0 0.0
        %586 = vmatprep.subr.mxu0 0.0
        %587 = vmatpush1.msra.mxu0 0.0
        %588 = vmatprep.subr.mxu0 0.0
        %589 = vmatpush1.msra.mxu0 0.0
        %590 = vmatprep.subr.mxu0 0.0
        %591 = vmatpush1.msra.mxu0 0.0
        %592 = vmatprep.subr.mxu0 0.0
        %593 = vmatpush1.msra.mxu0 0.0
        %594 = vmatprep.subr.mxu0 0.0
        %595 = vmatpush1.msra.mxu0 0.0
        %596 = vmatprep.subr.mxu0 0.0
        %597 = vmatpush1.msra.mxu0 0.0
        %598 = vmatprep.subr.mxu0 0.0
        %599 = vmatpush1.msra.mxu0 0.0
        %600 = vmatprep.subr.mxu0 0.0
        %601 = vmatpush1.msra.mxu0 0.0
        %602 = vmatprep.subr.mxu0 0.0
        %603 = vmatpush1.msra.mxu0 0.0
        %604 = vmatprep.subr.mxu0 0.0
        %605 = vmatpush1.msra.mxu0 0.0
        %606 = vmatprep.mubr.f32.mxu0 0.0
        %607 = vmatmul.mubr.f32.gmra.mrb[0].mxu0 %v536
        %v608 = vpop.f32.mrb[0].mxu0
        %v609 = vadd.f32 0.0, %v608
        %v610 = vpop.f32.mrb[0].mxu0
        %611 = vdwg.mxu0
        %v612 = vxor.u32 %v609, 2147483648
        %v613 = vmul.f32 %v612, 1.442695
        %v614 = vpow.pop %v613
        %v615 = vadd.f32 %v614, 1.0
        %v616 = vrcp.pop %v615
        %v617 = vmul.f32 1.0, %v616
        %v619 = vsel %vm354, %v617, 0
        %621 = vmatprep.subr.mxu0 %v260
        %622 = vmatpush1.msra.mxu0 %v259
        %623 = vmatprep.subr.mxu0 %v262
        %624 = vmatpush1.msra.mxu0 %v261
        %625 = vmatprep.subr.mxu0 %v264
        %626 = vmatpush1.msra.mxu0 %v263
        %627 = vmatprep.subr.mxu0 %v266
        %628 = vmatpush1.msra.mxu0 %v265
        %629 = vmatprep.subr.mxu0 0.0
        %630 = vmatpush1.msra.mxu0 0.0
        %631 = vmatprep.subr.mxu0 0.0
        %632 = vmatpush1.msra.mxu0 0.0
        %633 = vmatprep.subr.mxu0 0.0
        %634 = vmatpush1.msra.mxu0 0.0
        %635 = vmatprep.subr.mxu0 0.0
        %636 = vmatpush1.msra.mxu0 0.0
        %637 = vmatprep.subr.mxu0 0.0
        %638 = vmatpush1.msra.mxu0 0.0
        %639 = vmatprep.subr.mxu0 0.0
        %640 = vmatpush1.msra.mxu0 0.0
        %641 = vmatprep.subr.mxu0 0.0
        %642 = vmatpush1.msra.mxu0 0.0
        %643 = vmatprep.subr.mxu0 0.0
        %644 = vmatpush1.msra.mxu0 0.0
        %645 = vmatprep.subr.mxu0 0.0
        %646 = vmatpush1.msra.mxu0 0.0
        %647 = vmatprep.subr.mxu0 0.0
        %648 = vmatpush1.msra.mxu0 0.0
        %649 = vmatprep.subr.mxu0 0.0
        %650 = vmatpush1.msra.mxu0 0.0
        %651 = vmatprep.subr.mxu0 0.0
        %652 = vmatpush1.msra.mxu0 0.0
        %653 = vmatprep.subr.mxu0 0.0
        %654 = vmatpush1.msra.mxu0 0.0
        %655 = vmatprep.subr.mxu0 0.0
        %656 = vmatpush1.msra.mxu0 0.0
        %657 = vmatprep.subr.mxu0 0.0
        %658 = vmatpush1.msra.mxu0 0.0
        %659 = vmatprep.subr.mxu0 0.0
        %660 = vmatpush1.msra.mxu0 0.0
        %661 = vmatprep.subr.mxu0 0.0
        %662 = vmatpush1.msra.mxu0 0.0
        %663 = vmatprep.subr.mxu0 0.0
        %664 = vmatpush1.msra.mxu0 0.0
        %665 = vmatprep.subr.mxu0 0.0
        %666 = vmatpush1.msra.mxu0 0.0
        %667 = vmatprep.subr.mxu0 0.0
        %668 = vmatpush1.msra.mxu0 0.0
        %669 = vmatprep.subr.mxu0 0.0
        %670 = vmatpush1.msra.mxu0 0.0
        %671 = vmatprep.subr.mxu0 0.0
        %672 = vmatpush1.msra.mxu0 0.0
        %673 = vmatprep.subr.mxu0 0.0
        %674 = vmatpush1.msra.mxu0 0.0
        %675 = vmatprep.subr.mxu0 0.0
        %676 = vmatpush1.msra.mxu0 0.0
        %677 = vmatprep.subr.mxu0 0.0
        %678 = vmatpush1.msra.mxu0 0.0
        %679 = vmatprep.subr.mxu0 0.0
        %680 = vmatpush1.msra.mxu0 0.0
        %681 = vmatprep.subr.mxu0 0.0
        %682 = vmatpush1.msra.mxu0 0.0
        %683 = vmatprep.subr.mxu0 0.0
        %684 = vmatpush1.msra.mxu0 0.0
        %685 = vmatprep.mubr.f32.mxu0 0.0
        %686 = vmatmul.mubr.f32.gmra.mrb[0].mxu0 %v619
        %v687 = vpop.f32.mrb[0].mxu0
        %v688 = vadd.f32 0.0, %v687
        %v689 = vpop.f32.mrb[0].mxu0
        %v690 = vadd.f32 0.0, %v689
        %691 = vdwg.mxu0
        %v692 = vmul.f32 %v688, 0.03125
        %v693 = vmul.f32 %v690, 0.03125
        %v694 = vlaneseq
        %v695 = vshrl.u32 %v694, 7
        %v696 = vsub.s32 0, %v695
        %v697 = vrot.slane %v617, %v696
        %699 = vbcast.lane.b32.xlu0 %v697, 256
        %v700 = vpop.permute.xlu0 %699
        %s702 = sor.u32 256, 8
        %703 = vbcast.lane.b32.xlu0 %v697, %s702
        %v704 = vpop.permute.xlu0 %703
        %s706 = sor.u32 256, 16
        %707 = vbcast.lane.b32.xlu0 %v697, %s706
        %v708 = vpop.permute.xlu0 %707
        %s710 = sor.u32 256, 24
        %711 = vbcast.lane.b32.xlu0 %v697, %s710
        %v712 = vpop.permute.xlu0 %711
        %v713 = vmul.f32 %v259, %v700
        %v714 = vmul.f32 %v260, %v700
        %v715 = vmul.f32 %v261, %v704
        %v716 = vmul.f32 %v262, %v704
        %v717 = vmul.f32 %v263, %v708
        %v718 = vmul.f32 %v264, %v708
        %v719 = vmul.f32 %v265, %v712
        %v720 = vmul.f32 %v266, %v712
        %v721 = vmax.f32 %v713, %v717
        %v722 = vmax.f32 %v715, %v719
        %v723 = vmax.f32 %v721, %v722
        %v724 = vrot.slane %v723, 4
        %v725 = vmax.f32 %v723, %v724
        %v726 = vrot.slane %v725, 2
        %v727 = vmax.f32 %v725, %v726
        %v728 = vrot.slane %v727, 1
        %v729 = vmax.f32 %v727, %v728
        %v730 = vmax.f32 %v714, %v718
        %v731 = vmax.f32 %v716, %v720
        %v732 = vmax.f32 %v730, %v731
        %v733 = vrot.slane %v732, 4
        %v734 = vmax.f32 %v732, %v733
        %v735 = vrot.slane %v734, 2
        %v736 = vmax.f32 %v734, %v735
        %v737 = vrot.slane %v736, 1
        %v738 = vmax.f32 %v736, %v737
        %739 = vrot.lane.b32.xlu0 %v729, 51
        %v740 = vpop.permute.xlu0 %739
        %741 = vrot.lane.b32.xlu0 %v738, 51
        %v742 = vpop.permute.xlu0 %741
        %743 = vrot.lane.b32.xlu0 %v692, 51
        %v744 = vpop.permute.xlu0 %743
        %745 = vrot.lane.b32.xlu0 %v693, 51
        %v746 = vpop.permute.xlu0 %745
        %vm747 = vcmp.lt.s32.totalorder %v434, 51
        %v748 = vsel %vm747, %v744, %v746
        %v749 = vsel %vm747, %v742, %v744
        %v750 = vsel %vm747, %v740, %v742
        %v751 = vsel %vm747, %v746, %v740
        %v752 = vld [vmem:[#allocation6] ss:$8 sm:$0xf]
        %v757 = vcombine.low %v751, %v750
        %v758 = vcombine.low %v749, %v748
        %v760 = vunpack.c.l.s4 1966171168
        %v761 = vunpack.c.0.s8 %v760
        %v762 = vlaneseq
        %v763 = vshrl.u32 %v762, 7
        %v764 = vsub.s32 %v761, %v763
        %v765 = vrot.slane %v757, %v764
        %v767 = vunpack.c.l.s4 1966171168
        %v768 = vunpack.c.0.s8 %v767
        %v769 = vlaneseq
        %v770 = vshrl.u32 %v769, 7
        %v771 = vsub.s32 %v768, %v770
        %v772 = vrot.slane %v758, %v771
        %v773 = vcombine.low %v765, %v772
        %v775 = vunpack.c.l.s4 1966171168
        %v776 = vunpack.c.0.s8 %v775
        %v777 = vlaneseq
        %v778 = vshrl.u32 %v777, 7
        %v779 = vsub.s32 %v776, %v778
        %v780 = vrot.slane %v773, %v779
        %v782 = vmul.f32 %v752, %v780
        %v783 = vadd.f32 %v782, 0.0
        %784 = vrot.lane.b32.xlu0 %v729, 50
        %v785 = vpop.permute.xlu0 %784
        %786 = vrot.lane.b32.xlu0 %v738, 50
        %v787 = vpop.permute.xlu0 %786
        %788 = vrot.lane.b32.xlu0 %v692, 50
        %v789 = vpop.permute.xlu0 %788
        %790 = vrot.lane.b32.xlu0 %v693, 50
        %v791 = vpop.permute.xlu0 %790
        %vm792 = vcmp.lt.s32.totalorder %v434, 50
        %v793 = vsel %vm792, %v789, %v791
        %v794 = vsel %vm792, %v787, %v789
        %v795 = vsel %vm792, %v785, %v787
        %v796 = vsel %vm792, %v791, %v785
        %s797 = scalar_lea.vmem [#allocation6], 1
        %v798 = vld [vmem:[%s797] ss:$8 sm:$0xf]
        %v803 = vcombine.low %v796, %v795
        %v804 = vcombine.low %v794, %v793
        %v806 = vunpack.c.l.s4 1966171168
        %v807 = vunpack.c.0.s8 %v806
        %v808 = vlaneseq
        %v809 = vshrl.u32 %v808, 7
        %v810 = vsub.s32 %v807, %v809
        %v811 = vrot.slane %v803, %v810
        %v813 = vunpack.c.l.s4 1966171168
        %v814 = vunpack.c.0.s8 %v813
        %v815 = vlaneseq
        %v816 = vshrl.u32 %v815, 7
        %v817 = vsub.s32 %v814, %v816
        %v818 = vrot.slane %v804, %v817
        %v819 = vcombine.low %v811, %v818
        %v821 = vunpack.c.l.s4 1966171168
        %v822 = vunpack.c.0.s8 %v821
        %v823 = vlaneseq
        %v824 = vshrl.u32 %v823, 7
        %v825 = vsub.s32 %v822, %v824
        %v826 = vrot.slane %v819, %v825
        %v828 = vmul.f32 %v798, %v826
        %v829 = vadd.f32 %v828, 0.0
        %830 = vrot.lane.b32.xlu0 %v729, 49
        %v831 = vpop.permute.xlu0 %830
        %832 = vrot.lane.b32.xlu0 %v738, 49
        %v833 = vpop.permute.xlu0 %832
        %834 = vrot.lane.b32.xlu0 %v692, 49
        %v835 = vpop.permute.xlu0 %834
        %836 = vrot.lane.b32.xlu0 %v693, 49
        %v837 = vpop.permute.xlu0 %836
        %vm838 = vcmp.lt.s32.totalorder %v434, 49
        %v839 = vsel %vm838, %v835, %v837
        %v840 = vsel %vm838, %v833, %v835
        %v841 = vsel %vm838, %v831, %v833
        %v842 = vsel %vm838, %v837, %v831
        %s843 = scalar_lea.vmem [#allocation6], 2
        %v844 = vld [vmem:[%s843] ss:$8 sm:$0xf]
        %v849 = vcombine.low %v842, %v841
        %v850 = vcombine.low %v840, %v839
        %v852 = vunpack.c.l.s4 1966171168
        %v853 = vunpack.c.0.s8 %v852
        %v854 = vlaneseq
        %v855 = vshrl.u32 %v854, 7
        %v856 = vsub.s32 %v853, %v855
        %v857 = vrot.slane %v849, %v856
        %v859 = vunpack.c.l.s4 1966171168
        %v860 = vunpack.c.0.s8 %v859
        %v861 = vlaneseq
        %v862 = vshrl.u32 %v861, 7
        %v863 = vsub.s32 %v860, %v862
        %v864 = vrot.slane %v850, %v863
        %v865 = vcombine.low %v857, %v864
        %v867 = vunpack.c.l.s4 1966171168
        %v868 = vunpack.c.0.s8 %v867
        %v869 = vlaneseq
        %v870 = vshrl.u32 %v869, 7
        %v871 = vsub.s32 %v868, %v870
        %v872 = vrot.slane %v865, %v871
        %v874 = vmul.f32 %v844, %v872
        %v875 = vadd.f32 %v874, 0.0
        %876 = vrot.lane.b32.xlu0 %v729, 48
        %v877 = vpop.permute.xlu0 %876
        %878 = vrot.lane.b32.xlu0 %v738, 48
        %v879 = vpop.permute.xlu0 %878
        %880 = vrot.lane.b32.xlu0 %v692, 48
        %v881 = vpop.permute.xlu0 %880
        %882 = vrot.lane.b32.xlu0 %v693, 48
        %v883 = vpop.permute.xlu0 %882
        %vm884 = vcmp.lt.s32.totalorder %v434, 48
        %v885 = vsel %vm884, %v881, %v883
        %v886 = vsel %vm884, %v879, %v881
        %v887 = vsel %vm884, %v877, %v879
        %v888 = vsel %vm884, %v883, %v877
        %s889 = scalar_lea.vmem [#allocation6], 3
        %v890 = vld [vmem:[%s889] ss:$8 sm:$0xf]
        %v895 = vcombine.low %v888, %v887
        %v896 = vcombine.low %v886, %v885
        %v898 = vunpack.c.l.s4 1966171168
        %v899 = vunpack.c.0.s8 %v898
        %v900 = vlaneseq
        %v901 = vshrl.u32 %v900, 7
        %v902 = vsub.s32 %v899, %v901
        %v903 = vrot.slane %v895, %v902
        %v905 = vunpack.c.l.s4 1966171168
        %v906 = vunpack.c.0.s8 %v905
        %v907 = vlaneseq
        %v908 = vshrl.u32 %v907, 7
        %v909 = vsub.s32 %v906, %v908
        %v910 = vrot.slane %v896, %v909
        %v911 = vcombine.low %v903, %v910
        %v913 = vunpack.c.l.s4 1966171168
        %v914 = vunpack.c.0.s8 %v913
        %v915 = vlaneseq
        %v916 = vshrl.u32 %v915, 7
        %v917 = vsub.s32 %v914, %v916
        %v918 = vrot.slane %v911, %v917
        %v920 = vmul.f32 %v890, %v918
        %v921 = vadd.f32 %v920, 0.0
        %922 = vrot.lane.b32.xlu0 %v729, 47
        %v923 = vpop.permute.xlu0 %922
        %924 = vrot.lane.b32.xlu0 %v738, 47
        %v925 = vpop.permute.xlu0 %924
        %926 = vrot.lane.b32.xlu0 %v692, 47
        %v927 = vpop.permute.xlu0 %926
        %928 = vrot.lane.b32.xlu0 %v693, 47
        %v929 = vpop.permute.xlu0 %928
        %vm930 = vcmp.lt.s32.totalorder %v434, 47
        %v931 = vsel %vm930, %v927, %v929
        %v932 = vsel %vm930, %v925, %v927
        %v933 = vsel %vm930, %v923, %v925
        %v934 = vsel %vm930, %v929, %v923
        %s935 = scalar_lea.vmem [#allocation6], 4
        %v936 = vld [vmem:[%s935] ss:$8 sm:$0xf]
        %v941 = vcombine.low %v934, %v933
        %v942 = vcombine.low %v932, %v931
        %v944 = vunpack.c.l.s4 1966171168
        %v945 = vunpack.c.0.s8 %v944
        %v946 = vlaneseq
        %v947 = vshrl.u32 %v946, 7
        %v948 = vsub.s32 %v945, %v947
        %v949 = vrot.slane %v941, %v948
        %v951 = vunpack.c.l.s4 1966171168
        %v952 = vunpack.c.0.s8 %v951
        %v953 = vlaneseq
        %v954 = vshrl.u32 %v953, 7
        %v955 = vsub.s32 %v952, %v954
        %v956 = vrot.slane %v942, %v955
        %v957 = vcombine.low %v949, %v956
        %v959 = vunpack.c.l.s4 1966171168
        %v960 = vunpack.c.0.s8 %v959
        %v961 = vlaneseq
        %v962 = vshrl.u32 %v961, 7
        %v963 = vsub.s32 %v960, %v962
        %v964 = vrot.slane %v957, %v963
        %v966 = vmul.f32 %v936, %v964
        %v967 = vadd.f32 %v783, %v966
        %968 = vrot.lane.b32.xlu0 %v729, 46
        %v969 = vpop.permute.xlu0 %968
        %970 = vrot.lane.b32.xlu0 %v738, 46
        %v971 = vpop.permute.xlu0 %970
        %972 = vrot.lane.b32.xlu0 %v692, 46
        %v973 = vpop.permute.xlu0 %972
        %974 = vrot.lane.b32.xlu0 %v693, 46
        %v975 = vpop.permute.xlu0 %974
        %vm976 = vcmp.lt.s32.totalorder %v434, 46
        %v977 = vsel %vm976, %v973, %v975
        %v978 = vsel %vm976, %v971, %v973
        %v979 = vsel %vm976, %v969, %v971
        %v980 = vsel %vm976, %v975, %v969
        %s981 = scalar_lea.vmem [#allocation6], 5
        %v982 = vld [vmem:[%s981] ss:$8 sm:$0xf]
        %v987 = vcombine.low %v980, %v979
        %v988 = vcombine.low %v978, %v977
        %v990 = vunpack.c.l.s4 1966171168
        %v991 = vunpack.c.0.s8 %v990
        %v992 = vlaneseq
        %v993 = vshrl.u32 %v992, 7
        %v994 = vsub.s32 %v991, %v993
        %v995 = vrot.slane %v987, %v994
        %v997 = vunpack.c.l.s4 1966171168
        %v998 = vunpack.c.0.s8 %v997
        %v999 = vlaneseq
        %v1000 = vshrl.u32 %v999, 7
        %v1001 = vsub.s32 %v998, %v1000
        %v1002 = vrot.slane %v988, %v1001
        %v1003 = vcombine.low %v995, %v1002
        %v1005 = vunpack.c.l.s4 1966171168
        %v1006 = vunpack.c.0.s8 %v1005
        %v1007 = vlaneseq
        %v1008 = vshrl.u32 %v1007, 7
        %v1009 = vsub.s32 %v1006, %v1008
        %v1010 = vrot.slane %v1003, %v1009
        %v1012 = vmul.f32 %v982, %v1010
        %v1013 = vadd.f32 %v829, %v1012
        %1014 = vrot.lane.b32.xlu0 %v729, 45
        %v1015 = vpop.permute.xlu0 %1014
        %1016 = vrot.lane.b32.xlu0 %v738, 45
        %v1017 = vpop.permute.xlu0 %1016
        %1018 = vrot.lane.b32.xlu0 %v692, 45
        %v1019 = vpop.permute.xlu0 %1018
        %1020 = vrot.lane.b32.xlu0 %v693, 45
        %v1021 = vpop.permute.xlu0 %1020
        %vm1022 = vcmp.lt.s32.totalorder %v434, 45
        %v1023 = vsel %vm1022, %v1019, %v1021
        %v1024 = vsel %vm1022, %v1017, %v1019
        %v1025 = vsel %vm1022, %v1015, %v1017
        %v1026 = vsel %vm1022, %v1021, %v1015
        %s1027 = scalar_lea.vmem [#allocation6], 6
        %v1028 = vld [vmem:[%s1027] ss:$8 sm:$0xf]
        %v1033 = vcombine.low %v1026, %v1025
        %v1034 = vcombine.low %v1024, %v1023
        %v1036 = vunpack.c.l.s4 1966171168
        %v1037 = vunpack.c.0.s8 %v1036
        %v1038 = vlaneseq
        %v1039 = vshrl.u32 %v1038, 7
        %v1040 = vsub.s32 %v1037, %v1039
        %v1041 = vrot.slane %v1033, %v1040
        %v1043 = vunpack.c.l.s4 1966171168
        %v1044 = vunpack.c.0.s8 %v1043
        %v1045 = vlaneseq
        %v1046 = vshrl.u32 %v1045, 7
        %v1047 = vsub.s32 %v1044, %v1046
        %v1048 = vrot.slane %v1034, %v1047
        %v1049 = vcombine.low %v1041, %v1048
        %v1051 = vunpack.c.l.s4 1966171168
        %v1052 = vunpack.c.0.s8 %v1051
        %v1053 = vlaneseq
        %v1054 = vshrl.u32 %v1053, 7
        %v1055 = vsub.s32 %v1052, %v1054
        %v1056 = vrot.slane %v1049, %v1055
        %v1058 = vmul.f32 %v1028, %v1056
        %v1059 = vadd.f32 %v875, %v1058
        %1060 = vrot.lane.b32.xlu0 %v729, 35
        %v1061 = vpop.permute.xlu0 %1060
        %1062 = vrot.lane.b32.xlu0 %v738, 35
        %v1063 = vpop.permute.xlu0 %1062
        %1064 = vrot.lane.b32.xlu0 %v692, 35
        %v1065 = vpop.permute.xlu0 %1064
        %1066 = vrot.lane.b32.xlu0 %v693, 35
        %v1067 = vpop.permute.xlu0 %1066
        %vm1068 = vcmp.lt.s32.totalorder %v434, 35
        %v1069 = vsel %vm1068, %v1065, %v1067
        %v1070 = vsel %vm1068, %v1063, %v1065
        %v1071 = vsel %vm1068, %v1061, %v1063
        %v1072 = vsel %vm1068, %v1067, %v1061
        %s1073 = scalar_lea.vmem [#allocation6], 7
        %v1074 = vld [vmem:[%s1073] ss:$8 sm:$0xf]
        %v1079 = vcombine.low %v1072, %v1071
        %v1080 = vcombine.low %v1070, %v1069
        %v1082 = vunpack.c.l.s4 1966171168
        %v1083 = vunpack.c.0.s8 %v1082
        %v1084 = vlaneseq
        %v1085 = vshrl.u32 %v1084, 7
        %v1086 = vsub.s32 %v1083, %v1085
        %v1087 = vrot.slane %v1079, %v1086
        %v1089 = vunpack.c.l.s4 1966171168
        %v1090 = vunpack.c.0.s8 %v1089
        %v1091 = vlaneseq
        %v1092 = vshrl.u32 %v1091, 7
        %v1093 = vsub.s32 %v1090, %v1092
        %v1094 = vrot.slane %v1080, %v1093
        %v1095 = vcombine.low %v1087, %v1094
        %v1097 = vunpack.c.l.s4 1966171168
        %v1098 = vunpack.c.0.s8 %v1097
        %v1099 = vlaneseq
        %v1100 = vshrl.u32 %v1099, 7
        %v1101 = vsub.s32 %v1098, %v1100
        %v1102 = vrot.slane %v1095, %v1101
        %v1104 = vmul.f32 %v1074, %v1102
        %v1105 = vadd.f32 %v921, %v1104
        %1106 = vrot.lane.b32.xlu0 %v729, 34
        %v1107 = vpop.permute.xlu0 %1106
        %1108 = vrot.lane.b32.xlu0 %v738, 34
        %v1109 = vpop.permute.xlu0 %1108
        %1110 = vrot.lane.b32.xlu0 %v692, 34
        %v1111 = vpop.permute.xlu0 %1110
        %1112 = vrot.lane.b32.xlu0 %v693, 34
        %v1113 = vpop.permute.xlu0 %1112
        %vm1114 = vcmp.lt.s32.totalorder %v434, 34
        %v1115 = vsel %vm1114, %v1111, %v1113
        %v1116 = vsel %vm1114, %v1109, %v1111
        %v1117 = vsel %vm1114, %v1107, %v1109
        %v1118 = vsel %vm1114, %v1113, %v1107
        %s1119 = scalar_lea.vmem [#allocation6], 32
        %v1120 = vld [vmem:[%s1119] ss:$8 sm:$0xf]
        %v1125 = vcombine.low %v1118, %v1117
        %v1126 = vcombine.low %v1116, %v1115
        %v1128 = vunpack.c.l.s4 1966171168
        %v1129 = vunpack.c.0.s8 %v1128
        %v1130 = vlaneseq
        %v1131 = vshrl.u32 %v1130, 7
        %v1132 = vsub.s32 %v1129, %v1131
        %v1133 = vrot.slane %v1125, %v1132
        %v1135 = vunpack.c.l.s4 1966171168
        %v1136 = vunpack.c.0.s8 %v1135
        %v1137 = vlaneseq
        %v1138 = vshrl.u32 %v1137, 7
        %v1139 = vsub.s32 %v1136, %v1138
        %v1140 = vrot.slane %v1126, %v1139
        %v1141 = vcombine.low %v1133, %v1140
        %v1143 = vunpack.c.l.s4 1966171168
        %v1144 = vunpack.c.0.s8 %v1143
        %v1145 = vlaneseq
        %v1146 = vshrl.u32 %v1145, 7
        %v1147 = vsub.s32 %v1144, %v1146
        %v1148 = vrot.slane %v1141, %v1147
        %v1150 = vmul.f32 %v1120, %v1148
        %v1151 = vadd.f32 %v967, %v1150
        %1152 = vrot.lane.b32.xlu0 %v729, 33
        %v1153 = vpop.permute.xlu0 %1152
        %1154 = vrot.lane.b32.xlu0 %v738, 33
        %v1155 = vpop.permute.xlu0 %1154
        %1156 = vrot.lane.b32.xlu0 %v692, 33
        %v1157 = vpop.permute.xlu0 %1156
        %1158 = vrot.lane.b32.xlu0 %v693, 33
        %v1159 = vpop.permute.xlu0 %1158
        %vm1160 = vcmp.lt.s32.totalorder %v434, 33
        %v1161 = vsel %vm1160, %v1157, %v1159
        %v1162 = vsel %vm1160, %v1155, %v1157
        %v1163 = vsel %vm1160, %v1153, %v1155
        %v1164 = vsel %vm1160, %v1159, %v1153
        %s1165 = scalar_lea.vmem [#allocation6], 33
        %v1166 = vld [vmem:[%s1165] ss:$8 sm:$0xf]
        %v1171 = vcombine.low %v1164, %v1163
        %v1172 = vcombine.low %v1162, %v1161
        %v1174 = vunpack.c.l.s4 1966171168
        %v1175 = vunpack.c.0.s8 %v1174
        %v1176 = vlaneseq
        %v1177 = vshrl.u32 %v1176, 7
        %v1178 = vsub.s32 %v1175, %v1177
        %v1179 = vrot.slane %v1171, %v1178
        %v1181 = vunpack.c.l.s4 1966171168
        %v1182 = vunpack.c.0.s8 %v1181
        %v1183 = vlaneseq
        %v1184 = vshrl.u32 %v1183, 7
        %v1185 = vsub.s32 %v1182, %v1184
        %v1186 = vrot.slane %v1172, %v1185
        %v1187 = vcombine.low %v1179, %v1186
        %v1189 = vunpack.c.l.s4 1966171168
        %v1190 = vunpack.c.0.s8 %v1189
        %v1191 = vlaneseq
        %v1192 = vshrl.u32 %v1191, 7
        %v1193 = vsub.s32 %v1190, %v1192
        %v1194 = vrot.slane %v1187, %v1193
        %v1196 = vmul.f32 %v1166, %v1194
        %v1197 = vadd.f32 %v1013, %v1196
        %1198 = vrot.lane.b32.xlu0 %v729, 32
        %v1199 = vpop.permute.xlu0 %1198
        %1200 = vrot.lane.b32.xlu0 %v738, 32
        %v1201 = vpop.permute.xlu0 %1200
        %1202 = vrot.lane.b32.xlu0 %v692, 32
        %v1203 = vpop.permute.xlu0 %1202
        %1204 = vrot.lane.b32.xlu0 %v693, 32
        %v1205 = vpop.permute.xlu0 %1204
        %vm1206 = vcmp.lt.s32.totalorder %v434, 32
        %v1207 = vsel %vm1206, %v1203, %v1205
        %v1208 = vsel %vm1206, %v1201, %v1203
        %v1209 = vsel %vm1206, %v1199, %v1201
        %v1210 = vsel %vm1206, %v1205, %v1199
        %s1211 = scalar_lea.vmem [#allocation6], 34
        %v1212 = vld [vmem:[%s1211] ss:$8 sm:$0xf]
        %v1217 = vcombine.low %v1210, %v1209
        %v1218 = vcombine.low %v1208, %v1207
        %v1220 = vunpack.c.l.s4 1966171168
        %v1221 = vunpack.c.0.s8 %v1220
        %v1222 = vlaneseq
        %v1223 = vshrl.u32 %v1222, 7
        %v1224 = vsub.s32 %v1221, %v1223
        %v1225 = vrot.slane %v1217, %v1224
        %v1227 = vunpack.c.l.s4 1966171168
        %v1228 = vunpack.c.0.s8 %v1227
        %v1229 = vlaneseq
        %v1230 = vshrl.u32 %v1229, 7
        %v1231 = vsub.s32 %v1228, %v1230
        %v1232 = vrot.slane %v1218, %v1231
        %v1233 = vcombine.low %v1225, %v1232
        %v1235 = vunpack.c.l.s4 1966171168
        %v1236 = vunpack.c.0.s8 %v1235
        %v1237 = vlaneseq
        %v1238 = vshrl.u32 %v1237, 7
        %v1239 = vsub.s32 %v1236, %v1238
        %v1240 = vrot.slane %v1233, %v1239
        %v1242 = vmul.f32 %v1212, %v1240
        %v1243 = vadd.f32 %v1059, %v1242
        %1244 = vrot.lane.b32.xlu0 %v729, 31
        %v1245 = vpop.permute.xlu0 %1244
        %1246 = vrot.lane.b32.xlu0 %v738, 31
        %v1247 = vpop.permute.xlu0 %1246
        %1248 = vrot.lane.b32.xlu0 %v692, 31
        %v1249 = vpop.permute.xlu0 %1248
        %1250 = vrot.lane.b32.xlu0 %v693, 31
        %v1251 = vpop.permute.xlu0 %1250
        %vm1252 = vcmp.lt.s32.totalorder %v434, 31
        %v1253 = vsel %vm1252, %v1249, %v1251
        %v1254 = vsel %vm1252, %v1247, %v1249
        %v1255 = vsel %vm1252, %v1245, %v1247
        %v1256 = vsel %vm1252, %v1251, %v1245
        %s1257 = scalar_lea.vmem [#allocation6], 35
        %v1258 = vld [vmem:[%s1257] ss:$8 sm:$0xf]
        %v1263 = vcombine.low %v1256, %v1255
        %v1264 = vcombine.low %v1254, %v1253
        %v1266 = vunpack.c.l.s4 1966171168
        %v1267 = vunpack.c.0.s8 %v1266
        %v1268 = vlaneseq
        %v1269 = vshrl.u32 %v1268, 7
        %v1270 = vsub.s32 %v1267, %v1269
        %v1271 = vrot.slane %v1263, %v1270
        %v1273 = vunpack.c.l.s4 1966171168
        %v1274 = vunpack.c.0.s8 %v1273
        %v1275 = vlaneseq
        %v1276 = vshrl.u32 %v1275, 7
        %v1277 = vsub.s32 %v1274, %v1276
        %v1278 = vrot.slane %v1264, %v1277
        %v1279 = vcombine.low %v1271, %v1278
        %v1281 = vunpack.c.l.s4 1966171168
        %v1282 = vunpack.c.0.s8 %v1281
        %v1283 = vlaneseq
        %v1284 = vshrl.u32 %v1283, 7
        %v1285 = vsub.s32 %v1282, %v1284
        %v1286 = vrot.slane %v1279, %v1285
        %v1288 = vmul.f32 %v1258, %v1286
        %v1289 = vadd.f32 %v1105, %v1288
        %1290 = vrot.lane.b32.xlu0 %v729, 30
        %v1291 = vpop.permute.xlu0 %1290
        %1292 = vrot.lane.b32.xlu0 %v738, 30
        %v1293 = vpop.permute.xlu0 %1292
        %1294 = vrot.lane.b32.xlu0 %v692, 30
        %v1295 = vpop.permute.xlu0 %1294
        %1296 = vrot.lane.b32.xlu0 %v693, 30
        %v1297 = vpop.permute.xlu0 %1296
        %vm1298 = vcmp.lt.s32.totalorder %v434, 30
        %v1299 = vsel %vm1298, %v1295, %v1297
        %v1300 = vsel %vm1298, %v1293, %v1295
        %v1301 = vsel %vm1298, %v1291, %v1293
        %v1302 = vsel %vm1298, %v1297, %v1291
        %s1303 = scalar_lea.vmem [#allocation6], 36
        %v1304 = vld [vmem:[%s1303] ss:$8 sm:$0xf]
        %v1309 = vcombine.low %v1302, %v1301
        %v1310 = vcombine.low %v1300, %v1299
        %v1312 = vunpack.c.l.s4 1966171168
        %v1313 = vunpack.c.0.s8 %v1312
        %v1314 = vlaneseq
        %v1315 = vshrl.u32 %v1314, 7
        %v1316 = vsub.s32 %v1313, %v1315
        %v1317 = vrot.slane %v1309, %v1316
        %v1319 = vunpack.c.l.s4 1966171168
        %v1320 = vunpack.c.0.s8 %v1319
        %v1321 = vlaneseq
        %v1322 = vshrl.u32 %v1321, 7
        %v1323 = vsub.s32 %v1320, %v1322
        %v1324 = vrot.slane %v1310, %v1323
        %v1325 = vcombine.low %v1317, %v1324
        %v1327 = vunpack.c.l.s4 1966171168
        %v1328 = vunpack.c.0.s8 %v1327
        %v1329 = vlaneseq
        %v1330 = vshrl.u32 %v1329, 7
        %v1331 = vsub.s32 %v1328, %v1330
        %v1332 = vrot.slane %v1325, %v1331
        %v1334 = vmul.f32 %v1304, %v1332
        %v1335 = vadd.f32 %v1151, %v1334
        %1336 = vrot.lane.b32.xlu0 %v729, 29
        %v1337 = vpop.permute.xlu0 %1336
        %1338 = vrot.lane.b32.xlu0 %v738, 29
        %v1339 = vpop.permute.xlu0 %1338
        %1340 = vrot.lane.b32.xlu0 %v692, 29
        %v1341 = vpop.permute.xlu0 %1340
        %1342 = vrot.lane.b32.xlu0 %v693, 29
        %v1343 = vpop.permute.xlu0 %1342
        %vm1344 = vcmp.lt.s32.totalorder %v434, 29
        %v1345 = vsel %vm1344, %v1341, %v1343
        %v1346 = vsel %vm1344, %v1339, %v1341
        %v1347 = vsel %vm1344, %v1337, %v1339
        %v1348 = vsel %vm1344, %v1343, %v1337
        %s1349 = scalar_lea.vmem [#allocation6], 37
        %v1350 = vld [vmem:[%s1349] ss:$8 sm:$0xf]
        %v1355 = vcombine.low %v1348, %v1347
        %v1356 = vcombine.low %v1346, %v1345
        %v1358 = vunpack.c.l.s4 1966171168
        %v1359 = vunpack.c.0.s8 %v1358
        %v1360 = vlaneseq
        %v1361 = vshrl.u32 %v1360, 7
        %v1362 = vsub.s32 %v1359, %v1361
        %v1363 = vrot.slane %v1355, %v1362
        %v1365 = vunpack.c.l.s4 1966171168
        %v1366 = vunpack.c.0.s8 %v1365
        %v1367 = vlaneseq
        %v1368 = vshrl.u32 %v1367, 7
        %v1369 = vsub.s32 %v1366, %v1368
        %v1370 = vrot.slane %v1356, %v1369
        %v1371 = vcombine.low %v1363, %v1370
        %v1373 = vunpack.c.l.s4 1966171168
        %v1374 = vunpack.c.0.s8 %v1373
        %v1375 = vlaneseq
        %v1376 = vshrl.u32 %v1375, 7
        %v1377 = vsub.s32 %v1374, %v1376
        %v1378 = vrot.slane %v1371, %v1377
        %v1380 = vmul.f32 %v1350, %v1378
        %v1381 = vadd.f32 %v1197, %v1380
        %1382 = vrot.lane.b32.xlu0 %v729, 19
        %v1383 = vpop.permute.xlu0 %1382
        %1384 = vrot.lane.b32.xlu0 %v738, 19
        %v1385 = vpop.permute.xlu0 %1384
        %1386 = vrot.lane.b32.xlu0 %v692, 19
        %v1387 = vpop.permute.xlu0 %1386
        %1388 = vrot.lane.b32.xlu0 %v693, 19
        %v1389 = vpop.permute.xlu0 %1388
        %vm1390 = vcmp.lt.s32.totalorder %v434, 19
        %v1391 = vsel %vm1390, %v1387, %v1389
        %v1392 = vsel %vm1390, %v1385, %v1387
        %v1393 = vsel %vm1390, %v1383, %v1385
        %v1394 = vsel %vm1390, %v1389, %v1383
        %s1395 = scalar_lea.vmem [#allocation6], 38
        %v1396 = vld [vmem:[%s1395] ss:$8 sm:$0xf]
        %v1401 = vcombine.low %v1394, %v1393
        %v1402 = vcombine.low %v1392, %v1391
        %v1404 = vunpack.c.l.s4 1966171168
        %v1405 = vunpack.c.0.s8 %v1404
        %v1406 = vlaneseq
        %v1407 = vshrl.u32 %v1406, 7
        %v1408 = vsub.s32 %v1405, %v1407
        %v1409 = vrot.slane %v1401, %v1408
        %v1411 = vunpack.c.l.s4 1966171168
        %v1412 = vunpack.c.0.s8 %v1411
        %v1413 = vlaneseq
        %v1414 = vshrl.u32 %v1413, 7
        %v1415 = vsub.s32 %v1412, %v1414
        %v1416 = vrot.slane %v1402, %v1415
        %v1417 = vcombine.low %v1409, %v1416
        %v1419 = vunpack.c.l.s4 1966171168
        %v1420 = vunpack.c.0.s8 %v1419
        %v1421 = vlaneseq
        %v1422 = vshrl.u32 %v1421, 7
        %v1423 = vsub.s32 %v1420, %v1422
        %v1424 = vrot.slane %v1417, %v1423
        %v1426 = vmul.f32 %v1396, %v1424
        %v1427 = vadd.f32 %v1243, %v1426
        %1428 = vrot.lane.b32.xlu0 %v729, 18
        %v1429 = vpop.permute.xlu0 %1428
        %1430 = vrot.lane.b32.xlu0 %v738, 18
        %v1431 = vpop.permute.xlu0 %1430
        %1432 = vrot.lane.b32.xlu0 %v692, 18
        %v1433 = vpop.permute.xlu0 %1432
        %1434 = vrot.lane.b32.xlu0 %v693, 18
        %v1435 = vpop.permute.xlu0 %1434
        %vm1436 = vcmp.lt.s32.totalorder %v434, 18
        %v1437 = vsel %vm1436, %v1433, %v1435
        %v1438 = vsel %vm1436, %v1431, %v1433
        %v1439 = vsel %vm1436, %v1429, %v1431
        %v1440 = vsel %vm1436, %v1435, %v1429
        %s1441 = scalar_lea.vmem [#allocation6], 39
        %v1442 = vld [vmem:[%s1441] ss:$8 sm:$0xf]
        %v1447 = vcombine.low %v1440, %v1439
        %v1448 = vcombine.low %v1438, %v1437
        %v1450 = vunpack.c.l.s4 1966171168
        %v1451 = vunpack.c.0.s8 %v1450
        %v1452 = vlaneseq
        %v1453 = vshrl.u32 %v1452, 7
        %v1454 = vsub.s32 %v1451, %v1453
        %v1455 = vrot.slane %v1447, %v1454
        %v1457 = vunpack.c.l.s4 1966171168
        %v1458 = vunpack.c.0.s8 %v1457
        %v1459 = vlaneseq
        %v1460 = vshrl.u32 %v1459, 7
        %v1461 = vsub.s32 %v1458, %v1460
        %v1462 = vrot.slane %v1448, %v1461
        %v1463 = vcombine.low %v1455, %v1462
        %v1465 = vunpack.c.l.s4 1966171168
        %v1466 = vunpack.c.0.s8 %v1465
        %v1467 = vlaneseq
        %v1468 = vshrl.u32 %v1467, 7
        %v1469 = vsub.s32 %v1466, %v1468
        %v1470 = vrot.slane %v1463, %v1469
        %v1472 = vmul.f32 %v1442, %v1470
        %v1473 = vadd.f32 %v1289, %v1472
        %1474 = vrot.lane.b32.xlu0 %v729, 17
        %v1475 = vpop.permute.xlu0 %1474
        %1476 = vrot.lane.b32.xlu0 %v738, 17
        %v1477 = vpop.permute.xlu0 %1476
        %1478 = vrot.lane.b32.xlu0 %v692, 17
        %v1479 = vpop.permute.xlu0 %1478
        %1480 = vrot.lane.b32.xlu0 %v693, 17
        %v1481 = vpop.permute.xlu0 %1480
        %vm1482 = vcmp.lt.s32.totalorder %v434, 17
        %v1483 = vsel %vm1482, %v1479, %v1481
        %v1484 = vsel %vm1482, %v1477, %v1479
        %v1485 = vsel %vm1482, %v1475, %v1477
        %v1486 = vsel %vm1482, %v1481, %v1475
        %s1487 = scalar_lea.vmem [#allocation6], 64
        %v1488 = vld [vmem:[%s1487] ss:$8 sm:$0xf]
        %v1493 = vcombine.low %v1486, %v1485
        %v1494 = vcombine.low %v1484, %v1483
        %v1496 = vunpack.c.l.s4 1966171168
        %v1497 = vunpack.c.0.s8 %v1496
        %v1498 = vlaneseq
        %v1499 = vshrl.u32 %v1498, 7
        %v1500 = vsub.s32 %v1497, %v1499
        %v1501 = vrot.slane %v1493, %v1500
        %v1503 = vunpack.c.l.s4 1966171168
        %v1504 = vunpack.c.0.s8 %v1503
        %v1505 = vlaneseq
        %v1506 = vshrl.u32 %v1505, 7
        %v1507 = vsub.s32 %v1504, %v1506
        %v1508 = vrot.slane %v1494, %v1507
        %v1509 = vcombine.low %v1501, %v1508
        %v1511 = vunpack.c.l.s4 1966171168
        %v1512 = vunpack.c.0.s8 %v1511
        %v1513 = vlaneseq
        %v1514 = vshrl.u32 %v1513, 7
        %v1515 = vsub.s32 %v1512, %v1514
        %v1516 = vrot.slane %v1509, %v1515
        %v1518 = vmul.f32 %v1488, %v1516
        %v1519 = vadd.f32 %v1335, %v1518
        %1520 = vrot.lane.b32.xlu0 %v729, 16
        %v1521 = vpop.permute.xlu0 %1520
        %1522 = vrot.lane.b32.xlu0 %v738, 16
        %v1523 = vpop.permute.xlu0 %1522
        %1524 = vrot.lane.b32.xlu0 %v692, 16
        %v1525 = vpop.permute.xlu0 %1524
        %1526 = vrot.lane.b32.xlu0 %v693, 16
        %v1527 = vpop.permute.xlu0 %1526
        %vm1528 = vcmp.lt.s32.totalorder %v434, 16
        %v1529 = vsel %vm1528, %v1525, %v1527
        %v1530 = vsel %vm1528, %v1523, %v1525
        %v1531 = vsel %vm1528, %v1521, %v1523
        %v1532 = vsel %vm1528, %v1527, %v1521
        %s1533 = scalar_lea.vmem [#allocation6], 65
        %v1534 = vld [vmem:[%s1533] ss:$8 sm:$0xf]
        %v1539 = vcombine.low %v1532, %v1531
        %v1540 = vcombine.low %v1530, %v1529
        %v1542 = vunpack.c.l.s4 1966171168
        %v1543 = vunpack.c.0.s8 %v1542
        %v1544 = vlaneseq
        %v1545 = vshrl.u32 %v1544, 7
        %v1546 = vsub.s32 %v1543, %v1545
        %v1547 = vrot.slane %v1539, %v1546
        %v1549 = vunpack.c.l.s4 1966171168
        %v1550 = vunpack.c.0.s8 %v1549
        %v1551 = vlaneseq
        %v1552 = vshrl.u32 %v1551, 7
        %v1553 = vsub.s32 %v1550, %v1552
        %v1554 = vrot.slane %v1540, %v1553
        %v1555 = vcombine.low %v1547, %v1554
        %v1557 = vunpack.c.l.s4 1966171168
        %v1558 = vunpack.c.0.s8 %v1557
        %v1559 = vlaneseq
        %v1560 = vshrl.u32 %v1559, 7
        %v1561 = vsub.s32 %v1558, %v1560
        %v1562 = vrot.slane %v1555, %v1561
        %v1564 = vmul.f32 %v1534, %v1562
        %v1565 = vadd.f32 %v1381, %v1564
        %1566 = vrot.lane.b32.xlu0 %v729, 15
        %v1567 = vpop.permute.xlu0 %1566
        %1568 = vrot.lane.b32.xlu0 %v738, 15
        %v1569 = vpop.permute.xlu0 %1568
        %1570 = vrot.lane.b32.xlu0 %v692, 15
        %v1571 = vpop.permute.xlu0 %1570
        %1572 = vrot.lane.b32.xlu0 %v693, 15
        %v1573 = vpop.permute.xlu0 %1572
        %vm1574 = vcmp.lt.s32.totalorder %v434, 15
        %v1575 = vsel %vm1574, %v1571, %v1573
        %v1576 = vsel %vm1574, %v1569, %v1571
        %v1577 = vsel %vm1574, %v1567, %v1569
        %v1578 = vsel %vm1574, %v1573, %v1567
        %s1579 = scalar_lea.vmem [#allocation6], 66
        %v1580 = vld [vmem:[%s1579] ss:$8 sm:$0xf]
        %v1585 = vcombine.low %v1578, %v1577
        %v1586 = vcombine.low %v1576, %v1575
        %v1588 = vunpack.c.l.s4 1966171168
        %v1589 = vunpack.c.0.s8 %v1588
        %v1590 = vlaneseq
        %v1591 = vshrl.u32 %v1590, 7
        %v1592 = vsub.s32 %v1589, %v1591
        %v1593 = vrot.slane %v1585, %v1592
        %v1595 = vunpack.c.l.s4 1966171168
        %v1596 = vunpack.c.0.s8 %v1595
        %v1597 = vlaneseq
        %v1598 = vshrl.u32 %v1597, 7
        %v1599 = vsub.s32 %v1596, %v1598
        %v1600 = vrot.slane %v1586, %v1599
        %v1601 = vcombine.low %v1593, %v1600
        %v1603 = vunpack.c.l.s4 1966171168
        %v1604 = vunpack.c.0.s8 %v1603
        %v1605 = vlaneseq
        %v1606 = vshrl.u32 %v1605, 7
        %v1607 = vsub.s32 %v1604, %v1606
        %v1608 = vrot.slane %v1601, %v1607
        %v1610 = vmul.f32 %v1580, %v1608
        %v1611 = vadd.f32 %v1427, %v1610
        %1612 = vrot.lane.b32.xlu0 %v729, 14
        %v1613 = vpop.permute.xlu0 %1612
        %1614 = vrot.lane.b32.xlu0 %v738, 14
        %v1615 = vpop.permute.xlu0 %1614
        %1616 = vrot.lane.b32.xlu0 %v692, 14
        %v1617 = vpop.permute.xlu0 %1616
        %1618 = vrot.lane.b32.xlu0 %v693, 14
        %v1619 = vpop.permute.xlu0 %1618
        %vm1620 = vcmp.lt.s32.totalorder %v434, 14
        %v1621 = vsel %vm1620, %v1617, %v1619
        %v1622 = vsel %vm1620, %v1615, %v1617
        %v1623 = vsel %vm1620, %v1613, %v1615
        %v1624 = vsel %vm1620, %v1619, %v1613
        %s1625 = scalar_lea.vmem [#allocation6], 67
        %v1626 = vld [vmem:[%s1625] ss:$8 sm:$0xf]
        %v1631 = vcombine.low %v1624, %v1623
        %v1632 = vcombine.low %v1622, %v1621
        %v1634 = vunpack.c.l.s4 1966171168
        %v1635 = vunpack.c.0.s8 %v1634
        %v1636 = vlaneseq
        %v1637 = vshrl.u32 %v1636, 7
        %v1638 = vsub.s32 %v1635, %v1637
        %v1639 = vrot.slane %v1631, %v1638
        %v1641 = vunpack.c.l.s4 1966171168
        %v1642 = vunpack.c.0.s8 %v1641
        %v1643 = vlaneseq
        %v1644 = vshrl.u32 %v1643, 7
        %v1645 = vsub.s32 %v1642, %v1644
        %v1646 = vrot.slane %v1632, %v1645
        %v1647 = vcombine.low %v1639, %v1646
        %v1649 = vunpack.c.l.s4 1966171168
        %v1650 = vunpack.c.0.s8 %v1649
        %v1651 = vlaneseq
        %v1652 = vshrl.u32 %v1651, 7
        %v1653 = vsub.s32 %v1650, %v1652
        %v1654 = vrot.slane %v1647, %v1653
        %v1656 = vmul.f32 %v1626, %v1654
        %v1657 = vadd.f32 %v1473, %v1656
        %1658 = vrot.lane.b32.xlu0 %v729, 13
        %v1659 = vpop.permute.xlu0 %1658
        %1660 = vrot.lane.b32.xlu0 %v738, 13
        %v1661 = vpop.permute.xlu0 %1660
        %1662 = vrot.lane.b32.xlu0 %v692, 13
        %v1663 = vpop.permute.xlu0 %1662
        %1664 = vrot.lane.b32.xlu0 %v693, 13
        %v1665 = vpop.permute.xlu0 %1664
        %vm1666 = vcmp.lt.s32.totalorder %v434, 13
        %v1667 = vsel %vm1666, %v1663, %v1665
        %v1668 = vsel %vm1666, %v1661, %v1663
        %v1669 = vsel %vm1666, %v1659, %v1661
        %v1670 = vsel %vm1666, %v1665, %v1659
        %s1671 = scalar_lea.vmem [#allocation6], 68
        %v1672 = vld [vmem:[%s1671] ss:$8 sm:$0xf]
        %v1677 = vcombine.low %v1670, %v1669
        %v1678 = vcombine.low %v1668, %v1667
        %v1680 = vunpack.c.l.s4 1966171168
        %v1681 = vunpack.c.0.s8 %v1680
        %v1682 = vlaneseq
        %v1683 = vshrl.u32 %v1682, 7
        %v1684 = vsub.s32 %v1681, %v1683
        %v1685 = vrot.slane %v1677, %v1684
        %v1687 = vunpack.c.l.s4 1966171168
        %v1688 = vunpack.c.0.s8 %v1687
        %v1689 = vlaneseq
        %v1690 = vshrl.u32 %v1689, 7
        %v1691 = vsub.s32 %v1688, %v1690
        %v1692 = vrot.slane %v1678, %v1691
        %v1693 = vcombine.low %v1685, %v1692
        %v1695 = vunpack.c.l.s4 1966171168
        %v1696 = vunpack.c.0.s8 %v1695
        %v1697 = vlaneseq
        %v1698 = vshrl.u32 %v1697, 7
        %v1699 = vsub.s32 %v1696, %v1698
        %v1700 = vrot.slane %v1693, %v1699
        %v1702 = vmul.f32 %v1672, %v1700
        %v1703 = vadd.f32 %v1519, %v1702
        %1704 = vrot.lane.b32.xlu0 %v729, 3
        %v1705 = vpop.permute.xlu0 %1704
        %1706 = vrot.lane.b32.xlu0 %v738, 3
        %v1707 = vpop.permute.xlu0 %1706
        %1708 = vrot.lane.b32.xlu0 %v692, 3
        %v1709 = vpop.permute.xlu0 %1708
        %1710 = vrot.lane.b32.xlu0 %v693, 3
        %v1711 = vpop.permute.xlu0 %1710
        %vm1712 = vcmp.lt.s32.totalorder %v434, 3
        %v1713 = vsel %vm1712, %v1709, %v1711
        %v1714 = vsel %vm1712, %v1707, %v1709
        %v1715 = vsel %vm1712, %v1705, %v1707
        %v1716 = vsel %vm1712, %v1711, %v1705
        %s1717 = scalar_lea.vmem [#allocation6], 69
        %v1718 = vld [vmem:[%s1717] ss:$8 sm:$0xf]
        %v1723 = vcombine.low %v1716, %v1715
        %v1724 = vcombine.low %v1714, %v1713
        %v1726 = vunpack.c.l.s4 1966171168
        %v1727 = vunpack.c.0.s8 %v1726
        %v1728 = vlaneseq
        %v1729 = vshrl.u32 %v1728, 7
        %v1730 = vsub.s32 %v1727, %v1729
        %v1731 = vrot.slane %v1723, %v1730
        %v1733 = vunpack.c.l.s4 1966171168
        %v1734 = vunpack.c.0.s8 %v1733
        %v1735 = vlaneseq
        %v1736 = vshrl.u32 %v1735, 7
        %v1737 = vsub.s32 %v1734, %v1736
        %v1738 = vrot.slane %v1724, %v1737
        %v1739 = vcombine.low %v1731, %v1738
        %v1741 = vunpack.c.l.s4 1966171168
        %v1742 = vunpack.c.0.s8 %v1741
        %v1743 = vlaneseq
        %v1744 = vshrl.u32 %v1743, 7
        %v1745 = vsub.s32 %v1742, %v1744
        %v1746 = vrot.slane %v1739, %v1745
        %v1748 = vmul.f32 %v1718, %v1746
        %v1749 = vadd.f32 %v1565, %v1748
        %1750 = vrot.lane.b32.xlu0 %v729, 2
        %v1751 = vpop.permute.xlu0 %1750
        %1752 = vrot.lane.b32.xlu0 %v738, 2
        %v1753 = vpop.permute.xlu0 %1752
        %1754 = vrot.lane.b32.xlu0 %v692, 2
        %v1755 = vpop.permute.xlu0 %1754
        %1756 = vrot.lane.b32.xlu0 %v693, 2
        %v1757 = vpop.permute.xlu0 %1756
        %vm1758 = vcmp.lt.s32.totalorder %v434, 2
        %v1759 = vsel %vm1758, %v1755, %v1757
        %v1760 = vsel %vm1758, %v1753, %v1755
        %v1761 = vsel %vm1758, %v1751, %v1753
        %v1762 = vsel %vm1758, %v1757, %v1751
        %s1763 = scalar_lea.vmem [#allocation6], 70
        %v1764 = vld [vmem:[%s1763] ss:$8 sm:$0xf]
        %v1769 = vcombine.low %v1762, %v1761
        %v1770 = vcombine.low %v1760, %v1759
        %v1772 = vunpack.c.l.s4 1966171168
        %v1773 = vunpack.c.0.s8 %v1772
        %v1774 = vlaneseq
        %v1775 = vshrl.u32 %v1774, 7
        %v1776 = vsub.s32 %v1773, %v1775
        %v1777 = vrot.slane %v1769, %v1776
        %v1779 = vunpack.c.l.s4 1966171168
        %v1780 = vunpack.c.0.s8 %v1779
        %v1781 = vlaneseq
        %v1782 = vshrl.u32 %v1781, 7
        %v1783 = vsub.s32 %v1780, %v1782
        %v1784 = vrot.slane %v1770, %v1783
        %v1785 = vcombine.low %v1777, %v1784
        %v1787 = vunpack.c.l.s4 1966171168
        %v1788 = vunpack.c.0.s8 %v1787
        %v1789 = vlaneseq
        %v1790 = vshrl.u32 %v1789, 7
        %v1791 = vsub.s32 %v1788, %v1790
        %v1792 = vrot.slane %v1785, %v1791
        %v1794 = vmul.f32 %v1764, %v1792
        %v1795 = vadd.f32 %v1611, %v1794
        %1796 = vrot.lane.b32.xlu0 %v729, 1
        %v1797 = vpop.permute.xlu0 %1796
        %1798 = vrot.lane.b32.xlu0 %v738, 1
        %v1799 = vpop.permute.xlu0 %1798
        %1800 = vrot.lane.b32.xlu0 %v692, 1
        %v1801 = vpop.permute.xlu0 %1800
        %1802 = vrot.lane.b32.xlu0 %v693, 1
        %v1803 = vpop.permute.xlu0 %1802
        %vm1804 = vcmp.lt.s32.totalorder %v434, 1
        %v1805 = vsel %vm1804, %v1801, %v1803
        %v1806 = vsel %vm1804, %v1799, %v1801
        %v1807 = vsel %vm1804, %v1797, %v1799
        %v1808 = vsel %vm1804, %v1803, %v1797
        %s1809 = scalar_lea.vmem [#allocation6], 71
        %v1810 = vld [vmem:[%s1809] ss:$8 sm:$0xf]
        %v1815 = vcombine.low %v1808, %v1807
        %v1816 = vcombine.low %v1806, %v1805
        %v1818 = vunpack.c.l.s4 1966171168
        %v1819 = vunpack.c.0.s8 %v1818
        %v1820 = vlaneseq
        %v1821 = vshrl.u32 %v1820, 7
        %v1822 = vsub.s32 %v1819, %v1821
        %v1823 = vrot.slane %v1815, %v1822
        %v1825 = vunpack.c.l.s4 1966171168
        %v1826 = vunpack.c.0.s8 %v1825
        %v1827 = vlaneseq
        %v1828 = vshrl.u32 %v1827, 7
        %v1829 = vsub.s32 %v1826, %v1828
        %v1830 = vrot.slane %v1816, %v1829
        %v1831 = vcombine.low %v1823, %v1830
        %v1833 = vunpack.c.l.s4 1966171168
        %v1834 = vunpack.c.0.s8 %v1833
        %v1835 = vlaneseq
        %v1836 = vshrl.u32 %v1835, 7
        %v1837 = vsub.s32 %v1834, %v1836
        %v1838 = vrot.slane %v1831, %v1837
        %v1840 = vmul.f32 %v1810, %v1838
        %v1841 = vadd.f32 %v1657, %v1840
        %s1842 = scalar_lea.vmem [#allocation6], 96
        %v1843 = vld [vmem:[%s1842] ss:$8 sm:$0xf]
        %v1848 = vcombine.low %v729, %v738
        %v1849 = vcombine.low %v692, %v693
        %v1851 = vunpack.c.l.s4 1966171168
        %v1852 = vunpack.c.0.s8 %v1851
        %v1853 = vlaneseq
        %v1854 = vshrl.u32 %v1853, 7
        %v1855 = vsub.s32 %v1852, %v1854
        %v1856 = vrot.slane %v1848, %v1855
        %v1858 = vunpack.c.l.s4 1966171168
        %v1859 = vunpack.c.0.s8 %v1858
        %v1860 = vlaneseq
        %v1861 = vshrl.u32 %v1860, 7
        %v1862 = vsub.s32 %v1859, %v1861
        %v1863 = vrot.slane %v1849, %v1862
        %v1864 = vcombine.low %v1856, %v1863
        %v1866 = vunpack.c.l.s4 1966171168
        %v1867 = vunpack.c.0.s8 %v1866
        %v1868 = vlaneseq
        %v1869 = vshrl.u32 %v1868, 7
        %v1870 = vsub.s32 %v1867, %v1869
        %v1871 = vrot.slane %v1864, %v1870
        %v1873 = vmul.f32 %v1843, %v1871
        %v1874 = vadd.f32 %v1703, %v1873
        %1875 = vrot.lane.b32.xlu0 %v729, 127
        %v1876 = vpop.permute.xlu0 %1875
        %1877 = vrot.lane.b32.xlu0 %v738, 127
        %v1878 = vpop.permute.xlu0 %1877
        %1879 = vrot.lane.b32.xlu0 %v692, 127
        %v1880 = vpop.permute.xlu0 %1879
        %1881 = vrot.lane.b32.xlu0 %v693, 127
        %v1882 = vpop.permute.xlu0 %1881
        %vm1883 = vcmp.lt.s32.totalorder %v434, 127
        %v1884 = vsel %vm1883, %v1880, %v1882
        %v1885 = vsel %vm1883, %v1878, %v1880
        %v1886 = vsel %vm1883, %v1876, %v1878
        %v1887 = vsel %vm1883, %v1882, %v1876
        %s1888 = scalar_lea.vmem [#allocation6], 97
        %v1889 = vld [vmem:[%s1888] ss:$8 sm:$0xf]
        %v1894 = vcombine.low %v1886, %v1885
        %v1895 = vcombine.low %v1884, %v1887
        %v1897 = vunpack.c.l.s4 1966171168
        %v1898 = vunpack.c.0.s8 %v1897
        %v1899 = vlaneseq
        %v1900 = vshrl.u32 %v1899, 7
        %v1901 = vsub.s32 %v1898, %v1900
        %v1902 = vrot.slane %v1894, %v1901
        %v1904 = vunpack.c.l.s4 1966171168
        %v1905 = vunpack.c.0.s8 %v1904
        %v1906 = vlaneseq
        %v1907 = vshrl.u32 %v1906, 7
        %v1908 = vsub.s32 %v1905, %v1907
        %v1909 = vrot.slane %v1895, %v1908
        %v1910 = vcombine.low %v1902, %v1909
        %v1912 = vunpack.c.l.s4 1966171168
        %v1913 = vunpack.c.0.s8 %v1912
        %v1914 = vlaneseq
        %v1915 = vshrl.u32 %v1914, 7
        %v1916 = vsub.s32 %v1913, %v1915
        %v1917 = vrot.slane %v1910, %v1916
        %v1919 = vmul.f32 %v1889, %v1917
        %v1920 = vadd.f32 %v1749, %v1919
        %1921 = vrot.lane.b32.xlu0 %v729, 126
        %v1922 = vpop.permute.xlu0 %1921
        %1923 = vrot.lane.b32.xlu0 %v738, 126
        %v1924 = vpop.permute.xlu0 %1923
        %1925 = vrot.lane.b32.xlu0 %v692, 126
        %v1926 = vpop.permute.xlu0 %1925
        %1927 = vrot.lane.b32.xlu0 %v693, 126
        %v1928 = vpop.permute.xlu0 %1927
        %vm1929 = vcmp.lt.s32.totalorder %v434, 126
        %v1930 = vsel %vm1929, %v1926, %v1928
        %v1931 = vsel %vm1929, %v1924, %v1926
        %v1932 = vsel %vm1929, %v1922, %v1924
        %v1933 = vsel %vm1929, %v1928, %v1922
        %s1934 = scalar_lea.vmem [#allocation6], 98
        %v1935 = vld [vmem:[%s1934] ss:$8 sm:$0xf]
        %v1940 = vcombine.low %v1932, %v1931
        %v1941 = vcombine.low %v1930, %v1933
        %v1943 = vunpack.c.l.s4 1966171168
        %v1944 = vunpack.c.0.s8 %v1943
        %v1945 = vlaneseq
        %v1946 = vshrl.u32 %v1945, 7
        %v1947 = vsub.s32 %v1944, %v1946
        %v1948 = vrot.slane %v1940, %v1947
        %v1950 = vunpack.c.l.s4 1966171168
        %v1951 = vunpack.c.0.s8 %v1950
        %v1952 = vlaneseq
        %v1953 = vshrl.u32 %v1952, 7
        %v1954 = vsub.s32 %v1951, %v1953
        %v1955 = vrot.slane %v1941, %v1954
        %v1956 = vcombine.low %v1948, %v1955
        %v1958 = vunpack.c.l.s4 1966171168
        %v1959 = vunpack.c.0.s8 %v1958
        %v1960 = vlaneseq
        %v1961 = vshrl.u32 %v1960, 7
        %v1962 = vsub.s32 %v1959, %v1961
        %v1963 = vrot.slane %v1956, %v1962
        %v1965 = vmul.f32 %v1935, %v1963
        %v1966 = vadd.f32 %v1795, %v1965
        %1967 = vrot.lane.b32.xlu0 %v729, 125
        %v1968 = vpop.permute.xlu0 %1967
        %1969 = vrot.lane.b32.xlu0 %v738, 125
        %v1970 = vpop.permute.xlu0 %1969
        %1971 = vrot.lane.b32.xlu0 %v692, 125
        %v1972 = vpop.permute.xlu0 %1971
        %1973 = vrot.lane.b32.xlu0 %v693, 125
        %v1974 = vpop.permute.xlu0 %1973
        %vm1975 = vcmp.lt.s32.totalorder %v434, 125
        %v1976 = vsel %vm1975, %v1972, %v1974
        %v1977 = vsel %vm1975, %v1970, %v1972
        %v1978 = vsel %vm1975, %v1968, %v1970
        %v1979 = vsel %vm1975, %v1974, %v1968
        %s1980 = scalar_lea.vmem [#allocation6], 99
        %v1981 = vld [vmem:[%s1980] ss:$8 sm:$0xf]
        %v1986 = vcombine.low %v1978, %v1977
        %v1987 = vcombine.low %v1976, %v1979
        %v1989 = vunpack.c.l.s4 1966171168
        %v1990 = vunpack.c.0.s8 %v1989
        %v1991 = vlaneseq
        %v1992 = vshrl.u32 %v1991, 7
        %v1993 = vsub.s32 %v1990, %v1992
        %v1994 = vrot.slane %v1986, %v1993
        %v1996 = vunpack.c.l.s4 1966171168
        %v1997 = vunpack.c.0.s8 %v1996
        %v1998 = vlaneseq
        %v1999 = vshrl.u32 %v1998, 7
        %v2000 = vsub.s32 %v1997, %v1999
        %v2001 = vrot.slane %v1987, %v2000
        %v2002 = vcombine.low %v1994, %v2001
        %v2004 = vunpack.c.l.s4 1966171168
        %v2005 = vunpack.c.0.s8 %v2004
        %v2006 = vlaneseq
        %v2007 = vshrl.u32 %v2006, 7
        %v2008 = vsub.s32 %v2005, %v2007
        %v2009 = vrot.slane %v2002, %v2008
        %v2011 = vmul.f32 %v1981, %v2009
        %v2012 = vadd.f32 %v1841, %v2011
        %2013 = vrot.lane.b32.xlu0 %v729, 115
        %v2014 = vpop.permute.xlu0 %2013
        %2015 = vrot.lane.b32.xlu0 %v738, 115
        %v2016 = vpop.permute.xlu0 %2015
        %2017 = vrot.lane.b32.xlu0 %v692, 115
        %v2018 = vpop.permute.xlu0 %2017
        %2019 = vrot.lane.b32.xlu0 %v693, 115
        %v2020 = vpop.permute.xlu0 %2019
        %vm2021 = vcmp.lt.s32.totalorder %v434, 115
        %v2022 = vsel %vm2021, %v2018, %v2020
        %v2023 = vsel %vm2021, %v2016, %v2018
        %v2024 = vsel %vm2021, %v2014, %v2016
        %v2025 = vsel %vm2021, %v2020, %v2014
        %s2026 = scalar_lea.vmem [#allocation6], 100
        %v2027 = vld [vmem:[%s2026] ss:$8 sm:$0xf]
        %v2032 = vcombine.low %v2024, %v2023
        %v2033 = vcombine.low %v2022, %v2025
        %v2035 = vunpack.c.l.s4 1966171168
        %v2036 = vunpack.c.0.s8 %v2035
        %v2037 = vlaneseq
        %v2038 = vshrl.u32 %v2037, 7
        %v2039 = vsub.s32 %v2036, %v2038
        %v2040 = vrot.slane %v2032, %v2039
        %v2042 = vunpack.c.l.s4 1966171168
        %v2043 = vunpack.c.0.s8 %v2042
        %v2044 = vlaneseq
        %v2045 = vshrl.u32 %v2044, 7
        %v2046 = vsub.s32 %v2043, %v2045
        %v2047 = vrot.slane %v2033, %v2046
        %v2048 = vcombine.low %v2040, %v2047
        %v2050 = vunpack.c.l.s4 1966171168
        %v2051 = vunpack.c.0.s8 %v2050
        %v2052 = vlaneseq
        %v2053 = vshrl.u32 %v2052, 7
        %v2054 = vsub.s32 %v2051, %v2053
        %v2055 = vrot.slane %v2048, %v2054
        %v2057 = vmul.f32 %v2027, %v2055
        %v2058 = vadd.f32 %v1874, %v2057
        %2059 = vrot.lane.b32.xlu0 %v729, 114
        %v2060 = vpop.permute.xlu0 %2059
        %2061 = vrot.lane.b32.xlu0 %v738, 114
        %v2062 = vpop.permute.xlu0 %2061
        %2063 = vrot.lane.b32.xlu0 %v692, 114
        %v2064 = vpop.permute.xlu0 %2063
        %2065 = vrot.lane.b32.xlu0 %v693, 114
        %v2066 = vpop.permute.xlu0 %2065
        %vm2067 = vcmp.lt.s32.totalorder %v434, 114
        %v2068 = vsel %vm2067, %v2064, %v2066
        %v2069 = vsel %vm2067, %v2062, %v2064
        %v2070 = vsel %vm2067, %v2060, %v2062
        %v2071 = vsel %vm2067, %v2066, %v2060
        %s2072 = scalar_lea.vmem [#allocation6], 101
        %v2073 = vld [vmem:[%s2072] ss:$8 sm:$0xf]
        %v2078 = vcombine.low %v2070, %v2069
        %v2079 = vcombine.low %v2068, %v2071
        %v2081 = vunpack.c.l.s4 1966171168
        %v2082 = vunpack.c.0.s8 %v2081
        %v2083 = vlaneseq
        %v2084 = vshrl.u32 %v2083, 7
        %v2085 = vsub.s32 %v2082, %v2084
        %v2086 = vrot.slane %v2078, %v2085
        %v2088 = vunpack.c.l.s4 1966171168
        %v2089 = vunpack.c.0.s8 %v2088
        %v2090 = vlaneseq
        %v2091 = vshrl.u32 %v2090, 7
        %v2092 = vsub.s32 %v2089, %v2091
        %v2093 = vrot.slane %v2079, %v2092
        %v2094 = vcombine.low %v2086, %v2093
        %v2096 = vunpack.c.l.s4 1966171168
        %v2097 = vunpack.c.0.s8 %v2096
        %v2098 = vlaneseq
        %v2099 = vshrl.u32 %v2098, 7
        %v2100 = vsub.s32 %v2097, %v2099
        %v2101 = vrot.slane %v2094, %v2100
        %v2103 = vmul.f32 %v2073, %v2101
        %v2104 = vadd.f32 %v1920, %v2103
        %2105 = vrot.lane.b32.xlu0 %v729, 113
        %v2106 = vpop.permute.xlu0 %2105
        %2107 = vrot.lane.b32.xlu0 %v738, 113
        %v2108 = vpop.permute.xlu0 %2107
        %2109 = vrot.lane.b32.xlu0 %v692, 113
        %v2110 = vpop.permute.xlu0 %2109
        %2111 = vrot.lane.b32.xlu0 %v693, 113
        %v2112 = vpop.permute.xlu0 %2111
        %vm2113 = vcmp.lt.s32.totalorder %v434, 113
        %v2114 = vsel %vm2113, %v2110, %v2112
        %v2115 = vsel %vm2113, %v2108, %v2110
        %v2116 = vsel %vm2113, %v2106, %v2108
        %v2117 = vsel %vm2113, %v2112, %v2106
        %s2118 = scalar_lea.vmem [#allocation6], 102
        %v2119 = vld [vmem:[%s2118] ss:$8 sm:$0xf]
        %v2124 = vcombine.low %v2116, %v2115
        %v2125 = vcombine.low %v2114, %v2117
        %v2127 = vunpack.c.l.s4 1966171168
        %v2128 = vunpack.c.0.s8 %v2127
        %v2129 = vlaneseq
        %v2130 = vshrl.u32 %v2129, 7
        %v2131 = vsub.s32 %v2128, %v2130
        %v2132 = vrot.slane %v2124, %v2131
        %v2134 = vunpack.c.l.s4 1966171168
        %v2135 = vunpack.c.0.s8 %v2134
        %v2136 = vlaneseq
        %v2137 = vshrl.u32 %v2136, 7
        %v2138 = vsub.s32 %v2135, %v2137
        %v2139 = vrot.slane %v2125, %v2138
        %v2140 = vcombine.low %v2132, %v2139
        %v2142 = vunpack.c.l.s4 1966171168
        %v2143 = vunpack.c.0.s8 %v2142
        %v2144 = vlaneseq
        %v2145 = vshrl.u32 %v2144, 7
        %v2146 = vsub.s32 %v2143, %v2145
        %v2147 = vrot.slane %v2140, %v2146
        %v2149 = vmul.f32 %v2119, %v2147
        %v2150 = vadd.f32 %v1966, %v2149
        %2151 = vrot.lane.b32.xlu0 %v729, 112
        %v2152 = vpop.permute.xlu0 %2151
        %2153 = vrot.lane.b32.xlu0 %v738, 112
        %v2154 = vpop.permute.xlu0 %2153
        %2155 = vrot.lane.b32.xlu0 %v692, 112
        %v2156 = vpop.permute.xlu0 %2155
        %2157 = vrot.lane.b32.xlu0 %v693, 112
        %v2158 = vpop.permute.xlu0 %2157
        %vm2159 = vcmp.lt.s32.totalorder %v434, 112
        %v2160 = vsel %vm2159, %v2156, %v2158
        %v2161 = vsel %vm2159, %v2154, %v2156
        %v2162 = vsel %vm2159, %v2152, %v2154
        %v2163 = vsel %vm2159, %v2158, %v2152
        %s2164 = scalar_lea.vmem [#allocation6], 103
        %v2165 = vld [vmem:[%s2164] ss:$8 sm:$0xf]
        %v2170 = vcombine.low %v2162, %v2161
        %v2171 = vcombine.low %v2160, %v2163
        %v2173 = vunpack.c.l.s4 1966171168
        %v2174 = vunpack.c.0.s8 %v2173
        %v2175 = vlaneseq
        %v2176 = vshrl.u32 %v2175, 7
        %v2177 = vsub.s32 %v2174, %v2176
        %v2178 = vrot.slane %v2170, %v2177
        %v2180 = vunpack.c.l.s4 1966171168
        %v2181 = vunpack.c.0.s8 %v2180
        %v2182 = vlaneseq
        %v2183 = vshrl.u32 %v2182, 7
        %v2184 = vsub.s32 %v2181, %v2183
        %v2185 = vrot.slane %v2171, %v2184
        %v2186 = vcombine.low %v2178, %v2185
        %v2188 = vunpack.c.l.s4 1966171168
        %v2189 = vunpack.c.0.s8 %v2188
        %v2190 = vlaneseq
        %v2191 = vshrl.u32 %v2190, 7
        %v2192 = vsub.s32 %v2189, %v2191
        %v2193 = vrot.slane %v2186, %v2192
        %v2195 = vmul.f32 %v2165, %v2193
        %v2196 = vadd.f32 %v2012, %v2195
        %2197 = vrot.lane.b32.xlu0 %v729, 111
        %v2198 = vpop.permute.xlu0 %2197
        %2199 = vrot.lane.b32.xlu0 %v738, 111
        %v2200 = vpop.permute.xlu0 %2199
        %2201 = vrot.lane.b32.xlu0 %v692, 111
        %v2202 = vpop.permute.xlu0 %2201
        %2203 = vrot.lane.b32.xlu0 %v693, 111
        %v2204 = vpop.permute.xlu0 %2203
        %vm2205 = vcmp.lt.s32.totalorder %v434, 111
        %v2206 = vsel %vm2205, %v2202, %v2204
        %v2207 = vsel %vm2205, %v2200, %v2202
        %v2208 = vsel %vm2205, %v2198, %v2200
        %v2209 = vsel %vm2205, %v2204, %v2198
        %s2210 = scalar_lea.vmem [#allocation6], 128
        %v2211 = vld [vmem:[%s2210] ss:$8 sm:$0xf]
        %v2216 = vcombine.low %v2208, %v2207
        %v2217 = vcombine.low %v2206, %v2209
        %v2219 = vunpack.c.l.s4 1966171168
        %v2220 = vunpack.c.0.s8 %v2219
        %v2221 = vlaneseq
        %v2222 = vshrl.u32 %v2221, 7
        %v2223 = vsub.s32 %v2220, %v2222
        %v2224 = vrot.slane %v2216, %v2223
        %v2226 = vunpack.c.l.s4 1966171168
        %v2227 = vunpack.c.0.s8 %v2226
        %v2228 = vlaneseq
        %v2229 = vshrl.u32 %v2228, 7
        %v2230 = vsub.s32 %v2227, %v2229
        %v2231 = vrot.slane %v2217, %v2230
        %v2232 = vcombine.low %v2224, %v2231
        %v2234 = vunpack.c.l.s4 1966171168
        %v2235 = vunpack.c.0.s8 %v2234
        %v2236 = vlaneseq
        %v2237 = vshrl.u32 %v2236, 7
        %v2238 = vsub.s32 %v2235, %v2237
        %v2239 = vrot.slane %v2232, %v2238
        %v2241 = vmul.f32 %v2211, %v2239
        %v2242 = vadd.f32 %v2058, %v2241
        %2243 = vrot.lane.b32.xlu0 %v729, 110
        %v2244 = vpop.permute.xlu0 %2243
        %2245 = vrot.lane.b32.xlu0 %v738, 110
        %v2246 = vpop.permute.xlu0 %2245
        %2247 = vrot.lane.b32.xlu0 %v692, 110
        %v2248 = vpop.permute.xlu0 %2247
        %2249 = vrot.lane.b32.xlu0 %v693, 110
        %v2250 = vpop.permute.xlu0 %2249
        %vm2251 = vcmp.lt.s32.totalorder %v434, 110
        %v2252 = vsel %vm2251, %v2248, %v2250
        %v2253 = vsel %vm2251, %v2246, %v2248
        %v2254 = vsel %vm2251, %v2244, %v2246
        %v2255 = vsel %vm2251, %v2250, %v2244
        %s2256 = scalar_lea.vmem [#allocation6], 129
        %v2257 = vld [vmem:[%s2256] ss:$8 sm:$0xf]
        %v2262 = vcombine.low %v2254, %v2253
        %v2263 = vcombine.low %v2252, %v2255
        %v2265 = vunpack.c.l.s4 1966171168
        %v2266 = vunpack.c.0.s8 %v2265
        %v2267 = vlaneseq
        %v2268 = vshrl.u32 %v2267, 7
        %v2269 = vsub.s32 %v2266, %v2268
        %v2270 = vrot.slane %v2262, %v2269
        %v2272 = vunpack.c.l.s4 1966171168
        %v2273 = vunpack.c.0.s8 %v2272
        %v2274 = vlaneseq
        %v2275 = vshrl.u32 %v2274, 7
        %v2276 = vsub.s32 %v2273, %v2275
        %v2277 = vrot.slane %v2263, %v2276
        %v2278 = vcombine.low %v2270, %v2277
        %v2280 = vunpack.c.l.s4 1966171168
        %v2281 = vunpack.c.0.s8 %v2280
        %v2282 = vlaneseq
        %v2283 = vshrl.u32 %v2282, 7
        %v2284 = vsub.s32 %v2281, %v2283
        %v2285 = vrot.slane %v2278, %v2284
        %v2287 = vmul.f32 %v2257, %v2285
        %v2288 = vadd.f32 %v2104, %v2287
        %2289 = vrot.lane.b32.xlu0 %v729, 109
        %v2290 = vpop.permute.xlu0 %2289
        %2291 = vrot.lane.b32.xlu0 %v738, 109
        %v2292 = vpop.permute.xlu0 %2291
        %2293 = vrot.lane.b32.xlu0 %v692, 109
        %v2294 = vpop.permute.xlu0 %2293
        %2295 = vrot.lane.b32.xlu0 %v693, 109
        %v2296 = vpop.permute.xlu0 %2295
        %vm2297 = vcmp.lt.s32.totalorder %v434, 109
        %v2298 = vsel %vm2297, %v2294, %v2296
        %v2299 = vsel %vm2297, %v2292, %v2294
        %v2300 = vsel %vm2297, %v2290, %v2292
        %v2301 = vsel %vm2297, %v2296, %v2290
        %s2302 = scalar_lea.vmem [#allocation6], 130
        %v2303 = vld [vmem:[%s2302] ss:$8 sm:$0xf]
        %v2308 = vcombine.low %v2300, %v2299
        %v2309 = vcombine.low %v2298, %v2301
        %v2311 = vunpack.c.l.s4 1966171168
        %v2312 = vunpack.c.0.s8 %v2311
        %v2313 = vlaneseq
        %v2314 = vshrl.u32 %v2313, 7
        %v2315 = vsub.s32 %v2312, %v2314
        %v2316 = vrot.slane %v2308, %v2315
        %v2318 = vunpack.c.l.s4 1966171168
        %v2319 = vunpack.c.0.s8 %v2318
        %v2320 = vlaneseq
        %v2321 = vshrl.u32 %v2320, 7
        %v2322 = vsub.s32 %v2319, %v2321
        %v2323 = vrot.slane %v2309, %v2322
        %v2324 = vcombine.low %v2316, %v2323
        %v2326 = vunpack.c.l.s4 1966171168
        %v2327 = vunpack.c.0.s8 %v2326
        %v2328 = vlaneseq
        %v2329 = vshrl.u32 %v2328, 7
        %v2330 = vsub.s32 %v2327, %v2329
        %v2331 = vrot.slane %v2324, %v2330
        %v2333 = vmul.f32 %v2303, %v2331
        %v2334 = vadd.f32 %v2150, %v2333
        %2335 = vrot.lane.b32.xlu0 %v729, 99
        %v2336 = vpop.permute.xlu0 %2335
        %2337 = vrot.lane.b32.xlu0 %v738, 99
        %v2338 = vpop.permute.xlu0 %2337
        %2339 = vrot.lane.b32.xlu0 %v692, 99
        %v2340 = vpop.permute.xlu0 %2339
        %2341 = vrot.lane.b32.xlu0 %v693, 99
        %v2342 = vpop.permute.xlu0 %2341
        %vm2343 = vcmp.lt.s32.totalorder %v434, 99
        %v2344 = vsel %vm2343, %v2340, %v2342
        %v2345 = vsel %vm2343, %v2338, %v2340
        %v2346 = vsel %vm2343, %v2336, %v2338
        %v2347 = vsel %vm2343, %v2342, %v2336
        %s2348 = scalar_lea.vmem [#allocation6], 131
        %v2349 = vld [vmem:[%s2348] ss:$8 sm:$0xf]
        %v2354 = vcombine.low %v2346, %v2345
        %v2355 = vcombine.low %v2344, %v2347
        %v2357 = vunpack.c.l.s4 1966171168
        %v2358 = vunpack.c.0.s8 %v2357
        %v2359 = vlaneseq
        %v2360 = vshrl.u32 %v2359, 7
        %v2361 = vsub.s32 %v2358, %v2360
        %v2362 = vrot.slane %v2354, %v2361
        %v2364 = vunpack.c.l.s4 1966171168
        %v2365 = vunpack.c.0.s8 %v2364
        %v2366 = vlaneseq
        %v2367 = vshrl.u32 %v2366, 7
        %v2368 = vsub.s32 %v2365, %v2367
        %v2369 = vrot.slane %v2355, %v2368
        %v2370 = vcombine.low %v2362, %v2369
        %v2372 = vunpack.c.l.s4 1966171168
        %v2373 = vunpack.c.0.s8 %v2372
        %v2374 = vlaneseq
        %v2375 = vshrl.u32 %v2374, 7
        %v2376 = vsub.s32 %v2373, %v2375
        %v2377 = vrot.slane %v2370, %v2376
        %v2379 = vmul.f32 %v2349, %v2377
        %v2380 = vadd.f32 %v2196, %v2379
        %2381 = vrot.lane.b32.xlu0 %v729, 98
        %v2382 = vpop.permute.xlu0 %2381
        %2383 = vrot.lane.b32.xlu0 %v738, 98
        %v2384 = vpop.permute.xlu0 %2383
        %2385 = vrot.lane.b32.xlu0 %v692, 98
        %v2386 = vpop.permute.xlu0 %2385
        %2387 = vrot.lane.b32.xlu0 %v693, 98
        %v2388 = vpop.permute.xlu0 %2387
        %vm2389 = vcmp.lt.s32.totalorder %v434, 98
        %v2390 = vsel %vm2389, %v2386, %v2388
        %v2391 = vsel %vm2389, %v2384, %v2386
        %v2392 = vsel %vm2389, %v2382, %v2384
        %v2393 = vsel %vm2389, %v2388, %v2382
        %s2394 = scalar_lea.vmem [#allocation6], 132
        %v2395 = vld [vmem:[%s2394] ss:$8 sm:$0xf]
        %v2400 = vcombine.low %v2392, %v2391
        %v2401 = vcombine.low %v2390, %v2393
        %v2403 = vunpack.c.l.s4 1966171168
        %v2404 = vunpack.c.0.s8 %v2403
        %v2405 = vlaneseq
        %v2406 = vshrl.u32 %v2405, 7
        %v2407 = vsub.s32 %v2404, %v2406
        %v2408 = vrot.slane %v2400, %v2407
        %v2410 = vunpack.c.l.s4 1966171168
        %v2411 = vunpack.c.0.s8 %v2410
        %v2412 = vlaneseq
        %v2413 = vshrl.u32 %v2412, 7
        %v2414 = vsub.s32 %v2411, %v2413
        %v2415 = vrot.slane %v2401, %v2414
        %v2416 = vcombine.low %v2408, %v2415
        %v2418 = vunpack.c.l.s4 1966171168
        %v2419 = vunpack.c.0.s8 %v2418
        %v2420 = vlaneseq
        %v2421 = vshrl.u32 %v2420, 7
        %v2422 = vsub.s32 %v2419, %v2421
        %v2423 = vrot.slane %v2416, %v2422
        %v2425 = vmul.f32 %v2395, %v2423
        %v2426 = vadd.f32 %v2242, %v2425
        %2427 = vrot.lane.b32.xlu0 %v729, 97
        %v2428 = vpop.permute.xlu0 %2427
        %2429 = vrot.lane.b32.xlu0 %v738, 97
        %v2430 = vpop.permute.xlu0 %2429
        %2431 = vrot.lane.b32.xlu0 %v692, 97
        %v2432 = vpop.permute.xlu0 %2431
        %2433 = vrot.lane.b32.xlu0 %v693, 97
        %v2434 = vpop.permute.xlu0 %2433
        %vm2435 = vcmp.lt.s32.totalorder %v434, 97
        %v2436 = vsel %vm2435, %v2432, %v2434
        %v2437 = vsel %vm2435, %v2430, %v2432
        %v2438 = vsel %vm2435, %v2428, %v2430
        %v2439 = vsel %vm2435, %v2434, %v2428
        %s2440 = scalar_lea.vmem [#allocation6], 133
        %v2441 = vld [vmem:[%s2440] ss:$8 sm:$0xf]
        %v2446 = vcombine.low %v2438, %v2437
        %v2447 = vcombine.low %v2436, %v2439
        %v2449 = vunpack.c.l.s4 1966171168
        %v2450 = vunpack.c.0.s8 %v2449
        %v2451 = vlaneseq
        %v2452 = vshrl.u32 %v2451, 7
        %v2453 = vsub.s32 %v2450, %v2452
        %v2454 = vrot.slane %v2446, %v2453
        %v2456 = vunpack.c.l.s4 1966171168
        %v2457 = vunpack.c.0.s8 %v2456
        %v2458 = vlaneseq
        %v2459 = vshrl.u32 %v2458, 7
        %v2460 = vsub.s32 %v2457, %v2459
        %v2461 = vrot.slane %v2447, %v2460
        %v2462 = vcombine.low %v2454, %v2461
        %v2464 = vunpack.c.l.s4 1966171168
        %v2465 = vunpack.c.0.s8 %v2464
        %v2466 = vlaneseq
        %v2467 = vshrl.u32 %v2466, 7
        %v2468 = vsub.s32 %v2465, %v2467
        %v2469 = vrot.slane %v2462, %v2468
        %v2471 = vmul.f32 %v2441, %v2469
        %v2472 = vadd.f32 %v2288, %v2471
        %2473 = vrot.lane.b32.xlu0 %v729, 96
        %v2474 = vpop.permute.xlu0 %2473
        %2475 = vrot.lane.b32.xlu0 %v738, 96
        %v2476 = vpop.permute.xlu0 %2475
        %2477 = vrot.lane.b32.xlu0 %v692, 96
        %v2478 = vpop.permute.xlu0 %2477
        %2479 = vrot.lane.b32.xlu0 %v693, 96
        %v2480 = vpop.permute.xlu0 %2479
        %vm2481 = vcmp.lt.s32.totalorder %v434, 96
        %v2482 = vsel %vm2481, %v2478, %v2480
        %v2483 = vsel %vm2481, %v2476, %v2478
        %v2484 = vsel %vm2481, %v2474, %v2476
        %v2485 = vsel %vm2481, %v2480, %v2474
        %s2486 = scalar_lea.vmem [#allocation6], 134
        %v2487 = vld [vmem:[%s2486] ss:$8 sm:$0xf]
        %v2492 = vcombine.low %v2484, %v2483
        %v2493 = vcombine.low %v2482, %v2485
        %v2495 = vunpack.c.l.s4 1966171168
        %v2496 = vunpack.c.0.s8 %v2495
        %v2497 = vlaneseq
        %v2498 = vshrl.u32 %v2497, 7
        %v2499 = vsub.s32 %v2496, %v2498
        %v2500 = vrot.slane %v2492, %v2499
        %v2502 = vunpack.c.l.s4 1966171168
        %v2503 = vunpack.c.0.s8 %v2502
        %v2504 = vlaneseq
        %v2505 = vshrl.u32 %v2504, 7
        %v2506 = vsub.s32 %v2503, %v2505
        %v2507 = vrot.slane %v2493, %v2506
        %v2508 = vcombine.low %v2500, %v2507
        %v2510 = vunpack.c.l.s4 1966171168
        %v2511 = vunpack.c.0.s8 %v2510
        %v2512 = vlaneseq
        %v2513 = vshrl.u32 %v2512, 7
        %v2514 = vsub.s32 %v2511, %v2513
        %v2515 = vrot.slane %v2508, %v2514
        %v2517 = vmul.f32 %v2487, %v2515
        %v2518 = vadd.f32 %v2334, %v2517
        %2519 = vrot.lane.b32.xlu0 %v729, 95
        %v2520 = vpop.permute.xlu0 %2519
        %2521 = vrot.lane.b32.xlu0 %v738, 95
        %v2522 = vpop.permute.xlu0 %2521
        %2523 = vrot.lane.b32.xlu0 %v692, 95
        %v2524 = vpop.permute.xlu0 %2523
        %2525 = vrot.lane.b32.xlu0 %v693, 95
        %v2526 = vpop.permute.xlu0 %2525
        %vm2527 = vcmp.lt.s32.totalorder %v434, 95
        %v2528 = vsel %vm2527, %v2524, %v2526
        %v2529 = vsel %vm2527, %v2522, %v2524
        %v2530 = vsel %vm2527, %v2520, %v2522
        %v2531 = vsel %vm2527, %v2526, %v2520
        %s2532 = scalar_lea.vmem [#allocation6], 135
        %v2533 = vld [vmem:[%s2532] ss:$8 sm:$0xf]
        %v2538 = vcombine.low %v2530, %v2529
        %v2539 = vcombine.low %v2528, %v2531
        %v2541 = vunpack.c.l.s4 1966171168
        %v2542 = vunpack.c.0.s8 %v2541
        %v2543 = vlaneseq
        %v2544 = vshrl.u32 %v2543, 7
        %v2545 = vsub.s32 %v2542, %v2544
        %v2546 = vrot.slane %v2538, %v2545
        %v2548 = vunpack.c.l.s4 1966171168
        %v2549 = vunpack.c.0.s8 %v2548
        %v2550 = vlaneseq
        %v2551 = vshrl.u32 %v2550, 7
        %v2552 = vsub.s32 %v2549, %v2551
        %v2553 = vrot.slane %v2539, %v2552
        %v2554 = vcombine.low %v2546, %v2553
        %v2556 = vunpack.c.l.s4 1966171168
        %v2557 = vunpack.c.0.s8 %v2556
        %v2558 = vlaneseq
        %v2559 = vshrl.u32 %v2558, 7
        %v2560 = vsub.s32 %v2557, %v2559
        %v2561 = vrot.slane %v2554, %v2560
        %v2563 = vmul.f32 %v2533, %v2561
        %v2564 = vadd.f32 %v2380, %v2563
        %2565 = vrot.lane.b32.xlu0 %v729, 94
        %v2566 = vpop.permute.xlu0 %2565
        %2567 = vrot.lane.b32.xlu0 %v738, 94
        %v2568 = vpop.permute.xlu0 %2567
        %2569 = vrot.lane.b32.xlu0 %v692, 94
        %v2570 = vpop.permute.xlu0 %2569
        %2571 = vrot.lane.b32.xlu0 %v693, 94
        %v2572 = vpop.permute.xlu0 %2571
        %vm2573 = vcmp.lt.s32.totalorder %v434, 94
        %v2574 = vsel %vm2573, %v2570, %v2572
        %v2575 = vsel %vm2573, %v2568, %v2570
        %v2576 = vsel %vm2573, %v2566, %v2568
        %v2577 = vsel %vm2573, %v2572, %v2566
        %s2578 = scalar_lea.vmem [#allocation6], 160
        %v2579 = vld [vmem:[%s2578] ss:$8 sm:$0xf]
        %v2584 = vcombine.low %v2576, %v2575
        %v2585 = vcombine.low %v2574, %v2577
        %v2587 = vunpack.c.l.s4 1966171168
        %v2588 = vunpack.c.0.s8 %v2587
        %v2589 = vlaneseq
        %v2590 = vshrl.u32 %v2589, 7
        %v2591 = vsub.s32 %v2588, %v2590
        %v2592 = vrot.slane %v2584, %v2591
        %v2594 = vunpack.c.l.s4 1966171168
        %v2595 = vunpack.c.0.s8 %v2594
        %v2596 = vlaneseq
        %v2597 = vshrl.u32 %v2596, 7
        %v2598 = vsub.s32 %v2595, %v2597
        %v2599 = vrot.slane %v2585, %v2598
        %v2600 = vcombine.low %v2592, %v2599
        %v2602 = vunpack.c.l.s4 1966171168
        %v2603 = vunpack.c.0.s8 %v2602
        %v2604 = vlaneseq
        %v2605 = vshrl.u32 %v2604, 7
        %v2606 = vsub.s32 %v2603, %v2605
        %v2607 = vrot.slane %v2600, %v2606
        %v2609 = vmul.f32 %v2579, %v2607
        %v2610 = vadd.f32 %v2426, %v2609
        %2611 = vrot.lane.b32.xlu0 %v729, 93
        %v2612 = vpop.permute.xlu0 %2611
        %2613 = vrot.lane.b32.xlu0 %v738, 93
        %v2614 = vpop.permute.xlu0 %2613
        %2615 = vrot.lane.b32.xlu0 %v692, 93
        %v2616 = vpop.permute.xlu0 %2615
        %2617 = vrot.lane.b32.xlu0 %v693, 93
        %v2618 = vpop.permute.xlu0 %2617
        %vm2619 = vcmp.lt.s32.totalorder %v434, 93
        %v2620 = vsel %vm2619, %v2616, %v2618
        %v2621 = vsel %vm2619, %v2614, %v2616
        %v2622 = vsel %vm2619, %v2612, %v2614
        %v2623 = vsel %vm2619, %v2618, %v2612
        %s2624 = scalar_lea.vmem [#allocation6], 161
        %v2625 = vld [vmem:[%s2624] ss:$8 sm:$0xf]
        %v2630 = vcombine.low %v2622, %v2621
        %v2631 = vcombine.low %v2620, %v2623
        %v2633 = vunpack.c.l.s4 1966171168
        %v2634 = vunpack.c.0.s8 %v2633
        %v2635 = vlaneseq
        %v2636 = vshrl.u32 %v2635, 7
        %v2637 = vsub.s32 %v2634, %v2636
        %v2638 = vrot.slane %v2630, %v2637
        %v2640 = vunpack.c.l.s4 1966171168
        %v2641 = vunpack.c.0.s8 %v2640
        %v2642 = vlaneseq
        %v2643 = vshrl.u32 %v2642, 7
        %v2644 = vsub.s32 %v2641, %v2643
        %v2645 = vrot.slane %v2631, %v2644
        %v2646 = vcombine.low %v2638, %v2645
        %v2648 = vunpack.c.l.s4 1966171168
        %v2649 = vunpack.c.0.s8 %v2648
        %v2650 = vlaneseq
        %v2651 = vshrl.u32 %v2650, 7
        %v2652 = vsub.s32 %v2649, %v2651
        %v2653 = vrot.slane %v2646, %v2652
        %v2655 = vmul.f32 %v2625, %v2653
        %v2656 = vadd.f32 %v2472, %v2655
        %2657 = vrot.lane.b32.xlu0 %v729, 83
        %v2658 = vpop.permute.xlu0 %2657
        %2659 = vrot.lane.b32.xlu0 %v738, 83
        %v2660 = vpop.permute.xlu0 %2659
        %2661 = vrot.lane.b32.xlu0 %v692, 83
        %v2662 = vpop.permute.xlu0 %2661
        %2663 = vrot.lane.b32.xlu0 %v693, 83
        %v2664 = vpop.permute.xlu0 %2663
        %vm2665 = vcmp.lt.s32.totalorder %v434, 83
        %v2666 = vsel %vm2665, %v2662, %v2664
        %v2667 = vsel %vm2665, %v2660, %v2662
        %v2668 = vsel %vm2665, %v2658, %v2660
        %v2669 = vsel %vm2665, %v2664, %v2658
        %s2670 = scalar_lea.vmem [#allocation6], 162
        %v2671 = vld [vmem:[%s2670] ss:$8 sm:$0xf]
        %v2676 = vcombine.low %v2668, %v2667
        %v2677 = vcombine.low %v2666, %v2669
        %v2679 = vunpack.c.l.s4 1966171168
        %v2680 = vunpack.c.0.s8 %v2679
        %v2681 = vlaneseq
        %v2682 = vshrl.u32 %v2681, 7
        %v2683 = vsub.s32 %v2680, %v2682
        %v2684 = vrot.slane %v2676, %v2683
        %v2686 = vunpack.c.l.s4 1966171168
        %v2687 = vunpack.c.0.s8 %v2686
        %v2688 = vlaneseq
        %v2689 = vshrl.u32 %v2688, 7
        %v2690 = vsub.s32 %v2687, %v2689
        %v2691 = vrot.slane %v2677, %v2690
        %v2692 = vcombine.low %v2684, %v2691
        %v2694 = vunpack.c.l.s4 1966171168
        %v2695 = vunpack.c.0.s8 %v2694
        %v2696 = vlaneseq
        %v2697 = vshrl.u32 %v2696, 7
        %v2698 = vsub.s32 %v2695, %v2697
        %v2699 = vrot.slane %v2692, %v2698
        %v2701 = vmul.f32 %v2671, %v2699
        %v2702 = vadd.f32 %v2518, %v2701
        %2703 = vrot.lane.b32.xlu0 %v729, 82
        %v2704 = vpop.permute.xlu0 %2703
        %2705 = vrot.lane.b32.xlu0 %v738, 82
        %v2706 = vpop.permute.xlu0 %2705
        %2707 = vrot.lane.b32.xlu0 %v692, 82
        %v2708 = vpop.permute.xlu0 %2707
        %2709 = vrot.lane.b32.xlu0 %v693, 82
        %v2710 = vpop.permute.xlu0 %2709
        %vm2711 = vcmp.lt.s32.totalorder %v434, 82
        %v2712 = vsel %vm2711, %v2708, %v2710
        %v2713 = vsel %vm2711, %v2706, %v2708
        %v2714 = vsel %vm2711, %v2704, %v2706
        %v2715 = vsel %vm2711, %v2710, %v2704
        %s2716 = scalar_lea.vmem [#allocation6], 163
        %v2717 = vld [vmem:[%s2716] ss:$8 sm:$0xf]
        %v2722 = vcombine.low %v2714, %v2713
        %v2723 = vcombine.low %v2712, %v2715
        %v2725 = vunpack.c.l.s4 1966171168
        %v2726 = vunpack.c.0.s8 %v2725
        %v2727 = vlaneseq
        %v2728 = vshrl.u32 %v2727, 7
        %v2729 = vsub.s32 %v2726, %v2728
        %v2730 = vrot.slane %v2722, %v2729
        %v2732 = vunpack.c.l.s4 1966171168
        %v2733 = vunpack.c.0.s8 %v2732
        %v2734 = vlaneseq
        %v2735 = vshrl.u32 %v2734, 7
        %v2736 = vsub.s32 %v2733, %v2735
        %v2737 = vrot.slane %v2723, %v2736
        %v2738 = vcombine.low %v2730, %v2737
        %v2740 = vunpack.c.l.s4 1966171168
        %v2741 = vunpack.c.0.s8 %v2740
        %v2742 = vlaneseq
        %v2743 = vshrl.u32 %v2742, 7
        %v2744 = vsub.s32 %v2741, %v2743
        %v2745 = vrot.slane %v2738, %v2744
        %v2747 = vmul.f32 %v2717, %v2745
        %v2748 = vadd.f32 %v2564, %v2747
        %2749 = vrot.lane.b32.xlu0 %v729, 81
        %v2750 = vpop.permute.xlu0 %2749
        %2751 = vrot.lane.b32.xlu0 %v738, 81
        %v2752 = vpop.permute.xlu0 %2751
        %2753 = vrot.lane.b32.xlu0 %v692, 81
        %v2754 = vpop.permute.xlu0 %2753
        %2755 = vrot.lane.b32.xlu0 %v693, 81
        %v2756 = vpop.permute.xlu0 %2755
        %vm2757 = vcmp.lt.s32.totalorder %v434, 81
        %v2758 = vsel %vm2757, %v2754, %v2756
        %v2759 = vsel %vm2757, %v2752, %v2754
        %v2760 = vsel %vm2757, %v2750, %v2752
        %v2761 = vsel %vm2757, %v2756, %v2750
        %s2762 = scalar_lea.vmem [#allocation6], 164
        %v2763 = vld [vmem:[%s2762] ss:$8 sm:$0xf]
        %v2768 = vcombine.low %v2760, %v2759
        %v2769 = vcombine.low %v2758, %v2761
        %v2771 = vunpack.c.l.s4 1966171168
        %v2772 = vunpack.c.0.s8 %v2771
        %v2773 = vlaneseq
        %v2774 = vshrl.u32 %v2773, 7
        %v2775 = vsub.s32 %v2772, %v2774
        %v2776 = vrot.slane %v2768, %v2775
        %v2778 = vunpack.c.l.s4 1966171168
        %v2779 = vunpack.c.0.s8 %v2778
        %v2780 = vlaneseq
        %v2781 = vshrl.u32 %v2780, 7
        %v2782 = vsub.s32 %v2779, %v2781
        %v2783 = vrot.slane %v2769, %v2782
        %v2784 = vcombine.low %v2776, %v2783
        %v2786 = vunpack.c.l.s4 1966171168
        %v2787 = vunpack.c.0.s8 %v2786
        %v2788 = vlaneseq
        %v2789 = vshrl.u32 %v2788, 7
        %v2790 = vsub.s32 %v2787, %v2789
        %v2791 = vrot.slane %v2784, %v2790
        %v2793 = vmul.f32 %v2763, %v2791
        %v2794 = vadd.f32 %v2610, %v2793
        %2795 = vrot.lane.b32.xlu0 %v729, 80
        %v2796 = vpop.permute.xlu0 %2795
        %2797 = vrot.lane.b32.xlu0 %v738, 80
        %v2798 = vpop.permute.xlu0 %2797
        %2799 = vrot.lane.b32.xlu0 %v692, 80
        %v2800 = vpop.permute.xlu0 %2799
        %2801 = vrot.lane.b32.xlu0 %v693, 80
        %v2802 = vpop.permute.xlu0 %2801
        %vm2803 = vcmp.lt.s32.totalorder %v434, 80
        %v2804 = vsel %vm2803, %v2800, %v2802
        %v2805 = vsel %vm2803, %v2798, %v2800
        %v2806 = vsel %vm2803, %v2796, %v2798
        %v2807 = vsel %vm2803, %v2802, %v2796
        %s2808 = scalar_lea.vmem [#allocation6], 165
        %v2809 = vld [vmem:[%s2808] ss:$8 sm:$0xf]
        %v2814 = vcombine.low %v2806, %v2805
        %v2815 = vcombine.low %v2804, %v2807
        %v2817 = vunpack.c.l.s4 1966171168
        %v2818 = vunpack.c.0.s8 %v2817
        %v2819 = vlaneseq
        %v2820 = vshrl.u32 %v2819, 7
        %v2821 = vsub.s32 %v2818, %v2820
        %v2822 = vrot.slane %v2814, %v2821
        %v2824 = vunpack.c.l.s4 1966171168
        %v2825 = vunpack.c.0.s8 %v2824
        %v2826 = vlaneseq
        %v2827 = vshrl.u32 %v2826, 7
        %v2828 = vsub.s32 %v2825, %v2827
        %v2829 = vrot.slane %v2815, %v2828
        %v2830 = vcombine.low %v2822, %v2829
        %v2832 = vunpack.c.l.s4 1966171168
        %v2833 = vunpack.c.0.s8 %v2832
        %v2834 = vlaneseq
        %v2835 = vshrl.u32 %v2834, 7
        %v2836 = vsub.s32 %v2833, %v2835
        %v2837 = vrot.slane %v2830, %v2836
        %v2839 = vmul.f32 %v2809, %v2837
        %v2840 = vadd.f32 %v2656, %v2839
        %2841 = vrot.lane.b32.xlu0 %v729, 79
        %v2842 = vpop.permute.xlu0 %2841
        %2843 = vrot.lane.b32.xlu0 %v738, 79
        %v2844 = vpop.permute.xlu0 %2843
        %2845 = vrot.lane.b32.xlu0 %v692, 79
        %v2846 = vpop.permute.xlu0 %2845
        %2847 = vrot.lane.b32.xlu0 %v693, 79
        %v2848 = vpop.permute.xlu0 %2847
        %vm2849 = vcmp.lt.s32.totalorder %v434, 79
        %v2850 = vsel %vm2849, %v2846, %v2848
        %v2851 = vsel %vm2849, %v2844, %v2846
        %v2852 = vsel %vm2849, %v2842, %v2844
        %v2853 = vsel %vm2849, %v2848, %v2842
        %s2854 = scalar_lea.vmem [#allocation6], 166
        %v2855 = vld [vmem:[%s2854] ss:$8 sm:$0xf]
        %v2860 = vcombine.low %v2852, %v2851
        %v2861 = vcombine.low %v2850, %v2853
        %v2863 = vunpack.c.l.s4 1966171168
        %v2864 = vunpack.c.0.s8 %v2863
        %v2865 = vlaneseq
        %v2866 = vshrl.u32 %v2865, 7
        %v2867 = vsub.s32 %v2864, %v2866
        %v2868 = vrot.slane %v2860, %v2867
        %v2870 = vunpack.c.l.s4 1966171168
        %v2871 = vunpack.c.0.s8 %v2870
        %v2872 = vlaneseq
        %v2873 = vshrl.u32 %v2872, 7
        %v2874 = vsub.s32 %v2871, %v2873
        %v2875 = vrot.slane %v2861, %v2874
        %v2876 = vcombine.low %v2868, %v2875
        %v2878 = vunpack.c.l.s4 1966171168
        %v2879 = vunpack.c.0.s8 %v2878
        %v2880 = vlaneseq
        %v2881 = vshrl.u32 %v2880, 7
        %v2882 = vsub.s32 %v2879, %v2881
        %v2883 = vrot.slane %v2876, %v2882
        %v2885 = vmul.f32 %v2855, %v2883
        %v2886 = vadd.f32 %v2702, %v2885
        %2887 = vrot.lane.b32.xlu0 %v729, 78
        %v2888 = vpop.permute.xlu0 %2887
        %2889 = vrot.lane.b32.xlu0 %v738, 78
        %v2890 = vpop.permute.xlu0 %2889
        %2891 = vrot.lane.b32.xlu0 %v692, 78
        %v2892 = vpop.permute.xlu0 %2891
        %2893 = vrot.lane.b32.xlu0 %v693, 78
        %v2894 = vpop.permute.xlu0 %2893
        %vm2895 = vcmp.lt.s32.totalorder %v434, 78
        %v2896 = vsel %vm2895, %v2892, %v2894
        %v2897 = vsel %vm2895, %v2890, %v2892
        %v2898 = vsel %vm2895, %v2888, %v2890
        %v2899 = vsel %vm2895, %v2894, %v2888
        %s2900 = scalar_lea.vmem [#allocation6], 167
        %v2901 = vld [vmem:[%s2900] ss:$8 sm:$0xf]
        %v2906 = vcombine.low %v2898, %v2897
        %v2907 = vcombine.low %v2896, %v2899
        %v2909 = vunpack.c.l.s4 1966171168
        %v2910 = vunpack.c.0.s8 %v2909
        %v2911 = vlaneseq
        %v2912 = vshrl.u32 %v2911, 7
        %v2913 = vsub.s32 %v2910, %v2912
        %v2914 = vrot.slane %v2906, %v2913
        %v2916 = vunpack.c.l.s4 1966171168
        %v2917 = vunpack.c.0.s8 %v2916
        %v2918 = vlaneseq
        %v2919 = vshrl.u32 %v2918, 7
        %v2920 = vsub.s32 %v2917, %v2919
        %v2921 = vrot.slane %v2907, %v2920
        %v2922 = vcombine.low %v2914, %v2921
        %v2924 = vunpack.c.l.s4 1966171168
        %v2925 = vunpack.c.0.s8 %v2924
        %v2926 = vlaneseq
        %v2927 = vshrl.u32 %v2926, 7
        %v2928 = vsub.s32 %v2925, %v2927
        %v2929 = vrot.slane %v2922, %v2928
        %v2931 = vmul.f32 %v2901, %v2929
        %v2932 = vadd.f32 %v2748, %v2931
        %2933 = vrot.lane.b32.xlu0 %v729, 77
        %v2934 = vpop.permute.xlu0 %2933
        %2935 = vrot.lane.b32.xlu0 %v738, 77
        %v2936 = vpop.permute.xlu0 %2935
        %2937 = vrot.lane.b32.xlu0 %v692, 77
        %v2938 = vpop.permute.xlu0 %2937
        %2939 = vrot.lane.b32.xlu0 %v693, 77
        %v2940 = vpop.permute.xlu0 %2939
        %vm2941 = vcmp.lt.s32.totalorder %v434, 77
        %v2942 = vsel %vm2941, %v2938, %v2940
        %v2943 = vsel %vm2941, %v2936, %v2938
        %v2944 = vsel %vm2941, %v2934, %v2936
        %v2945 = vsel %vm2941, %v2940, %v2934
        %s2946 = scalar_lea.vmem [#allocation6], 192
        %v2947 = vld [vmem:[%s2946] ss:$8 sm:$0xf]
        %v2952 = vcombine.low %v2944, %v2943
        %v2953 = vcombine.low %v2942, %v2945
        %v2955 = vunpack.c.l.s4 1966171168
        %v2956 = vunpack.c.0.s8 %v2955
        %v2957 = vlaneseq
        %v2958 = vshrl.u32 %v2957, 7
        %v2959 = vsub.s32 %v2956, %v2958
        %v2960 = vrot.slane %v2952, %v2959
        %v2962 = vunpack.c.l.s4 1966171168
        %v2963 = vunpack.c.0.s8 %v2962
        %v2964 = vlaneseq
        %v2965 = vshrl.u32 %v2964, 7
        %v2966 = vsub.s32 %v2963, %v2965
        %v2967 = vrot.slane %v2953, %v2966
        %v2968 = vcombine.low %v2960, %v2967
        %v2970 = vunpack.c.l.s4 1966171168
        %v2971 = vunpack.c.0.s8 %v2970
        %v2972 = vlaneseq
        %v2973 = vshrl.u32 %v2972, 7
        %v2974 = vsub.s32 %v2971, %v2973
        %v2975 = vrot.slane %v2968, %v2974
        %v2977 = vmul.f32 %v2947, %v2975
        %v2978 = vadd.f32 %v2794, %v2977
        %v2979 = vadd.f32 %v2978, %v2840
        %v2980 = vadd.f32 %v2886, %v2932
        %v2981 = vadd.f32 %v2979, %v2980
        %v2983 = vrot.slane %v2981, 2
        %v2985 = vadd.f32 %v2981, %v2983
        %s2986 = sld [smem:[#allocation2]]
        %v2987 = vstv %s2986
        %v2988 = vadd.f32 %v2985, %v2987
        %v2989 = vxor.u32 %v2988, 2147483648
        %v2990 = vmul.f32 %v2989, 1.442695
        %v2991 = vpow.pop %v2990
        %v2992 = vadd.f32 %v2991, 1.0
        %v2993 = vrcp.pop %v2992
        %v2994 = vmul.f32 1.0, %v2993
        %v2995 = vld [vmem:[%s228] sm:$0xff]
        %v2996 = vld [vmem:[%s228 + $0x8] sm:$0xff]
        %v2997 = vld [vmem:[%s228 + $0x10] sm:$0xff]
        %v2998 = vld [vmem:[%s228 + $0x18] sm:$0xff]
        %v2999 = vld [vmem:[%s228 + $0x20] sm:$0xff]
        %v3000 = vld [vmem:[%s228 + $0x28] sm:$0xff]
        %v3001 = vld [vmem:[%s228 + $0x30] sm:$0xff]
        %v3002 = vld [vmem:[%s228 + $0x38] sm:$0xff]
        %v3003 = vmul.f32 %v2995, %v700
        %v3004 = vmul.f32 %v2996, %v700
        %v3005 = vmul.f32 %v2997, %v704
        %v3006 = vmul.f32 %v2998, %v704
        %v3007 = vmul.f32 %v2999, %v708
        %v3008 = vmul.f32 %v3000, %v708
        %v3009 = vmul.f32 %v3001, %v712
        %v3010 = vmul.f32 %v3002, %v712
        %v3012 = vlaneseq
        %v3013 = vshrl.u32 %v3012, 7
        %v3014 = vsub.s32 0, %v3013
        %v3015 = vrot.slane %v2994, %v3014
        %v3016 = vlaneseq
        %v3017 = vshrl.u32 %v3016, 7
        %v3018 = vsub.s32 1, %v3017
        %v3019 = vrot.slane %v2994, %v3018
        %v3022 = vmul.f32 %v3003, %v3015
        %v3023 = vmul.f32 %v3004, %v3019
        %v3024 = vmul.f32 %v3005, %v3015
        %v3025 = vmul.f32 %v3006, %v3019
        %v3026 = vmul.f32 %v3007, %v3015
        %v3027 = vmul.f32 %v3008, %v3019
        %v3028 = vmul.f32 %v3009, %v3015
        %v3029 = vmul.f32 %v3010, %v3019
        %3030 = vst [vmem:[%s258] sm:$0xff] %v3022
        %3031 = vst [vmem:[%s258 + $0x8] sm:$0xff] %v3023
        %3032 = vst [vmem:[%s258 + $0x10] sm:$0xff] %v3024
        %3033 = vst [vmem:[%s258 + $0x18] sm:$0xff] %v3025
        %3034 = vst [vmem:[%s258 + $0x20] sm:$0xff] %v3026
        %3035 = vst [vmem:[%s258 + $0x28] sm:$0xff] %v3027
        %3036 = vst [vmem:[%s258 + $0x30] sm:$0xff] %v3028
        %3037 = vst [vmem:[%s258 + $0x38] sm:$0xff] %v3029
        %s3038 = sand.u32 %s142, 1
        %s3039 = scalar_lea.sflag [#allocation5], %s3038
        %s3040 = sand.u32 %s142, 1
        %s3041 = smul.addr %s3040, 64
        %s3042 = scalar_lea.vmem [#allocation8], %s3041
        // Predicated region
        $region49: #{tpu_custom_call.1} parent=39 // pred_check
          %p3043 = pneg %p152
        $region50: #{tpu_custom_call.1} parent=39 // pred_check_branch
          %3045 = sbr.rel (%p3043) target = $region52
        $region51: #{tpu_custom_call.1} parent=39 // pred_region
          %s3047 = ssub.s32 1024, 1024
          %3048 = vsyncadd %s3039, %s3047
          %s3049 = smul.addr %s24, 8
          %s3050 = smul.addr %s3049, 128
          %s3051 = scalar_lea.hbm %s5, %s3050
          %s3052 = sshll.u32 %s3042, 4
          %s3053 = int_to_ptr.vmem [resolvable:$true] %s3052
          %3058 = dma.vmem_to_hbm [thread:$0]  %s3053, 1024, %s3051, %s3039, 256, 256, 16
        $region52: #{tpu_custom_call.1} parent=39 // pred_fallthru
          _
      $region40: #{tpu_custom_call.1} parent=5 // pred_fallthru
        _
      %p3059 = scmp.le.s32.totalorder 2, %s19
      // Predicated region
      $region53: #{tpu_custom_call.1} parent=5 // pred_check
        %p3060 = pneg %p3059
      $region54: #{tpu_custom_call.1} parent=5 // pred_check_branch
        %3062 = sbr.rel (%p3060) target = $region56
      $region55: #{tpu_custom_call.1} parent=5 // pred_region
        %s3063 = ssub.s32 %s19, 2
        // Predicated region
        $region57: #{tpu_custom_call.1} parent=55 // pred_check
          %p3064 = pneg %p158
        $region58: #{tpu_custom_call.1} parent=55 // pred_check_branch
          %3066 = sbr.rel (%p3064) target = $region60
        $region59: #{tpu_custom_call.1} parent=55 // pred_region
          %s3067 = sand.u32 %s143, 1
          %s3068 = scalar_lea.sflag [#allocation5], %s3067
          %s3069 = sand.u32 %s143, 1
          %s3070 = smul.addr %s3069, 64
          %s3071 = scalar_lea.vmem [#allocation8], %s3070
          %3072 = dma.done %s3068, 1024
        $region60: #{tpu_custom_call.1} parent=55 // pred_fallthru
          _
      $region56: #{tpu_custom_call.1} parent=5 // pred_fallthru
        _
    $region6: #{tpu_custom_call.1} parent=1 // loop_footer
      %s23 = sadd.s32 1, %s19
    $region7: #{tpu_custom_call.1} parent=1 // loop_footer_branch
      %18 = sbr.rel target = $region3
    $region8: #{tpu_custom_call.1} parent=1 // loop_exit
      _
    %3073 = vsyncpa [#allocation4], 1
    %s3074 = scalar_lea.sflag [#allocation4], 1
    %3075 = vsyncpa %s3074, 1
    %3076 = vsyncpa [#allocation7], 1
    %3077 = vsyncpa [#allocation5], 1
    %s3078 = scalar_lea.sflag [#allocation5], 1
    %3079 = vsyncpa %s3078, 1

</llo_original>
